<compile_context>
chip_gen: v6e
topology: v6e:2x2x1
jax: 0.10.0
libtpu: 0.0.40
codegen_flags: <defaults>
</compile_context>

<pallas_src>
import functools
import math

import jax
import jax.numpy as jnp
from jax.experimental import pallas as pl
from jax.experimental.pallas import tpu as pltpu


def _attention_kernel(x_ref, wqkv_ref, bqkv_ref, wproj_ref, bproj_ref, o_ref, attn_ref,
                      *, num_heads: int, batch_block: int, seq_len: int):
    R, C = x_ref.shape                      # R = batch_block * seq_len
    head_dim = C // num_heads
    N = seq_len

    # QKV projection for the whole row slab at once (bf16 operands, f32 accumulation).
    x = x_ref[...].astype(jnp.bfloat16)                                  # (R, C)
    qkv = jnp.dot(x, wqkv_ref[...],
                  preferred_element_type=jnp.float32) + bqkv_ref[...]    # (R, 3C) f32
    # (attention scale is already folded into the Q columns / Q bias by the wrapper)

    # Per-(batch, head) attention.  Everything in this loop is tiny (N x head_dim) and
    # stays on the VPU/EUP/XLU, keeping the MXU free for the two big projections.
    for b in range(batch_block):
        r0 = b * N
        for h in range(num_heads):
            lo = h * head_dim
            q_h = qkv[r0:r0 + N, lo:lo + head_dim]                       # (N, hd), pre-scaled
            k_h = qkv[r0:r0 + N, C + lo:C + lo + head_dim]               # (N, hd)
            v_h = qkv[r0:r0 + N, 2 * C + lo:2 * C + lo + head_dim]       # (N, hd)

            if head_dim <= 16:
                # contraction depth == head_dim is far too shallow for the MXU:
                # broadcast-multiply + lane reduce on the VPU/XLU instead.
                s = jnp.sum(q_h[:, None, :] * k_h[None, :, :], axis=-1)  # (N, N) f32
            else:
                s = jax.lax.dot_general(
                    q_h.astype(jnp.bfloat16), k_h.astype(jnp.bfloat16),
                    (((1,), (1,)), ((), ())),
                    preferred_element_type=jnp.float32)

            # numerically-stable softmax in f32 (exp + approx reciprocal -> EUP).
            s = s - jnp.max(s, axis=-1, keepdims=True)
            p = jnp.exp(s)
            p = p * pl.reciprocal(jnp.sum(p, axis=-1, keepdims=True), approx=True)

            # (N, N) @ (N, hd) -> (N, hd); write into the (R, C) scratch at this head's
            # column offset (avoids a jnp.concatenate of narrow per-head pieces).
            attn_ref[r0:r0 + N, lo:lo + head_dim] = jnp.dot(
                p.astype(jnp.bfloat16), v_h.astype(jnp.bfloat16),
                preferred_element_type=jnp.float32)

    # Single lane-dense output projection over the whole slab:
    # (R, C) @ (C, C_pad) + (1, C_pad); padded columns are zero and sliced off outside.
    out = jnp.dot(attn_ref[...].astype(jnp.bfloat16), wproj_ref[...],
                  preferred_element_type=jnp.float32) + bproj_ref[...]
    o_ref[...] = out.astype(o_ref.dtype)


def _pick_batch_block(B: int, N: int, target_rows: int = 256) -> int:
    """Batch elements per grid step: stack rows toward the MXU height while keeping
    >= 2 grid steps (megacore / v7x dual-TC) and 8-row sublane alignment."""
    candidates = [d for d in range(1, B + 1)
                  if B % d == 0 and ((d * N) % 8 == 0 or d == B)]

    def score(d):
        rows, steps = d * N, B // d
        return (steps >= 2 or B == 1, rows <= target_rows, rows)

    return max(candidates, key=score)


def _attention_forward_impl(x, w_qkv, b_qkv, w_proj, b_proj, *, num_heads: int):
    """x: (B, N, C) float32.  Weights in PyTorch nn.Linear layout:
       w_qkv: (3C, C), b_qkv: (3C,), w_proj: (C, C), b_proj: (C,)."""
    B, N, C = x.shape
    head_dim = C // num_heads
    scale = head_dim ** (-0.5)
    C_pad = ((C + 127) // 128) * 128            # lane-dense output width

    # (in, out) weight layout; fold the attention scale into the Q slice of the QKV
    # projection (weights AND bias) so the kernel never multiplies by `scale`.
    q_scale = jnp.concatenate([jnp.full((C,), scale, jnp.float32),
                               jnp.ones((2 * C,), jnp.float32)])
    wqkv_t = jnp.transpose(w_qkv) * q_scale[None, :]            # (C, 3C)
    bqkv = b_qkv * q_scale                                      # (3C,)

    wproj_t = jnp.transpose(w_proj)                             # (C, C)
    bproj = b_proj
    if C_pad != C:                                              # pad output columns -> 128k
        wproj_t = jnp.pad(wproj_t, ((0, 0), (0, C_pad - C)))
        bproj = jnp.pad(bproj, (0, C_pad - C))

    # bf16 matmul operands; biases stay f32 (added to the f32 accumulators).
    wqkv_bf = wqkv_t.astype(jnp.bfloat16)
    wproj_bf = wproj_t.astype(jnp.bfloat16)
    bqkv_2d = bqkv.reshape(1, 3 * C).astype(jnp.float32)
    bproj_2d = bproj.reshape(1, C_pad).astype(jnp.float32)

    B_blk = _pick_batch_block(B, N)
    R = B_blk * N                                               # rows per grid step
    x_flat = x.reshape(B * N, C)

    kernel = functools.partial(_attention_kernel, num_heads=num_heads,
                               batch_block=B_blk, seq_len=N)

    out_flat = pl.pallas_call(
        kernel,
        out_shape=jax.ShapeDtypeStruct((B * N, C_pad), x.dtype),
        grid_spec=pltpu.PrefetchScalarGridSpec(
            num_scalar_prefetch=0,
            grid=(B // B_blk,),
            in_specs=[
                pl.BlockSpec((R, C), lambda i: (i, 0)),          # x row slab
                pl.BlockSpec((C, 3 * C), lambda i: (0, 0)),      # W_qkv^T (bf16, Q-scaled)
                pl.BlockSpec((1, 3 * C), lambda i: (0, 0)),      # b_qkv   (f32, Q-scaled)
                pl.BlockSpec((C, C_pad), lambda i: (0, 0)),      # W_proj^T (bf16, padded)
                pl.BlockSpec((1, C_pad), lambda i: (0, 0)),      # b_proj   (f32, padded)
            ],
            out_specs=pl.BlockSpec((R, C_pad), lambda i: (i, 0)),
            scratch_shapes=[pltpu.VMEM((R, C), jnp.float32)],    # per-head outputs
        ),
        compiler_params=pltpu.CompilerParams(
            dimension_semantics=("parallel",),
            vmem_limit_bytes=32 * 1024 * 1024),
    )(x_flat, wqkv_bf, bqkv_2d, wproj_bf, bproj_2d)

    return out_flat[:, :C].reshape(B, N, C)


# jit the wrapper so weight preprocessing fuses with the pallas_call into one program.
attention_forward = jax.jit(_attention_forward_impl, static_argnames=("num_heads",))


def attention_reference(x, w_qkv, b_qkv, w_proj, b_proj, *, num_heads: int):
    """Pure-JAX f32 reference matching the PyTorch forward exactly."""
    B, N, C = x.shape
    head_dim = C // num_heads
    scale = head_dim ** (-0.5)
    qkv = jnp.einsum("bnc,oc->bno", x, w_qkv) + b_qkv               # (B, N, 3C)
    qkv = qkv.reshape(B, N, 3, num_heads, head_dim).transpose(2, 0, 3, 1, 4)
    qkv = qkv.reshape(3, B * num_heads, N, head_dim)
    q, k, v = qkv[0], qkv[1], qkv[2]
    attn = jnp.einsum("hqd,hkd->hqk", q * scale, k)
    attn = jax.nn.softmax(attn, axis=-1)
    out = jnp.einsum("hqk,hkd->hqd", attn, v)
    out = out.reshape(B, num_heads, N, head_dim).transpose(0, 2, 1, 3).reshape(B, N, C)
    return jnp.einsum("bnc,oc->bno", out, w_proj) + b_proj


if __name__ == "__main__":
    B, N, C = 2, 8, 32
    num_heads = 8

    key = jax.random.PRNGKey(0)
    kx, kw1, kb1, kw2, kb2 = jax.random.split(key, 5)

    x = jax.random.normal(kx, (B, N, C), dtype=jnp.float32)
    # Deterministic synthetic parameters (PyTorch nn.Linear layouts).
    lim1 = 1.0 / math.sqrt(C)
    w_qkv = jax.random.uniform(kw1, (3 * C, C), minval=-lim1, maxval=lim1, dtype=jnp.float32)
    b_qkv = jax.random.uniform(kb1, (3 * C,), minval=-lim1, maxval=lim1, dtype=jnp.float32)
    w_proj = jax.random.uniform(kw2, (C, C), minval=-lim1, maxval=lim1, dtype=jnp.float32)
    b_proj = jax.random.uniform(kb2, (C,), minval=-lim1, maxval=lim1, dtype=jnp.float32)

    out = attention_forward(x, w_qkv, b_qkv, w_proj, b_proj, num_heads=num_heads)
    out = jax.block_until_ready(out)

    ref = attention_reference(x, w_qkv, b_qkv, w_proj, b_proj, num_heads=num_heads)
    assert out.shape == (B, N, C)
    # bf16 matmul operands + approx reciprocal -> tolerance loosened vs. the f32 reference
    # (expected numeric effect, not a bug).
    assert jnp.allclose(out, ref, atol=5e-2, rtol=5e-2), "mismatch vs. reference"

    print("KERNEL_OK")
</pallas_src>

<mosaic_0001>
module attributes {stable_mosaic.version = 11 : i64} {
  func.func @_attention_kernel(%arg0: i32, %arg1: memref<8x32xf32, #tpu.memory_space<vmem>>, %arg2: memref<32x96xbf16, #tpu.memory_space<vmem>>, %arg3: memref<1x96xf32, #tpu.memory_space<vmem>>, %arg4: memref<32x128xbf16, #tpu.memory_space<vmem>>, %arg5: memref<1x128xf32, #tpu.memory_space<vmem>>, %arg6: memref<8x128xf32, #tpu.memory_space<vmem>>, %arg7: memref<8x32xf32, #tpu.memory_space<vmem>>) attributes {dimension_semantics = [#tpu.dimension_semantics<parallel>], iteration_bounds = array<i64: 2>, scalar_prefetch = 0 : i64, scratch_operands = 1 : i64, tpu.core_type = #tpu.core_type<tc>, window_params = [{transform_indices = @transform_0, window_bounds = array<i64: 8, 32>}, {pipeline_mode = #tpu.pipeline_mode<synchronous>, transform_indices = @transform_1, window_bounds = array<i64: 32, 96>}, {pipeline_mode = #tpu.pipeline_mode<synchronous>, transform_indices = @transform_2, window_bounds = array<i64: 1, 96>}, {pipeline_mode = #tpu.pipeline_mode<synchronous>, transform_indices = @transform_3, window_bounds = array<i64: 32, 128>}, {pipeline_mode = #tpu.pipeline_mode<synchronous>, transform_indices = @transform_4, window_bounds = array<i64: 1, 128>}, {transform_indices = @transform_5, window_bounds = array<i64: 8, 128>}]} {
    %c0 = arith.constant 0 : index
    %c0_0 = arith.constant 0 : index
    %0 = vector.load %arg1[%c0, %c0_0] : memref<8x32xf32, #tpu.memory_space<vmem>>, vector<8x32xf32>
    %1 = arith.truncf %0 : vector<8x32xf32> to vector<8x32xbf16>
    %c0_1 = arith.constant 0 : index
    %c0_2 = arith.constant 0 : index
    %2 = vector.load %arg2[%c0_1, %c0_2] : memref<32x96xbf16, #tpu.memory_space<vmem>>, vector<32x96xbf16>
    %cst = arith.constant dense<0.000000e+00> : vector<8x96xf32>
    %3 = tpu.matmul %1, %2, %cst {dimension_numbers = #tpu.dot_dimension_numbers<[1], [0], [0], [1], [0, 0, 1, 1], [], []>} : vector<8x32xbf16>, vector<32x96xbf16>, vector<8x96xf32> -> vector<8x96xf32>
    %c0_3 = arith.constant 0 : index
    %c0_4 = arith.constant 0 : index
    %4 = vector.load %arg3[%c0_3, %c0_4] : memref<1x96xf32, #tpu.memory_space<vmem>>, vector<1x96xf32>
    %5 = vector.broadcast %4 : vector<1x96xf32> to vector<8x96xf32>
    %6 = arith.addf %3, %5 : vector<8x96xf32>
    %7 = vector.extract_strided_slice %6 {offsets = [0, 0], sizes = [8, 4], strides = [1, 1]} : vector<8x96xf32> to vector<8x4xf32>
    %8 = vector.extract_strided_slice %6 {offsets = [0, 32], sizes = [8, 4], strides = [1, 1]} : vector<8x96xf32> to vector<8x4xf32>
    %9 = vector.extract_strided_slice %6 {offsets = [0, 64], sizes = [8, 4], strides = [1, 1]} : vector<8x96xf32> to vector<8x4xf32>
    %10 = vector.shape_cast %7 : vector<8x4xf32> to vector<8x1x4xf32>
    %11 = vector.shape_cast %8 : vector<8x4xf32> to vector<1x8x4xf32>
    %12 = vector.broadcast %10 : vector<8x1x4xf32> to vector<8x8x4xf32>
    %13 = vector.broadcast %11 : vector<1x8x4xf32> to vector<8x8x4xf32>
    %14 = arith.mulf %12, %13 : vector<8x8x4xf32>
    %cst_5 = arith.constant dense<0.000000e+00> : vector<8x8xf32>
    %15 = vector.multi_reduction <add>, %14, %cst_5 [2] : vector<8x8x4xf32> to vector<8x8xf32>
    %cst_6 = arith.constant dense<0xFF800000> : vector<8xf32>
    %16 = vector.multi_reduction <maximumf>, %15, %cst_6 [1] : vector<8x8xf32> to vector<8xf32>
    %17 = vector.shape_cast %16 : vector<8xf32> to vector<8x1xf32>
    %18 = vector.broadcast %17 : vector<8x1xf32> to vector<8x8xf32>
    %19 = arith.subf %15, %18 : vector<8x8xf32>
    %20 = math.exp %19 : vector<8x8xf32>
    %cst_7 = arith.constant dense<0.000000e+00> : vector<8xf32>
    %21 = vector.multi_reduction <add>, %20, %cst_7 [1] : vector<8x8xf32> to vector<8xf32>
    %22 = vector.shape_cast %21 : vector<8xf32> to vector<8x1xf32>
    %23 = tpu.reciprocal %22 {approx = true} : vector<8x1xf32> -> vector<8x1xf32>
    %24 = vector.broadcast %23 : vector<8x1xf32> to vector<8x8xf32>
    %25 = arith.mulf %20, %24 : vector<8x8xf32>
    %26 = arith.truncf %25 : vector<8x8xf32> to vector<8x8xbf16>
    %27 = arith.truncf %9 : vector<8x4xf32> to vector<8x4xbf16>
    %cst_8 = arith.constant dense<0.000000e+00> : vector<8x4xf32>
    %28 = tpu.matmul %26, %27, %cst_8 {dimension_numbers = #tpu.dot_dimension_numbers<[1], [0], [0], [1], [0, 0, 1, 1], [], []>} : vector<8x8xbf16>, vector<8x4xbf16>, vector<8x4xf32> -> vector<8x4xf32>
    %c0_9 = arith.constant 0 : index
    %c0_10 = arith.constant 0 : index
    %29 = vector.load %arg7[%c0_9, %c0_10] : memref<8x32xf32, #tpu.memory_space<vmem>>, vector<8x4xf32>
    tpu.vector_store %arg7[%c0_9, %c0_10], %28 {strides = array<i32>} : memref<8x32xf32, #tpu.memory_space<vmem>>, vector<8x4xf32>,
    %30 = vector.extract_strided_slice %6 {offsets = [0, 4], sizes = [8, 4], strides = [1, 1]} : vector<8x96xf32> to vector<8x4xf32>
    %31 = vector.extract_strided_slice %6 {offsets = [0, 36], sizes = [8, 4], strides = [1, 1]} : vector<8x96xf32> to vector<8x4xf32>
    %32 = vector.extract_strided_slice %6 {offsets = [0, 68], sizes = [8, 4], strides = [1, 1]} : vector<8x96xf32> to vector<8x4xf32>
    %33 = vector.shape_cast %30 : vector<8x4xf32> to vector<8x1x4xf32>
    %34 = vector.shape_cast %31 : vector<8x4xf32> to vector<1x8x4xf32>
    %35 = vector.broadcast %33 : vector<8x1x4xf32> to vector<8x8x4xf32>
    %36 = vector.broadcast %34 : vector<1x8x4xf32> to vector<8x8x4xf32>
    %37 = arith.mulf %35, %36 : vector<8x8x4xf32>
    %cst_11 = arith.constant dense<0.000000e+00> : vector<8x8xf32>
    %38 = vector.multi_reduction <add>, %37, %cst_11 [2] : vector<8x8x4xf32> to vector<8x8xf32>
    %cst_12 = arith.constant dense<0xFF800000> : vector<8xf32>
    %39 = vector.multi_reduction <maximumf>, %38, %cst_12 [1] : vector<8x8xf32> to vector<8xf32>
    %40 = vector.shape_cast %39 : vector<8xf32> to vector<8x1xf32>
    %41 = vector.broadcast %40 : vector<8x1xf32> to vector<8x8xf32>
    %42 = arith.subf %38, %41 : vector<8x8xf32>
    %43 = math.exp %42 : vector<8x8xf32>
    %cst_13 = arith.constant dense<0.000000e+00> : vector<8xf32>
    %44 = vector.multi_reduction <add>, %43, %cst_13 [1] : vector<8x8xf32> to vector<8xf32>
    %45 = vector.shape_cast %44 : vector<8xf32> to vector<8x1xf32>
    %46 = tpu.reciprocal %45 {approx = true} : vector<8x1xf32> -> vector<8x1xf32>
    %47 = vector.broadcast %46 : vector<8x1xf32> to vector<8x8xf32>
    %48 = arith.mulf %43, %47 : vector<8x8xf32>
    %49 = arith.truncf %48 : vector<8x8xf32> to vector<8x8xbf16>
    %50 = arith.truncf %32 : vector<8x4xf32> to vector<8x4xbf16>
    %cst_14 = arith.constant dense<0.000000e+00> : vector<8x4xf32>
    %51 = tpu.matmul %49, %50, %cst_14 {dimension_numbers = #tpu.dot_dimension_numbers<[1], [0], [0], [1], [0, 0, 1, 1], [], []>} : vector<8x8xbf16>, vector<8x4xbf16>, vector<8x4xf32> -> vector<8x4xf32>
    %c0_15 = arith.constant 0 : index
    %c4 = arith.constant 4 : index
    %52 = vector.load %arg7[%c0_15, %c4] : memref<8x32xf32, #tpu.memory_space<vmem>>, vector<8x4xf32>
    tpu.vector_store %arg7[%c0_15, %c4], %51 {strides = array<i32>} : memref<8x32xf32, #tpu.memory_space<vmem>>, vector<8x4xf32>,
    %53 = vector.extract_strided_slice %6 {offsets = [0, 8], sizes = [8, 4], strides = [1, 1]} : vector<8x96xf32> to vector<8x4xf32>
    %54 = vector.extract_strided_slice %6 {offsets = [0, 40], sizes = [8, 4], strides = [1, 1]} : vector<8x96xf32> to vector<8x4xf32>
    %55 = vector.extract_strided_slice %6 {offsets = [0, 72], sizes = [8, 4], strides = [1, 1]} : vector<8x96xf32> to vector<8x4xf32>
    %56 = vector.shape_cast %53 : vector<8x4xf32> to vector<8x1x4xf32>
    %57 = vector.shape_cast %54 : vector<8x4xf32> to vector<1x8x4xf32>
    %58 = vector.broadcast %56 : vector<8x1x4xf32> to vector<8x8x4xf32>
    %59 = vector.broadcast %57 : vector<1x8x4xf32> to vector<8x8x4xf32>
    %60 = arith.mulf %58, %59 : vector<8x8x4xf32>
    %cst_16 = arith.constant dense<0.000000e+00> : vector<8x8xf32>
    %61 = vector.multi_reduction <add>, %60, %cst_16 [2] : vector<8x8x4xf32> to vector<8x8xf32>
    %cst_17 = arith.constant dense<0xFF800000> : vector<8xf32>
    %62 = vector.multi_reduction <maximumf>, %61, %cst_17 [1] : vector<8x8xf32> to vector<8xf32>
    %63 = vector.shape_cast %62 : vector<8xf32> to vector<8x1xf32>
    %64 = vector.broadcast %63 : vector<8x1xf32> to vector<8x8xf32>
    %65 = arith.subf %61, %64 : vector<8x8xf32>
    %66 = math.exp %65 : vector<8x8xf32>
    %cst_18 = arith.constant dense<0.000000e+00> : vector<8xf32>
    %67 = vector.multi_reduction <add>, %66, %cst_18 [1] : vector<8x8xf32> to vector<8xf32>
    %68 = vector.shape_cast %67 : vector<8xf32> to vector<8x1xf32>
    %69 = tpu.reciprocal %68 {approx = true} : vector<8x1xf32> -> vector<8x1xf32>
    %70 = vector.broadcast %69 : vector<8x1xf32> to vector<8x8xf32>
    %71 = arith.mulf %66, %70 : vector<8x8xf32>
    %72 = arith.truncf %71 : vector<8x8xf32> to vector<8x8xbf16>
    %73 = arith.truncf %55 : vector<8x4xf32> to vector<8x4xbf16>
    %cst_19 = arith.constant dense<0.000000e+00> : vector<8x4xf32>
    %74 = tpu.matmul %72, %73, %cst_19 {dimension_numbers = #tpu.dot_dimension_numbers<[1], [0], [0], [1], [0, 0, 1, 1], [], []>} : vector<8x8xbf16>, vector<8x4xbf16>, vector<8x4xf32> -> vector<8x4xf32>
    %c0_20 = arith.constant 0 : index
    %c8 = arith.constant 8 : index
    %75 = vector.load %arg7[%c0_20, %c8] : memref<8x32xf32, #tpu.memory_space<vmem>>, vector<8x4xf32>
    tpu.vector_store %arg7[%c0_20, %c8], %74 {strides = array<i32>} : memref<8x32xf32, #tpu.memory_space<vmem>>, vector<8x4xf32>,
    %76 = vector.extract_strided_slice %6 {offsets = [0, 12], sizes = [8, 4], strides = [1, 1]} : vector<8x96xf32> to vector<8x4xf32>
    %77 = vector.extract_strided_slice %6 {offsets = [0, 44], sizes = [8, 4], strides = [1, 1]} : vector<8x96xf32> to vector<8x4xf32>
    %78 = vector.extract_strided_slice %6 {offsets = [0, 76], sizes = [8, 4], strides = [1, 1]} : vector<8x96xf32> to vector<8x4xf32>
    %79 = vector.shape_cast %76 : vector<8x4xf32> to vector<8x1x4xf32>
    %80 = vector.shape_cast %77 : vector<8x4xf32> to vector<1x8x4xf32>
    %81 = vector.broadcast %79 : vector<8x1x4xf32> to vector<8x8x4xf32>
    %82 = vector.broadcast %80 : vector<1x8x4xf32> to vector<8x8x4xf32>
    %83 = arith.mulf %81, %82 : vector<8x8x4xf32>
    %cst_21 = arith.constant dense<0.000000e+00> : vector<8x8xf32>
    %84 = vector.multi_reduction <add>, %83, %cst_21 [2] : vector<8x8x4xf32> to vector<8x8xf32>
    %cst_22 = arith.constant dense<0xFF800000> : vector<8xf32>
    %85 = vector.multi_reduction <maximumf>, %84, %cst_22 [1] : vector<8x8xf32> to vector<8xf32>
    %86 = vector.shape_cast %85 : vector<8xf32> to vector<8x1xf32>
    %87 = vector.broadcast %86 : vector<8x1xf32> to vector<8x8xf32>
    %88 = arith.subf %84, %87 : vector<8x8xf32>
    %89 = math.exp %88 : vector<8x8xf32>
    %cst_23 = arith.constant dense<0.000000e+00> : vector<8xf32>
    %90 = vector.multi_reduction <add>, %89, %cst_23 [1] : vector<8x8xf32> to vector<8xf32>
    %91 = vector.shape_cast %90 : vector<8xf32> to vector<8x1xf32>
    %92 = tpu.reciprocal %91 {approx = true} : vector<8x1xf32> -> vector<8x1xf32>
    %93 = vector.broadcast %92 : vector<8x1xf32> to vector<8x8xf32>
    %94 = arith.mulf %89, %93 : vector<8x8xf32>
    %95 = arith.truncf %94 : vector<8x8xf32> to vector<8x8xbf16>
    %96 = arith.truncf %78 : vector<8x4xf32> to vector<8x4xbf16>
    %cst_24 = arith.constant dense<0.000000e+00> : vector<8x4xf32>
    %97 = tpu.matmul %95, %96, %cst_24 {dimension_numbers = #tpu.dot_dimension_numbers<[1], [0], [0], [1], [0, 0, 1, 1], [], []>} : vector<8x8xbf16>, vector<8x4xbf16>, vector<8x4xf32> -> vector<8x4xf32>
    %c0_25 = arith.constant 0 : index
    %c12 = arith.constant 12 : index
    %98 = vector.load %arg7[%c0_25, %c12] : memref<8x32xf32, #tpu.memory_space<vmem>>, vector<8x4xf32>
    tpu.vector_store %arg7[%c0_25, %c12], %97 {strides = array<i32>} : memref<8x32xf32, #tpu.memory_space<vmem>>, vector<8x4xf32>,
    %99 = vector.extract_strided_slice %6 {offsets = [0, 16], sizes = [8, 4], strides = [1, 1]} : vector<8x96xf32> to vector<8x4xf32>
    %100 = vector.extract_strided_slice %6 {offsets = [0, 48], sizes = [8, 4], strides = [1, 1]} : vector<8x96xf32> to vector<8x4xf32>
    %101 = vector.extract_strided_slice %6 {offsets = [0, 80], sizes = [8, 4], strides = [1, 1]} : vector<8x96xf32> to vector<8x4xf32>
    %102 = vector.shape_cast %99 : vector<8x4xf32> to vector<8x1x4xf32>
    %103 = vector.shape_cast %100 : vector<8x4xf32> to vector<1x8x4xf32>
    %104 = vector.broadcast %102 : vector<8x1x4xf32> to vector<8x8x4xf32>
    %105 = vector.broadcast %103 : vector<1x8x4xf32> to vector<8x8x4xf32>
    %106 = arith.mulf %104, %105 : vector<8x8x4xf32>
    %cst_26 = arith.constant dense<0.000000e+00> : vector<8x8xf32>
    %107 = vector.multi_reduction <add>, %106, %cst_26 [2] : vector<8x8x4xf32> to vector<8x8xf32>
    %cst_27 = arith.constant dense<0xFF800000> : vector<8xf32>
    %108 = vector.multi_reduction <maximumf>, %107, %cst_27 [1] : vector<8x8xf32> to vector<8xf32>
    %109 = vector.shape_cast %108 : vector<8xf32> to vector<8x1xf32>
    %110 = vector.broadcast %109 : vector<8x1xf32> to vector<8x8xf32>
    %111 = arith.subf %107, %110 : vector<8x8xf32>
    %112 = math.exp %111 : vector<8x8xf32>
    %cst_28 = arith.constant dense<0.000000e+00> : vector<8xf32>
    %113 = vector.multi_reduction <add>, %112, %cst_28 [1] : vector<8x8xf32> to vector<8xf32>
    %114 = vector.shape_cast %113 : vector<8xf32> to vector<8x1xf32>
    %115 = tpu.reciprocal %114 {approx = true} : vector<8x1xf32> -> vector<8x1xf32>
    %116 = vector.broadcast %115 : vector<8x1xf32> to vector<8x8xf32>
    %117 = arith.mulf %112, %116 : vector<8x8xf32>
    %118 = arith.truncf %117 : vector<8x8xf32> to vector<8x8xbf16>
    %119 = arith.truncf %101 : vector<8x4xf32> to vector<8x4xbf16>
    %cst_29 = arith.constant dense<0.000000e+00> : vector<8x4xf32>
    %120 = tpu.matmul %118, %119, %cst_29 {dimension_numbers = #tpu.dot_dimension_numbers<[1], [0], [0], [1], [0, 0, 1, 1], [], []>} : vector<8x8xbf16>, vector<8x4xbf16>, vector<8x4xf32> -> vector<8x4xf32>
    %c0_30 = arith.constant 0 : index
    %c16 = arith.constant 16 : index
    %121 = vector.load %arg7[%c0_30, %c16] : memref<8x32xf32, #tpu.memory_space<vmem>>, vector<8x4xf32>
    tpu.vector_store %arg7[%c0_30, %c16], %120 {strides = array<i32>} : memref<8x32xf32, #tpu.memory_space<vmem>>, vector<8x4xf32>,
    %122 = vector.extract_strided_slice %6 {offsets = [0, 20], sizes = [8, 4], strides = [1, 1]} : vector<8x96xf32> to vector<8x4xf32>
    %123 = vector.extract_strided_slice %6 {offsets = [0, 52], sizes = [8, 4], strides = [1, 1]} : vector<8x96xf32> to vector<8x4xf32>
    %124 = vector.extract_strided_slice %6 {offsets = [0, 84], sizes = [8, 4], strides = [1, 1]} : vector<8x96xf32> to vector<8x4xf32>
    %125 = vector.shape_cast %122 : vector<8x4xf32> to vector<8x1x4xf32>
    %126 = vector.shape_cast %123 : vector<8x4xf32> to vector<1x8x4xf32>
    %127 = vector.broadcast %125 : vector<8x1x4xf32> to vector<8x8x4xf32>
    %128 = vector.broadcast %126 : vector<1x8x4xf32> to vector<8x8x4xf32>
    %129 = arith.mulf %127, %128 : vector<8x8x4xf32>
    %cst_31 = arith.constant dense<0.000000e+00> : vector<8x8xf32>
    %130 = vector.multi_reduction <add>, %129, %cst_31 [2] : vector<8x8x4xf32> to vector<8x8xf32>
    %cst_32 = arith.constant dense<0xFF800000> : vector<8xf32>
    %131 = vector.multi_reduction <maximumf>, %130, %cst_32 [1] : vector<8x8xf32> to vector<8xf32>
    %132 = vector.shape_cast %131 : vector<8xf32> to vector<8x1xf32>
    %133 = vector.broadcast %132 : vector<8x1xf32> to vector<8x8xf32>
    %134 = arith.subf %130, %133 : vector<8x8xf32>
    %135 = math.exp %134 : vector<8x8xf32>
    %cst_33 = arith.constant dense<0.000000e+00> : vector<8xf32>
    %136 = vector.multi_reduction <add>, %135, %cst_33 [1] : vector<8x8xf32> to vector<8xf32>
    %137 = vector.shape_cast %136 : vector<8xf32> to vector<8x1xf32>
    %138 = tpu.reciprocal %137 {approx = true} : vector<8x1xf32> -> vector<8x1xf32>
    %139 = vector.broadcast %138 : vector<8x1xf32> to vector<8x8xf32>
    %140 = arith.mulf %135, %139 : vector<8x8xf32>
    %141 = arith.truncf %140 : vector<8x8xf32> to vector<8x8xbf16>
    %142 = arith.truncf %124 : vector<8x4xf32> to vector<8x4xbf16>
    %cst_34 = arith.constant dense<0.000000e+00> : vector<8x4xf32>
    %143 = tpu.matmul %141, %142, %cst_34 {dimension_numbers = #tpu.dot_dimension_numbers<[1], [0], [0], [1], [0, 0, 1, 1], [], []>} : vector<8x8xbf16>, vector<8x4xbf16>, vector<8x4xf32> -> vector<8x4xf32>
    %c0_35 = arith.constant 0 : index
    %c20 = arith.constant 20 : index
    %144 = vector.load %arg7[%c0_35, %c20] : memref<8x32xf32, #tpu.memory_space<vmem>>, vector<8x4xf32>
    tpu.vector_store %arg7[%c0_35, %c20], %143 {strides = array<i32>} : memref<8x32xf32, #tpu.memory_space<vmem>>, vector<8x4xf32>,
    %145 = vector.extract_strided_slice %6 {offsets = [0, 24], sizes = [8, 4], strides = [1, 1]} : vector<8x96xf32> to vector<8x4xf32>
    %146 = vector.extract_strided_slice %6 {offsets = [0, 56], sizes = [8, 4], strides = [1, 1]} : vector<8x96xf32> to vector<8x4xf32>
    %147 = vector.extract_strided_slice %6 {offsets = [0, 88], sizes = [8, 4], strides = [1, 1]} : vector<8x96xf32> to vector<8x4xf32>
    %148 = vector.shape_cast %145 : vector<8x4xf32> to vector<8x1x4xf32>
    %149 = vector.shape_cast %146 : vector<8x4xf32> to vector<1x8x4xf32>
    %150 = vector.broadcast %148 : vector<8x1x4xf32> to vector<8x8x4xf32>
    %151 = vector.broadcast %149 : vector<1x8x4xf32> to vector<8x8x4xf32>
    %152 = arith.mulf %150, %151 : vector<8x8x4xf32>
    %cst_36 = arith.constant dense<0.000000e+00> : vector<8x8xf32>
    %153 = vector.multi_reduction <add>, %152, %cst_36 [2] : vector<8x8x4xf32> to vector<8x8xf32>
    %cst_37 = arith.constant dense<0xFF800000> : vector<8xf32>
    %154 = vector.multi_reduction <maximumf>, %153, %cst_37 [1] : vector<8x8xf32> to vector<8xf32>
    %155 = vector.shape_cast %154 : vector<8xf32> to vector<8x1xf32>
    %156 = vector.broadcast %155 : vector<8x1xf32> to vector<8x8xf32>
    %157 = arith.subf %153, %156 : vector<8x8xf32>
    %158 = math.exp %157 : vector<8x8xf32>
    %cst_38 = arith.constant dense<0.000000e+00> : vector<8xf32>
    %159 = vector.multi_reduction <add>, %158, %cst_38 [1] : vector<8x8xf32> to vector<8xf32>
    %160 = vector.shape_cast %159 : vector<8xf32> to vector<8x1xf32>
    %161 = tpu.reciprocal %160 {approx = true} : vector<8x1xf32> -> vector<8x1xf32>
    %162 = vector.broadcast %161 : vector<8x1xf32> to vector<8x8xf32>
    %163 = arith.mulf %158, %162 : vector<8x8xf32>
    %164 = arith.truncf %163 : vector<8x8xf32> to vector<8x8xbf16>
    %165 = arith.truncf %147 : vector<8x4xf32> to vector<8x4xbf16>
    %cst_39 = arith.constant dense<0.000000e+00> : vector<8x4xf32>
    %166 = tpu.matmul %164, %165, %cst_39 {dimension_numbers = #tpu.dot_dimension_numbers<[1], [0], [0], [1], [0, 0, 1, 1], [], []>} : vector<8x8xbf16>, vector<8x4xbf16>, vector<8x4xf32> -> vector<8x4xf32>
    %c0_40 = arith.constant 0 : index
    %c24 = arith.constant 24 : index
    %167 = vector.load %arg7[%c0_40, %c24] : memref<8x32xf32, #tpu.memory_space<vmem>>, vector<8x4xf32>
    tpu.vector_store %arg7[%c0_40, %c24], %166 {strides = array<i32>} : memref<8x32xf32, #tpu.memory_space<vmem>>, vector<8x4xf32>,
    %168 = vector.extract_strided_slice %6 {offsets = [0, 28], sizes = [8, 4], strides = [1, 1]} : vector<8x96xf32> to vector<8x4xf32>
    %169 = vector.extract_strided_slice %6 {offsets = [0, 60], sizes = [8, 4], strides = [1, 1]} : vector<8x96xf32> to vector<8x4xf32>
    %170 = vector.extract_strided_slice %6 {offsets = [0, 92], sizes = [8, 4], strides = [1, 1]} : vector<8x96xf32> to vector<8x4xf32>
    %171 = vector.shape_cast %168 : vector<8x4xf32> to vector<8x1x4xf32>
    %172 = vector.shape_cast %169 : vector<8x4xf32> to vector<1x8x4xf32>
    %173 = vector.broadcast %171 : vector<8x1x4xf32> to vector<8x8x4xf32>
    %174 = vector.broadcast %172 : vector<1x8x4xf32> to vector<8x8x4xf32>
    %175 = arith.mulf %173, %174 : vector<8x8x4xf32>
    %cst_41 = arith.constant dense<0.000000e+00> : vector<8x8xf32>
    %176 = vector.multi_reduction <add>, %175, %cst_41 [2] : vector<8x8x4xf32> to vector<8x8xf32>
    %cst_42 = arith.constant dense<0xFF800000> : vector<8xf32>
    %177 = vector.multi_reduction <maximumf>, %176, %cst_42 [1] : vector<8x8xf32> to vector<8xf32>
    %178 = vector.shape_cast %177 : vector<8xf32> to vector<8x1xf32>
    %179 = vector.broadcast %178 : vector<8x1xf32> to vector<8x8xf32>
    %180 = arith.subf %176, %179 : vector<8x8xf32>
    %181 = math.exp %180 : vector<8x8xf32>
    %cst_43 = arith.constant dense<0.000000e+00> : vector<8xf32>
    %182 = vector.multi_reduction <add>, %181, %cst_43 [1] : vector<8x8xf32> to vector<8xf32>
    %183 = vector.shape_cast %182 : vector<8xf32> to vector<8x1xf32>
    %184 = tpu.reciprocal %183 {approx = true} : vector<8x1xf32> -> vector<8x1xf32>
    %185 = vector.broadcast %184 : vector<8x1xf32> to vector<8x8xf32>
    %186 = arith.mulf %181, %185 : vector<8x8xf32>
    %187 = arith.truncf %186 : vector<8x8xf32> to vector<8x8xbf16>
    %188 = arith.truncf %170 : vector<8x4xf32> to vector<8x4xbf16>
    %cst_44 = arith.constant dense<0.000000e+00> : vector<8x4xf32>
    %189 = tpu.matmul %187, %188, %cst_44 {dimension_numbers = #tpu.dot_dimension_numbers<[1], [0], [0], [1], [0, 0, 1, 1], [], []>} : vector<8x8xbf16>, vector<8x4xbf16>, vector<8x4xf32> -> vector<8x4xf32>
    %c0_45 = arith.constant 0 : index
    %c28 = arith.constant 28 : index
    %190 = vector.load %arg7[%c0_45, %c28] : memref<8x32xf32, #tpu.memory_space<vmem>>, vector<8x4xf32>
    tpu.vector_store %arg7[%c0_45, %c28], %189 {strides = array<i32>} : memref<8x32xf32, #tpu.memory_space<vmem>>, vector<8x4xf32>,
    %c0_46 = arith.constant 0 : index
    %c0_47 = arith.constant 0 : index
    %191 = vector.load %arg7[%c0_46, %c0_47] : memref<8x32xf32, #tpu.memory_space<vmem>>, vector<8x32xf32>
    %192 = arith.truncf %191 : vector<8x32xf32> to vector<8x32xbf16>
    %c0_48 = arith.constant 0 : index
    %c0_49 = arith.constant 0 : index
    %193 = vector.load %arg4[%c0_48, %c0_49] : memref<32x128xbf16, #tpu.memory_space<vmem>>, vector<32x128xbf16>
    %cst_50 = arith.constant dense<0.000000e+00> : vector<8x128xf32>
    %194 = tpu.matmul %192, %193, %cst_50 {dimension_numbers = #tpu.dot_dimension_numbers<[1], [0], [0], [1], [0, 0, 1, 1], [], []>} : vector<8x32xbf16>, vector<32x128xbf16>, vector<8x128xf32> -> vector<8x128xf32>
    %c0_51 = arith.constant 0 : index
    %c0_52 = arith.constant 0 : index
    %195 = vector.load %arg5[%c0_51, %c0_52] : memref<1x128xf32, #tpu.memory_space<vmem>>, vector<1x128xf32>
    %196 = vector.broadcast %195 : vector<1x128xf32> to vector<8x128xf32>
    %197 = arith.addf %194, %196 : vector<8x128xf32>
    %c0_53 = arith.constant 0 : index
    %c0_54 = arith.constant 0 : index
    %198 = vector.load %arg6[%c0_53, %c0_54] : memref<8x128xf32, #tpu.memory_space<vmem>>, vector<8x128xf32>
    tpu.vector_store %arg6[%c0_53, %c0_54], %197 {strides = array<i32>} : memref<8x128xf32, #tpu.memory_space<vmem>>, vector<8x128xf32>,
    return
  }
  func.func @transform_0(%arg0: i32) -> (i32, i32) {
    %c0_i32 = arith.constant 0 : i32
    %c0_i32_0 = arith.constant 0 : i32
    return %arg0, %c0_i32 : i32, i32
  }
  func.func @transform_1(%arg0: i32) -> (i32, i32) {
    %c0_i32 = arith.constant 0 : i32
    %c0_i32_0 = arith.constant 0 : i32
    %c0_i32_1 = arith.constant 0 : i32
    return %c0_i32, %c0_i32_0 : i32, i32
  }
  func.func @transform_2(%arg0: i32) -> (i32, i32) {
    %c0_i32 = arith.constant 0 : i32
    %c0_i32_0 = arith.constant 0 : i32
    %c0_i32_1 = arith.constant 0 : i32
    return %c0_i32, %c0_i32_0 : i32, i32
  }
  func.func @transform_3(%arg0: i32) -> (i32, i32) {
    %c0_i32 = arith.constant 0 : i32
    %c0_i32_0 = arith.constant 0 : i32
    %c0_i32_1 = arith.constant 0 : i32
    return %c0_i32, %c0_i32_0 : i32, i32
  }
  func.func @transform_4(%arg0: i32) -> (i32, i32) {
    %c0_i32 = arith.constant 0 : i32
    %c0_i32_0 = arith.constant 0 : i32
    %c0_i32_1 = arith.constant 0 : i32
    return %c0_i32, %c0_i32_0 : i32, i32
  }
  func.func @transform_5(%arg0: i32) -> (i32, i32) {
    %c0_i32 = arith.constant 0 : i32
    %c0_i32_0 = arith.constant 0 : i32
    return %arg0, %c0_i32 : i32, i32
  }
}

</mosaic_0001>

<llo_original>
// kernel: _attention_forward_impl.1
$region0: #{_attention_forward_impl.1}
  #allocation0 [shape = 'u32[]', space=smem, size = 0x4, offset = 0x4, fixed_abs, tag = 'smem constant byte address 0x4 - core index']
  #allocation1 [shape = 'u32[144,128]{1,0:T(1,128)}', space=vmem, size = 0x12000, scoped, tag = 'internal scratch']
  #allocation2 [shape = 'f32[8,32]{1,0:T(8,128)}', space=vmem, size = 0x1000, scoped, tag = 'scratch operand']
  %s0 = inlined_call_operand.vmem [shape: f32[16,32], index: 0, kind: input, shape index: {}]
  %s1 = inlined_call_operand.vmem [shape: bf16[32,96], index: 1, kind: input, shape index: {}]
  %s2 = inlined_call_operand.vmem [shape: f32[1,96], index: 2, kind: input, shape index: {}]
  %s3 = inlined_call_operand.vmem [shape: bf16[32,128], index: 3, kind: input, shape index: {}]
  %s4 = inlined_call_operand.vmem [shape: f32[1,128], index: 4, kind: input, shape index: {}]
  %s5 = inlined_call_operand.vmem [shape: f32[16,128], index: 5, kind: output, shape index: {}]
  %s6 = sld [smem:[#allocation0]]
  $region53: #{_attention_forward_impl.1} parent=0
    _
  %s8 = ssub.s32 1, %s6
  %s9 = scalar_select 0, %s8, %s6
  loop: start=0, step=1, limit=4
  $region2: #{_attention_forward_impl.1} parent=0 // loop_pre_header
    _
  $region3: #{_attention_forward_impl.1} parent=0 // loop_header
    %s11 = sphi 0, %s15
    %p12 = scmp.ge.s32.totalorder %s11, 4
    %s21 = sphi 0, %s23
    %s24 = sphi 0, %s21
    %s25 = sphi 0, %s24
    %s41 = sphi 0, %s25
    %s45 = sphi 0, %s45
    %s47 = sphi 0, %s45
    %s48 = sphi 0, %s47
    %s62 = sphi 0, %s48
    %s66 = sphi 0, %s66
    %s68 = sphi 0, %s66
    %s69 = sphi 0, %s68
    %s83 = sphi 0, %s69
    %s87 = sphi 0, %s87
    %s89 = sphi 0, %s87
    %s90 = sphi 0, %s89
    %s104 = sphi 0, %s90
    %s108 = sphi 0, %s108
    %s110 = sphi 0, %s108
    %s111 = sphi 0, %s110
    %s125 = sphi 0, %s111
    %s131 = sphi 0, %s133
    %s134 = sphi 0, %s131
    %s135 = sphi 0, %s134
    %s151 = sphi 0, %s135
  $region4: #{_attention_forward_impl.1} parent=0 // loop_header_branch
    %14 = sbr.rel (%p12) target = $region8
  $region5: #{_attention_forward_impl.1} parent=0 // loop_body
    %s16 = ssub.s32 %s11, 1
    %s17 = ssub.s32 %s11, 2
    %s18 = sadd.s32 %s11, 1
    %s19 = ssub.s32 %s11, %s18
    %p20 = scmp.eq.s32.totalorder %s19, 0
    %s22 = sadd.s32 %s21, 1
    %s23 = scalar_select %p20, %s21, %s22
    %p26 = pneg %p20
    %p27 = scmp.eq.s32.totalorder %s11, 1
    %p28 = por %p26, %p27
    %p29 = scmp.ne.s32.totalorder %s21, %s24
    %p30 = scmp.eq.s32.totalorder %s11, 0
    %p31 = por %p29, %p30
    %p32 = scmp.ne.s32.totalorder %s21, %s24
    %p33 = scmp.eq.s32.totalorder %s16, 1
    %p34 = por %p32, %p33
    %p35 = scmp.ne.s32.totalorder %s24, %s25
    %p36 = scmp.eq.s32.totalorder %s16, 0
    %p37 = por %p35, %p36
    %p38 = scmp.ne.s32.totalorder %s24, %s25
    %p39 = scmp.eq.s32.totalorder %s17, 1
    %p40 = por %p38, %p39
    %p42 = scmp.ne.s32.totalorder %s25, %s41
    %p43 = scmp.eq.s32.totalorder %s17, 0
    %p44 = por %p42, %p43
    %s46 = sadd.s32 %s45, 1
    %p49 = scmp.eq.s32.totalorder %s11, 1
    %p50 = scmp.ne.s32.totalorder %s45, %s47
    %p51 = scmp.eq.s32.totalorder %s11, 0
    %p52 = por %p50, %p51
    %p53 = scmp.ne.s32.totalorder %s45, %s47
    %p54 = scmp.eq.s32.totalorder %s16, 1
    %p55 = por %p53, %p54
    %p56 = scmp.ne.s32.totalorder %s47, %s48
    %p57 = scmp.eq.s32.totalorder %s16, 0
    %p58 = por %p56, %p57
    %p59 = scmp.ne.s32.totalorder %s47, %s48
    %p60 = scmp.eq.s32.totalorder %s17, 1
    %p61 = por %p59, %p60
    %p63 = scmp.ne.s32.totalorder %s48, %s62
    %p64 = scmp.eq.s32.totalorder %s17, 0
    %p65 = por %p63, %p64
    %s67 = sadd.s32 %s66, 1
    %p70 = scmp.eq.s32.totalorder %s11, 1
    %p71 = scmp.ne.s32.totalorder %s66, %s68
    %p72 = scmp.eq.s32.totalorder %s11, 0
    %p73 = por %p71, %p72
    %p74 = scmp.ne.s32.totalorder %s66, %s68
    %p75 = scmp.eq.s32.totalorder %s16, 1
    %p76 = por %p74, %p75
    %p77 = scmp.ne.s32.totalorder %s68, %s69
    %p78 = scmp.eq.s32.totalorder %s16, 0
    %p79 = por %p77, %p78
    %p80 = scmp.ne.s32.totalorder %s68, %s69
    %p81 = scmp.eq.s32.totalorder %s17, 1
    %p82 = por %p80, %p81
    %p84 = scmp.ne.s32.totalorder %s69, %s83
    %p85 = scmp.eq.s32.totalorder %s17, 0
    %p86 = por %p84, %p85
    %s88 = sadd.s32 %s87, 1
    %p91 = scmp.eq.s32.totalorder %s11, 1
    %p92 = scmp.ne.s32.totalorder %s87, %s89
    %p93 = scmp.eq.s32.totalorder %s11, 0
    %p94 = por %p92, %p93
    %p95 = scmp.ne.s32.totalorder %s87, %s89
    %p96 = scmp.eq.s32.totalorder %s16, 1
    %p97 = por %p95, %p96
    %p98 = scmp.ne.s32.totalorder %s89, %s90
    %p99 = scmp.eq.s32.totalorder %s16, 0
    %p100 = por %p98, %p99
    %p101 = scmp.ne.s32.totalorder %s89, %s90
    %p102 = scmp.eq.s32.totalorder %s17, 1
    %p103 = por %p101, %p102
    %p105 = scmp.ne.s32.totalorder %s90, %s104
    %p106 = scmp.eq.s32.totalorder %s17, 0
    %p107 = por %p105, %p106
    %s109 = sadd.s32 %s108, 1
    %p112 = scmp.eq.s32.totalorder %s11, 1
    %p113 = scmp.ne.s32.totalorder %s108, %s110
    %p114 = scmp.eq.s32.totalorder %s11, 0
    %p115 = por %p113, %p114
    %p116 = scmp.ne.s32.totalorder %s108, %s110
    %p117 = scmp.eq.s32.totalorder %s16, 1
    %p118 = por %p116, %p117
    %p119 = scmp.ne.s32.totalorder %s110, %s111
    %p120 = scmp.eq.s32.totalorder %s16, 0
    %p121 = por %p119, %p120
    %p122 = scmp.ne.s32.totalorder %s110, %s111
    %p123 = scmp.eq.s32.totalorder %s17, 1
    %p124 = por %p122, %p123
    %p126 = scmp.ne.s32.totalorder %s111, %s125
    %p127 = scmp.eq.s32.totalorder %s17, 0
    %p128 = por %p126, %p127
    %s129 = ssub.s32 %s11, %s18
    %p130 = scmp.eq.s32.totalorder %s129, 0
    %s132 = sadd.s32 %s131, 1
    %s133 = scalar_select %p130, %s131, %s132
    %p136 = pneg %p130
    %p137 = scmp.eq.s32.totalorder %s11, 1
    %p138 = por %p136, %p137
    %p139 = scmp.ne.s32.totalorder %s131, %s134
    %p140 = scmp.eq.s32.totalorder %s11, 0
    %p141 = por %p139, %p140
    %p142 = scmp.ne.s32.totalorder %s131, %s134
    %p143 = scmp.eq.s32.totalorder %s16, 1
    %p144 = por %p142, %p143
    %p145 = scmp.ne.s32.totalorder %s134, %s135
    %p146 = scmp.eq.s32.totalorder %s16, 0
    %p147 = por %p145, %p146
    %p148 = scmp.ne.s32.totalorder %s134, %s135
    %p149 = scmp.eq.s32.totalorder %s17, 1
    %p150 = por %p148, %p149
    %p152 = scmp.ne.s32.totalorder %s135, %s151
    %p153 = scmp.eq.s32.totalorder %s17, 0
    %p154 = por %p152, %p153
    %p155 = scmp.le.s32.totalorder 1, %s11
    %p156 = scmp.lt.s32.totalorder %s11, 3
    %p157 = pnand %p155, %p156
    %p158 = pneg %p157
    // Predicated region
    $region9: #{_attention_forward_impl.1} parent=5 // pred_check
      _
    $region10: #{_attention_forward_impl.1} parent=5 // pred_check_branch
      %160 = sbr.rel (%p157) target = $region12
    $region11: #{_attention_forward_impl.1} parent=5 // pred_region
      %s161 = ssub.s32 %s11, 1
      // Predicated region
      $region13: #{_attention_forward_impl.1} parent=11 // pred_check
        %p162 = pneg %p58
      $region14: #{_attention_forward_impl.1} parent=11 // pred_check_branch
        %164 = sbr.rel (%p162) target = $region16
      $region15: #{_attention_forward_impl.1} parent=11 // pred_region
        _
      $region16: #{_attention_forward_impl.1} parent=11 // pred_fallthru
        _
      // Predicated region
      $region17: #{_attention_forward_impl.1} parent=11 // pred_check
        %p165 = pneg %p79
      $region18: #{_attention_forward_impl.1} parent=11 // pred_check_branch
        %167 = sbr.rel (%p165) target = $region20
      $region19: #{_attention_forward_impl.1} parent=11 // pred_region
        _
      $region20: #{_attention_forward_impl.1} parent=11 // pred_fallthru
        _
      // Predicated region
      $region21: #{_attention_forward_impl.1} parent=11 // pred_check
        %p168 = pneg %p100
      $region22: #{_attention_forward_impl.1} parent=11 // pred_check_branch
        %170 = sbr.rel (%p168) target = $region24
      $region23: #{_attention_forward_impl.1} parent=11 // pred_region
        _
      $region24: #{_attention_forward_impl.1} parent=11 // pred_fallthru
        _
      // Predicated region
      $region25: #{_attention_forward_impl.1} parent=11 // pred_check
        %p171 = pneg %p121
      $region26: #{_attention_forward_impl.1} parent=11 // pred_check_branch
        %173 = sbr.rel (%p171) target = $region28
      $region27: #{_attention_forward_impl.1} parent=11 // pred_region
        _
      $region28: #{_attention_forward_impl.1} parent=11 // pred_fallthru
        _
    $region12: #{_attention_forward_impl.1} parent=5 // pred_fallthru
      _
    %p174 = scmp.lt.s32.totalorder %s11, 2
    // Predicated region
    $region29: #{_attention_forward_impl.1} parent=5 // pred_check
      %p175 = pneg %p174
    $region30: #{_attention_forward_impl.1} parent=5 // pred_check_branch
      %177 = sbr.rel (%p175) target = $region32
    $region31: #{_attention_forward_impl.1} parent=5 // pred_region
      // Predicated region
      $region33: #{_attention_forward_impl.1} parent=31 // pred_check
        %p178 = pneg %p31
      $region34: #{_attention_forward_impl.1} parent=31 // pred_check_branch
        %180 = sbr.rel (%p178) target = $region36
      $region35: #{_attention_forward_impl.1} parent=31 // pred_region
        %p181 = scmp.lt.s32.totalorder %s11, 1
        %s182 = scalar_select %p181, %s11, 1
        %s183 = smul.addr %s182, 8
        %s184 = scalar_lea.vmem %s0, %s183
      $region36: #{_attention_forward_impl.1} parent=31 // pred_fallthru
        _
    $region32: #{_attention_forward_impl.1} parent=5 // pred_fallthru
      _
    %p185 = scmp.le.s32.totalorder 1, %s11
    %p186 = scmp.lt.s32.totalorder %s11, 3
    %p187 = pnand %p185, %p186
    %p188 = pneg %p187
    // Predicated region
    $region37: #{_attention_forward_impl.1} parent=5 // pred_check
      _
    $region38: #{_attention_forward_impl.1} parent=5 // pred_check_branch
      %190 = sbr.rel (%p187) target = $region40
    $region39: #{_attention_forward_impl.1} parent=5 // pred_region
      %s191 = ssub.s32 %s11, 1
      %p192 = scmp.lt.s32.totalorder %s16, 1
      %s193 = scalar_select %p192, %s16, 1
      %s194 = smul.addr %s193, 8
      %s195 = scalar_lea.vmem %s0, %s194
      %p196 = pneg %p37
      %p197 = pneg %p34
      %p198 = pneg %p58
      %p199 = pneg %p55
      %p200 = pneg %p79
      %p201 = pneg %p76
      %p202 = pneg %p100
      %p203 = pneg %p97
      %p204 = pneg %p121
      %p205 = pneg %p118
      %p206 = pneg %p147
      %p207 = pneg %p144
      %p208 = scmp.lt.s32.totalorder %s16, 1
      %s209 = scalar_select %p208, %s16, 1
      %s210 = smul.addr %s209, 8
      %s211 = scalar_lea.vmem %s5, %s210
      %p212 = scmp.lt.s32.totalorder %s16, 1
      %s213 = scalar_select %p212, %s16, 1
      %s214 = smul.addr %s213, 8
      %s215 = scalar_lea.vmem %s0, %s214
      %p216 = scmp.lt.s32.totalorder %s16, 1
      %s217 = scalar_select %p216, %s16, 1
      %s218 = smul.addr %s217, 8
      %s219 = scalar_lea.vmem %s5, %s218
      %v221 = vld [vmem:[%s215] sm:$0xff]
      %v222 = vpack.c.bf16 %v221, %v221
      %v223 = vld [vmem:[%s1] sm:$0xf]
      %v224 = vld [vmem:[%s1 + $0x4] sm:$0xf]
      %v225 = vld [vmem:[%s1 + $0x8] sm:$0xf]
      %v226 = vld [vmem:[%s1 + $0xc] sm:$0xf]
      %v227 = vld [vmem:[%s2] sm:$0x1]
      %v229 = vlaneseq
      %v230 = vshrl.u32 %v229, 7
      %v231 = vsub.s32 0, %v230
      %v232 = vrot.slane %v227, %v231
      %v238 = vunpack.c.l.b16 %v223
      %v239 = vunpack.c.l.b16 %v224
      %v240 = vunpack.c.l.b16 %v225
      %v241 = vunpack.c.l.b16 %v226
      %v242 = vpack.c.b16 %v239, %v238
      %v243 = vpack.c.b16 %v241, %v240
      %vm246 = vcmask 261120
      %v248 = vsel %vm246, %v222, 0
      %250 = vmatprep.subr.bf16.mxu0 0
      %251 = vmatpush1.bf16.msra.mxu0 0
      %252 = vmatprep.subr.bf16.mxu0 0
      %253 = vmatpush1.bf16.msra.mxu0 0
      %254 = vmatprep.subr.bf16.mxu0 0
      %255 = vmatpush1.bf16.msra.mxu0 0
      %256 = vmatprep.subr.bf16.mxu0 0
      %257 = vmatpush1.bf16.msra.mxu0 0
      %258 = vmatprep.subr.bf16.mxu0 0
      %259 = vmatpush1.bf16.msra.mxu0 0
      %260 = vmatprep.subr.bf16.mxu0 0
      %261 = vmatpush1.bf16.msra.mxu0 0
      %262 = vmatprep.subr.bf16.mxu0 0
      %263 = vmatpush1.bf16.msra.mxu0 %v243
      %264 = vmatprep.subr.bf16.mxu0 0
      %265 = vmatpush1.bf16.msra.mxu0 %v242
      %266 = vmatprep.subr.bf16.mxu0 0
      %267 = vmatpush2.bf16.msra.mxu0 0
      %268 = vmatprep.subr.bf16.mxu0 0
      %269 = vmatpush2.bf16.msra.mxu0 0
      %270 = vmatprep.subr.bf16.mxu0 0
      %271 = vmatpush2.bf16.msra.mxu0 0
      %272 = vmatprep.subr.bf16.mxu0 0
      %273 = vmatpush2.bf16.msra.mxu0 0
      %274 = vmatprep.subr.bf16.mxu0 0
      %275 = vmatpush2.bf16.msra.mxu0 0
      %276 = vmatprep.subr.bf16.mxu0 0
      %277 = vmatpush2.bf16.msra.mxu0 0
      %278 = vmatprep.subr.bf16.mxu0 0
      %279 = vmatpush2.bf16.msra.mxu0 0
      %280 = vmatprep.subr.bf16.mxu0 0
      %281 = vmatpush2.bf16.msra.mxu0 0
      %282 = vmatprep.mubr.bf16.mxu0 0
      %283 = vmatmul.mubr.bf16.gmra.mxu0 %v248
      %v284 = vpop.f32.mrf.mxu0
      %v285 = vadd.f32 %v232, %v284
      %v286 = vpop.f32.mrf.mxu0
      %v287 = vpop.f32.mrf.mxu0
      %v288 = vpop.f32.mrf.mxu0
      %289 = vdwg.mxu0
      %v291 = vcombine.high %v285, %v285
      %v293 = vunpack.c.l.s4 1966171168
      %v294 = vunpack.c.0.s8 %v293
      %v295 = vlaneseq
      %v296 = vshrl.u32 %v295, 7
      %v297 = vsub.s32 %v294, %v296
      %v298 = vrot.slane %v285, %v297
      %v300 = vunpack.c.l.s4 1966171168
      %v301 = vunpack.c.0.s8 %v300
      %v302 = vlaneseq
      %v303 = vshrl.u32 %v302, 7
      %v304 = vsub.s32 %v301, %v303
      %v305 = vrot.slane %v291, %v304
      %v306 = vcombine.high %v298, %v298
      %v307 = vcombine.high %v305, %v305
      %v309 = vunpack.c.l.s4 1966171168
      %v310 = vunpack.c.0.s8 %v309
      %v311 = vlaneseq
      %v312 = vshrl.u32 %v311, 7
      %v313 = vsub.s32 %v310, %v312
      %v314 = vrot.slane %v298, %v313
      %v316 = vunpack.c.l.s4 1966171168
      %v317 = vunpack.c.0.s8 %v316
      %v318 = vlaneseq
      %v319 = vshrl.u32 %v318, 7
      %v320 = vsub.s32 %v317, %v319
      %v321 = vrot.slane %v305, %v320
      %v323 = vunpack.c.l.s4 1966171168
      %v324 = vunpack.c.0.s8 %v323
      %v325 = vlaneseq
      %v326 = vshrl.u32 %v325, 7
      %v327 = vsub.s32 %v324, %v326
      %v328 = vrot.slane %v306, %v327
      %v330 = vunpack.c.l.s4 1966171168
      %v331 = vunpack.c.0.s8 %v330
      %v332 = vlaneseq
      %v333 = vshrl.u32 %v332, 7
      %v334 = vsub.s32 %v331, %v333
      %v335 = vrot.slane %v307, %v334
      %v336 = vcombine.high %v314, %v314
      %v337 = vcombine.high %v321, %v321
      %v338 = vcombine.high %v328, %v328
      %v339 = vcombine.high %v335, %v335
      %v340 = vlaneseq
      %v341 = vshrl.u32 %v340, 7
      %v342 = vsub.s32 0, %v341
      %v343 = vrot.slane %v314, %v342
      %v344 = vlaneseq
      %v345 = vshrl.u32 %v344, 7
      %v346 = vsub.s32 0, %v345
      %v347 = vrot.slane %v328, %v346
      %v348 = vlaneseq
      %v349 = vshrl.u32 %v348, 7
      %v350 = vsub.s32 0, %v349
      %v351 = vrot.slane %v336, %v350
      %v352 = vlaneseq
      %v353 = vshrl.u32 %v352, 7
      %v354 = vsub.s32 0, %v353
      %v355 = vrot.slane %v338, %v354
      %v356 = vlaneseq
      %v357 = vshrl.u32 %v356, 7
      %v358 = vsub.s32 0, %v357
      %v359 = vrot.slane %v321, %v358
      %v360 = vlaneseq
      %v361 = vshrl.u32 %v360, 7
      %v362 = vsub.s32 0, %v361
      %v363 = vrot.slane %v335, %v362
      %v364 = vlaneseq
      %v365 = vshrl.u32 %v364, 7
      %v366 = vsub.s32 0, %v365
      %v367 = vrot.slane %v337, %v366
      %v368 = vlaneseq
      %v369 = vshrl.u32 %v368, 7
      %v370 = vsub.s32 0, %v369
      %v371 = vrot.slane %v339, %v370
      %380 = vrot.lane.b32.xlu0 %v285, 96
      %v381 = vpop.permute.xlu0 %380
      %v383 = vmul.f32 %v343, %v381
      %v384 = vmul.f32 %v347, %v381
      %v385 = vmul.f32 %v351, %v381
      %v386 = vmul.f32 %v355, %v381
      %v387 = vmul.f32 %v359, %v381
      %v388 = vmul.f32 %v363, %v381
      %v389 = vmul.f32 %v367, %v381
      %v390 = vmul.f32 %v371, %v381
      %vm391 = vcmask 31744
      %v392 = vsel %vm391, %v383, 0.0
      %393 = vadd.xlane.f32.xlu0 %v392
      %v394 = vpop.xlane.xlu0 %393
      %v395 = vsel %vm391, %v384, 0.0
      %396 = vadd.xlane.f32.xlu0 %v395
      %v397 = vpop.xlane.xlu0 %396
      %v398 = vsel %vm391, %v385, 0.0
      %399 = vadd.xlane.f32.xlu0 %v398
      %v400 = vpop.xlane.xlu0 %399
      %v401 = vsel %vm391, %v386, 0.0
      %402 = vadd.xlane.f32.xlu0 %v401
      %v403 = vpop.xlane.xlu0 %402
      %v404 = vsel %vm391, %v387, 0.0
      %405 = vadd.xlane.f32.xlu0 %v404
      %v406 = vpop.xlane.xlu0 %405
      %v407 = vsel %vm391, %v388, 0.0
      %408 = vadd.xlane.f32.xlu0 %v407
      %v409 = vpop.xlane.xlu0 %408
      %v410 = vsel %vm391, %v389, 0.0
      %411 = vadd.xlane.f32.xlu0 %v410
      %v412 = vpop.xlane.xlu0 %411
      %v413 = vsel %vm391, %v390, 0.0
      %414 = vadd.xlane.f32.xlu0 %v413
      %v415 = vpop.xlane.xlu0 %414
      %v424 = vlaneseq
      %v425 = vand.u32 %v424, 127
      %v426 = vlaneseq
      %v427 = vshrl.u32 %v426, 7
      %v428 = vsub.s32 %v425, %v427
      %v429 = vrot.slane %v394, %v428
      %v430 = vlaneseq
      %v431 = vshrl.u32 %v430, 7
      %v432 = vsub.s32 %v425, %v431
      %v433 = vrot.slane %v397, %v432
      %v434 = vlaneseq
      %v435 = vshrl.u32 %v434, 7
      %v436 = vsub.s32 %v425, %v435
      %v437 = vrot.slane %v400, %v436
      %v438 = vlaneseq
      %v439 = vshrl.u32 %v438, 7
      %v440 = vsub.s32 %v425, %v439
      %v441 = vrot.slane %v403, %v440
      %v442 = vlaneseq
      %v443 = vshrl.u32 %v442, 7
      %v444 = vsub.s32 %v425, %v443
      %v445 = vrot.slane %v406, %v444
      %v446 = vlaneseq
      %v447 = vshrl.u32 %v446, 7
      %v448 = vsub.s32 %v425, %v447
      %v449 = vrot.slane %v409, %v448
      %v450 = vlaneseq
      %v451 = vshrl.u32 %v450, 7
      %v452 = vsub.s32 %v425, %v451
      %v453 = vrot.slane %v412, %v452
      %v454 = vlaneseq
      %v455 = vshrl.u32 %v454, 7
      %v456 = vsub.s32 %v425, %v455
      %v457 = vrot.slane %v415, %v456
      %vm458 = vcmask 1041409
      %v459 = vsel %vm458, %v433, %v429
      %vm460 = vcmask 1042434
      %v461 = vsel %vm460, %v437, %v459
      %vm462 = vcmask 1043459
      %v463 = vsel %vm462, %v441, %v461
      %vm464 = vcmask 1044484
      %v465 = vsel %vm464, %v445, %v463
      %vm466 = vcmask 1045509
      %v467 = vsel %vm466, %v449, %v465
      %vm468 = vcmask 1046534
      %v469 = vsel %vm468, %v453, %v467
      %vm470 = vcmask 1047559
      %v471 = vsel %vm470, %v457, %v469
      %vm473 = vcmask 64512
      %v474 = vsel %vm473, %v471, -inf
      %475 = vmax.xlane.f32.xlu0 %v474
      %v476 = vpop.xlane.xlu0 %475
      %v478 = vlaneseq
      %v479 = vshrl.u32 %v478, 7
      %v480 = vsub.s32 0, %v479
      %v481 = vrot.slane %v476, %v480
      %v482 = vlaneseq
      %v483 = vshrl.u32 %v482, 7
      %v484 = vsub.s32 1, %v483
      %v485 = vrot.slane %v476, %v484
      %v486 = vlaneseq
      %v487 = vshrl.u32 %v486, 7
      %v488 = vsub.s32 2, %v487
      %v489 = vrot.slane %v476, %v488
      %v490 = vlaneseq
      %v491 = vshrl.u32 %v490, 7
      %v492 = vsub.s32 3, %v491
      %v493 = vrot.slane %v476, %v492
      %v494 = vlaneseq
      %v495 = vshrl.u32 %v494, 7
      %v496 = vsub.s32 4, %v495
      %v497 = vrot.slane %v476, %v496
      %v498 = vlaneseq
      %v499 = vshrl.u32 %v498, 7
      %v500 = vsub.s32 5, %v499
      %v501 = vrot.slane %v476, %v500
      %v502 = vlaneseq
      %v503 = vshrl.u32 %v502, 7
      %v504 = vsub.s32 6, %v503
      %v505 = vrot.slane %v476, %v504
      %v506 = vlaneseq
      %v507 = vshrl.u32 %v506, 7
      %v508 = vsub.s32 7, %v507
      %v509 = vrot.slane %v476, %v508
      %v518 = vsub.f32 %v394, %v481
      %v519 = vsub.f32 %v397, %v485
      %v520 = vsub.f32 %v400, %v489
      %v521 = vsub.f32 %v403, %v493
      %v522 = vsub.f32 %v406, %v497
      %v523 = vsub.f32 %v409, %v501
      %v524 = vsub.f32 %v412, %v505
      %v525 = vsub.f32 %v415, %v509
      %v526 = vmul.f32 %v518, 1.442695
      %v527 = vpow.pop %v526
      %v528 = vmul.f32 %v519, 1.442695
      %v529 = vpow.pop %v528
      %v530 = vmul.f32 %v520, 1.442695
      %v531 = vpow.pop %v530
      %v532 = vmul.f32 %v521, 1.442695
      %v533 = vpow.pop %v532
      %v534 = vmul.f32 %v522, 1.442695
      %v535 = vpow.pop %v534
      %v536 = vmul.f32 %v523, 1.442695
      %v537 = vpow.pop %v536
      %v538 = vmul.f32 %v524, 1.442695
      %v539 = vpow.pop %v538
      %v540 = vmul.f32 %v525, 1.442695
      %v541 = vpow.pop %v540
      %550 = vset.pattern.permute.xlu0 0
      %551 = vperm.xlu0 %550, %v527
      %v552 = vpop.permute.xlu0 %551
      %553 = vset.pattern.permute.xlu0 0
      %554 = vperm.xlu0 %553, %v529
      %v555 = vpop.permute.xlu0 %554
      %556 = vset.pattern.permute.xlu0 0
      %557 = vperm.xlu0 %556, %v531
      %v558 = vpop.permute.xlu0 %557
      %559 = vset.pattern.permute.xlu0 0
      %560 = vperm.xlu0 %559, %v533
      %v561 = vpop.permute.xlu0 %560
      %562 = vset.pattern.permute.xlu0 0
      %563 = vperm.xlu0 %562, %v535
      %v564 = vpop.permute.xlu0 %563
      %565 = vset.pattern.permute.xlu0 0
      %566 = vperm.xlu0 %565, %v537
      %v567 = vpop.permute.xlu0 %566
      %568 = vset.pattern.permute.xlu0 0
      %569 = vperm.xlu0 %568, %v539
      %v570 = vpop.permute.xlu0 %569
      %571 = vset.pattern.permute.xlu0 0
      %572 = vperm.xlu0 %571, %v541
      %v573 = vpop.permute.xlu0 %572
      %v574 = vlaneseq
      %v575 = vshrl.u32 %v574, 7
      %v576 = vsub.s32 %v425, %v575
      %v577 = vrot.slane %v552, %v576
      %v578 = vlaneseq
      %v579 = vshrl.u32 %v578, 7
      %v580 = vsub.s32 %v425, %v579
      %v581 = vrot.slane %v555, %v580
      %v582 = vlaneseq
      %v583 = vshrl.u32 %v582, 7
      %v584 = vsub.s32 %v425, %v583
      %v585 = vrot.slane %v558, %v584
      %v586 = vlaneseq
      %v587 = vshrl.u32 %v586, 7
      %v588 = vsub.s32 %v425, %v587
      %v589 = vrot.slane %v561, %v588
      %v590 = vlaneseq
      %v591 = vshrl.u32 %v590, 7
      %v592 = vsub.s32 %v425, %v591
      %v593 = vrot.slane %v564, %v592
      %v594 = vlaneseq
      %v595 = vshrl.u32 %v594, 7
      %v596 = vsub.s32 %v425, %v595
      %v597 = vrot.slane %v567, %v596
      %v598 = vlaneseq
      %v599 = vshrl.u32 %v598, 7
      %v600 = vsub.s32 %v425, %v599
      %v601 = vrot.slane %v570, %v600
      %v602 = vlaneseq
      %v603 = vshrl.u32 %v602, 7
      %v604 = vsub.s32 %v425, %v603
      %v605 = vrot.slane %v573, %v604
      %v606 = vsel %vm458, %v581, %v577
      %v607 = vsel %vm460, %v585, %v606
      %v608 = vsel %vm462, %v589, %v607
      %v609 = vsel %vm464, %v593, %v608
      %v610 = vsel %vm466, %v597, %v609
      %v611 = vsel %vm468, %v601, %v610
      %v612 = vsel %vm470, %v605, %v611
      %v614 = vsel %vm473, %v612, 0.0
      %615 = vadd.xlane.f32.xlu0 %v614
      %v616 = vpop.xlane.xlu0 %615
      %v617 = vrcp.pop %v616
      %v619 = vlaneseq
      %v620 = vshrl.u32 %v619, 7
      %v621 = vsub.s32 0, %v620
      %v622 = vrot.slane %v617, %v621
      %v623 = vlaneseq
      %v624 = vshrl.u32 %v623, 7
      %v625 = vsub.s32 1, %v624
      %v626 = vrot.slane %v617, %v625
      %v627 = vlaneseq
      %v628 = vshrl.u32 %v627, 7
      %v629 = vsub.s32 2, %v628
      %v630 = vrot.slane %v617, %v629
      %v631 = vlaneseq
      %v632 = vshrl.u32 %v631, 7
      %v633 = vsub.s32 3, %v632
      %v634 = vrot.slane %v617, %v633
      %v635 = vlaneseq
      %v636 = vshrl.u32 %v635, 7
      %v637 = vsub.s32 4, %v636
      %v638 = vrot.slane %v617, %v637
      %v639 = vlaneseq
      %v640 = vshrl.u32 %v639, 7
      %v641 = vsub.s32 5, %v640
      %v642 = vrot.slane %v617, %v641
      %v643 = vlaneseq
      %v644 = vshrl.u32 %v643, 7
      %v645 = vsub.s32 6, %v644
      %v646 = vrot.slane %v617, %v645
      %v647 = vlaneseq
      %v648 = vshrl.u32 %v647, 7
      %v649 = vsub.s32 7, %v648
      %v650 = vrot.slane %v617, %v649
      %v659 = vmul.f32 %v527, %v622
      %v660 = vmul.f32 %v529, %v626
      %v661 = vmul.f32 %v531, %v630
      %v662 = vmul.f32 %v533, %v634
      %v663 = vmul.f32 %v535, %v638
      %v664 = vmul.f32 %v537, %v642
      %v665 = vmul.f32 %v539, %v646
      %v666 = vmul.f32 %v541, %v650
      %v667 = vpack.c.bf16 %v659, %v659
      %v668 = vpack.c.bf16 %v660, %v660
      %v669 = vpack.c.bf16 %v661, %v661
      %v670 = vpack.c.bf16 %v662, %v662
      %v671 = vpack.c.bf16 %v663, %v663
      %v672 = vpack.c.bf16 %v664, %v664
      %v673 = vpack.c.bf16 %v665, %v665
      %v674 = vpack.c.bf16 %v666, %v666
      %v675 = vpack.c.bf16 %v285, %v285
      %v684 = vunpack.c.l.b16 %v667
      %v685 = vunpack.c.l.b16 %v668
      %v686 = vunpack.c.l.b16 %v669
      %v687 = vunpack.c.l.b16 %v670
      %v688 = vunpack.c.l.b16 %v671
      %v689 = vunpack.c.l.b16 %v672
      %v690 = vunpack.c.l.b16 %v673
      %v691 = vunpack.c.l.b16 %v674
      %692 = vset.pattern.permute.xlu0 0
      %693 = vperm.xlu0 %692, %v684
      %v694 = vpop.permute.xlu0 %693
      %695 = vset.pattern.permute.xlu0 0
      %696 = vperm.xlu0 %695, %v685
      %v697 = vpop.permute.xlu0 %696
      %698 = vset.pattern.permute.xlu0 0
      %699 = vperm.xlu0 %698, %v686
      %v700 = vpop.permute.xlu0 %699
      %701 = vset.pattern.permute.xlu0 0
      %702 = vperm.xlu0 %701, %v687
      %v703 = vpop.permute.xlu0 %702
      %704 = vset.pattern.permute.xlu0 0
      %705 = vperm.xlu0 %704, %v688
      %v706 = vpop.permute.xlu0 %705
      %707 = vset.pattern.permute.xlu0 0
      %708 = vperm.xlu0 %707, %v689
      %v709 = vpop.permute.xlu0 %708
      %710 = vset.pattern.permute.xlu0 0
      %711 = vperm.xlu0 %710, %v690
      %v712 = vpop.permute.xlu0 %711
      %713 = vset.pattern.permute.xlu0 0
      %714 = vperm.xlu0 %713, %v691
      %v715 = vpop.permute.xlu0 %714
      %v716 = vlaneseq
      %v717 = vshrl.u32 %v716, 7
      %v718 = vsub.s32 %v425, %v717
      %v719 = vrot.slane %v694, %v718
      %v720 = vlaneseq
      %v721 = vshrl.u32 %v720, 7
      %v722 = vsub.s32 %v425, %v721
      %v723 = vrot.slane %v697, %v722
      %v724 = vlaneseq
      %v725 = vshrl.u32 %v724, 7
      %v726 = vsub.s32 %v425, %v725
      %v727 = vrot.slane %v700, %v726
      %v728 = vlaneseq
      %v729 = vshrl.u32 %v728, 7
      %v730 = vsub.s32 %v425, %v729
      %v731 = vrot.slane %v703, %v730
      %v732 = vlaneseq
      %v733 = vshrl.u32 %v732, 7
      %v734 = vsub.s32 %v425, %v733
      %v735 = vrot.slane %v706, %v734
      %v736 = vlaneseq
      %v737 = vshrl.u32 %v736, 7
      %v738 = vsub.s32 %v425, %v737
      %v739 = vrot.slane %v709, %v738
      %v740 = vlaneseq
      %v741 = vshrl.u32 %v740, 7
      %v742 = vsub.s32 %v425, %v741
      %v743 = vrot.slane %v712, %v742
      %v744 = vlaneseq
      %v745 = vshrl.u32 %v744, 7
      %v746 = vsub.s32 %v425, %v745
      %v747 = vrot.slane %v715, %v746
      %v748 = vsel %vm458, %v723, %v719
      %v749 = vsel %vm460, %v727, %v748
      %v750 = vsel %vm462, %v731, %v749
      %v751 = vsel %vm464, %v735, %v750
      %v752 = vsel %vm466, %v739, %v751
      %v753 = vsel %vm468, %v743, %v752
      %v754 = vsel %vm470, %v747, %v753
      %v755 = vpack.c.b16 %v754, %v754
      %757 = vrot.lane.b32.xlu0 %v675, 64
      %v758 = vpop.permute.xlu0 %757
      %v760 = vsel %vm473, %v755, 0
      %vm762 = vcmask 1043456
      %v764 = vsel %vm762, %v758, 0
      %766 = vmatprep.subr.bf16.mxu0 0
      %767 = vmatpush1.bf16.msra.mxu0 0
      %768 = vmatprep.subr.bf16.mxu0 0
      %769 = vmatpush1.bf16.msra.mxu0 0
      %770 = vmatprep.subr.bf16.mxu0 0
      %771 = vmatpush1.bf16.msra.mxu0 0
      %772 = vmatprep.subr.bf16.mxu0 0
      %773 = vmatpush1.bf16.msra.mxu0 0
      %774 = vmatprep.subr.bf16.mxu0 0
      %775 = vmatpush1.bf16.msra.mxu0 0
      %776 = vmatprep.subr.bf16.mxu0 0
      %777 = vmatpush1.bf16.msra.mxu0 0
      %778 = vmatprep.subr.bf16.mxu0 0
      %779 = vmatpush1.bf16.msra.mxu0 0
      %780 = vmatprep.subr.bf16.mxu0 0
      %781 = vmatpush1.bf16.msra.mxu0 %v764
      %782 = vmatprep.subr.bf16.mxu0 0
      %783 = vmatpush2.bf16.msra.mxu0 0
      %784 = vmatprep.subr.bf16.mxu0 0
      %785 = vmatpush2.bf16.msra.mxu0 0
      %786 = vmatprep.subr.bf16.mxu0 0
      %787 = vmatpush2.bf16.msra.mxu0 0
      %788 = vmatprep.subr.bf16.mxu0 0
      %789 = vmatpush2.bf16.msra.mxu0 0
      %790 = vmatprep.subr.bf16.mxu0 0
      %791 = vmatpush2.bf16.msra.mxu0 0
      %792 = vmatprep.subr.bf16.mxu0 0
      %793 = vmatpush2.bf16.msra.mxu0 0
      %794 = vmatprep.subr.bf16.mxu0 0
      %795 = vmatpush2.bf16.msra.mxu0 0
      %796 = vmatprep.subr.bf16.mxu0 0
      %797 = vmatpush2.bf16.msra.mxu0 0
      %798 = vmatprep.mubr.bf16.mxu0 0
      %799 = vmatmul.mubr.bf16.gmra.mxu0 %v760
      %v800 = vpop.f32.mrf.mxu0
      %v801 = vadd.f32 0.0, %v800
      %v802 = vpop.f32.mrf.mxu0
      %v803 = vpop.f32.mrf.mxu0
      %v804 = vpop.f32.mrf.mxu0
      %805 = vdwg.mxu0
      %806 = vst.msk [vmem:[#allocation2] sm:$0xff] %vm391, %v801
      %815 = vrot.lane.b32.xlu0 %v383, 124
      %v816 = vpop.permute.xlu0 %815
      %817 = vrot.lane.b32.xlu0 %v384, 124
      %v818 = vpop.permute.xlu0 %817
      %819 = vrot.lane.b32.xlu0 %v385, 124
      %v820 = vpop.permute.xlu0 %819
      %821 = vrot.lane.b32.xlu0 %v386, 124
      %v822 = vpop.permute.xlu0 %821
      %823 = vrot.lane.b32.xlu0 %v387, 124
      %v824 = vpop.permute.xlu0 %823
      %825 = vrot.lane.b32.xlu0 %v388, 124
      %v826 = vpop.permute.xlu0 %825
      %827 = vrot.lane.b32.xlu0 %v389, 124
      %v828 = vpop.permute.xlu0 %827
      %829 = vrot.lane.b32.xlu0 %v390, 124
      %v830 = vpop.permute.xlu0 %829
      %v839 = vsel %vm391, %v816, 0.0
      %840 = vadd.xlane.f32.xlu0 %v839
      %v841 = vpop.xlane.xlu0 %840
      %v842 = vsel %vm391, %v818, 0.0
      %843 = vadd.xlane.f32.xlu0 %v842
      %v844 = vpop.xlane.xlu0 %843
      %v845 = vsel %vm391, %v820, 0.0
      %846 = vadd.xlane.f32.xlu0 %v845
      %v847 = vpop.xlane.xlu0 %846
      %v848 = vsel %vm391, %v822, 0.0
      %849 = vadd.xlane.f32.xlu0 %v848
      %v850 = vpop.xlane.xlu0 %849
      %v851 = vsel %vm391, %v824, 0.0
      %852 = vadd.xlane.f32.xlu0 %v851
      %v853 = vpop.xlane.xlu0 %852
      %v854 = vsel %vm391, %v826, 0.0
      %855 = vadd.xlane.f32.xlu0 %v854
      %v856 = vpop.xlane.xlu0 %855
      %v857 = vsel %vm391, %v828, 0.0
      %858 = vadd.xlane.f32.xlu0 %v857
      %v859 = vpop.xlane.xlu0 %858
      %v860 = vsel %vm391, %v830, 0.0
      %861 = vadd.xlane.f32.xlu0 %v860
      %v862 = vpop.xlane.xlu0 %861
      %v871 = vlaneseq
      %v872 = vshrl.u32 %v871, 7
      %v873 = vsub.s32 %v425, %v872
      %v874 = vrot.slane %v841, %v873
      %v875 = vlaneseq
      %v876 = vshrl.u32 %v875, 7
      %v877 = vsub.s32 %v425, %v876
      %v878 = vrot.slane %v844, %v877
      %v879 = vlaneseq
      %v880 = vshrl.u32 %v879, 7
      %v881 = vsub.s32 %v425, %v880
      %v882 = vrot.slane %v847, %v881
      %v883 = vlaneseq
      %v884 = vshrl.u32 %v883, 7
      %v885 = vsub.s32 %v425, %v884
      %v886 = vrot.slane %v850, %v885
      %v887 = vlaneseq
      %v888 = vshrl.u32 %v887, 7
      %v889 = vsub.s32 %v425, %v888
      %v890 = vrot.slane %v853, %v889
      %v891 = vlaneseq
      %v892 = vshrl.u32 %v891, 7
      %v893 = vsub.s32 %v425, %v892
      %v894 = vrot.slane %v856, %v893
      %v895 = vlaneseq
      %v896 = vshrl.u32 %v895, 7
      %v897 = vsub.s32 %v425, %v896
      %v898 = vrot.slane %v859, %v897
      %v899 = vlaneseq
      %v900 = vshrl.u32 %v899, 7
      %v901 = vsub.s32 %v425, %v900
      %v902 = vrot.slane %v862, %v901
      %v903 = vsel %vm458, %v878, %v874
      %v904 = vsel %vm460, %v882, %v903
      %v905 = vsel %vm462, %v886, %v904
      %v906 = vsel %vm464, %v890, %v905
      %v907 = vsel %vm466, %v894, %v906
      %v908 = vsel %vm468, %v898, %v907
      %v909 = vsel %vm470, %v902, %v908
      %v911 = vsel %vm473, %v909, -inf
      %912 = vmax.xlane.f32.xlu0 %v911
      %v913 = vpop.xlane.xlu0 %912
      %v915 = vlaneseq
      %v916 = vshrl.u32 %v915, 7
      %v917 = vsub.s32 0, %v916
      %v918 = vrot.slane %v913, %v917
      %v919 = vlaneseq
      %v920 = vshrl.u32 %v919, 7
      %v921 = vsub.s32 1, %v920
      %v922 = vrot.slane %v913, %v921
      %v923 = vlaneseq
      %v924 = vshrl.u32 %v923, 7
      %v925 = vsub.s32 2, %v924
      %v926 = vrot.slane %v913, %v925
      %v927 = vlaneseq
      %v928 = vshrl.u32 %v927, 7
      %v929 = vsub.s32 3, %v928
      %v930 = vrot.slane %v913, %v929
      %v931 = vlaneseq
      %v932 = vshrl.u32 %v931, 7
      %v933 = vsub.s32 4, %v932
      %v934 = vrot.slane %v913, %v933
      %v935 = vlaneseq
      %v936 = vshrl.u32 %v935, 7
      %v937 = vsub.s32 5, %v936
      %v938 = vrot.slane %v913, %v937
      %v939 = vlaneseq
      %v940 = vshrl.u32 %v939, 7
      %v941 = vsub.s32 6, %v940
      %v942 = vrot.slane %v913, %v941
      %v943 = vlaneseq
      %v944 = vshrl.u32 %v943, 7
      %v945 = vsub.s32 7, %v944
      %v946 = vrot.slane %v913, %v945
      %v955 = vsub.f32 %v841, %v918
      %v956 = vsub.f32 %v844, %v922
      %v957 = vsub.f32 %v847, %v926
      %v958 = vsub.f32 %v850, %v930
      %v959 = vsub.f32 %v853, %v934
      %v960 = vsub.f32 %v856, %v938
      %v961 = vsub.f32 %v859, %v942
      %v962 = vsub.f32 %v862, %v946
      %v963 = vmul.f32 %v955, 1.442695
      %v964 = vpow.pop %v963
      %v965 = vmul.f32 %v956, 1.442695
      %v966 = vpow.pop %v965
      %v967 = vmul.f32 %v957, 1.442695
      %v968 = vpow.pop %v967
      %v969 = vmul.f32 %v958, 1.442695
      %v970 = vpow.pop %v969
      %v971 = vmul.f32 %v959, 1.442695
      %v972 = vpow.pop %v971
      %v973 = vmul.f32 %v960, 1.442695
      %v974 = vpow.pop %v973
      %v975 = vmul.f32 %v961, 1.442695
      %v976 = vpow.pop %v975
      %v977 = vmul.f32 %v962, 1.442695
      %v978 = vpow.pop %v977
      %987 = vset.pattern.permute.xlu0 0
      %988 = vperm.xlu0 %987, %v964
      %v989 = vpop.permute.xlu0 %988
      %990 = vset.pattern.permute.xlu0 0
      %991 = vperm.xlu0 %990, %v966
      %v992 = vpop.permute.xlu0 %991
      %993 = vset.pattern.permute.xlu0 0
      %994 = vperm.xlu0 %993, %v968
      %v995 = vpop.permute.xlu0 %994
      %996 = vset.pattern.permute.xlu0 0
      %997 = vperm.xlu0 %996, %v970
      %v998 = vpop.permute.xlu0 %997
      %999 = vset.pattern.permute.xlu0 0
      %1000 = vperm.xlu0 %999, %v972
      %v1001 = vpop.permute.xlu0 %1000
      %1002 = vset.pattern.permute.xlu0 0
      %1003 = vperm.xlu0 %1002, %v974
      %v1004 = vpop.permute.xlu0 %1003
      %1005 = vset.pattern.permute.xlu0 0
      %1006 = vperm.xlu0 %1005, %v976
      %v1007 = vpop.permute.xlu0 %1006
      %1008 = vset.pattern.permute.xlu0 0
      %1009 = vperm.xlu0 %1008, %v978
      %v1010 = vpop.permute.xlu0 %1009
      %v1011 = vlaneseq
      %v1012 = vshrl.u32 %v1011, 7
      %v1013 = vsub.s32 %v425, %v1012
      %v1014 = vrot.slane %v989, %v1013
      %v1015 = vlaneseq
      %v1016 = vshrl.u32 %v1015, 7
      %v1017 = vsub.s32 %v425, %v1016
      %v1018 = vrot.slane %v992, %v1017
      %v1019 = vlaneseq
      %v1020 = vshrl.u32 %v1019, 7
      %v1021 = vsub.s32 %v425, %v1020
      %v1022 = vrot.slane %v995, %v1021
      %v1023 = vlaneseq
      %v1024 = vshrl.u32 %v1023, 7
      %v1025 = vsub.s32 %v425, %v1024
      %v1026 = vrot.slane %v998, %v1025
      %v1027 = vlaneseq
      %v1028 = vshrl.u32 %v1027, 7
      %v1029 = vsub.s32 %v425, %v1028
      %v1030 = vrot.slane %v1001, %v1029
      %v1031 = vlaneseq
      %v1032 = vshrl.u32 %v1031, 7
      %v1033 = vsub.s32 %v425, %v1032
      %v1034 = vrot.slane %v1004, %v1033
      %v1035 = vlaneseq
      %v1036 = vshrl.u32 %v1035, 7
      %v1037 = vsub.s32 %v425, %v1036
      %v1038 = vrot.slane %v1007, %v1037
      %v1039 = vlaneseq
      %v1040 = vshrl.u32 %v1039, 7
      %v1041 = vsub.s32 %v425, %v1040
      %v1042 = vrot.slane %v1010, %v1041
      %v1043 = vsel %vm458, %v1018, %v1014
      %v1044 = vsel %vm460, %v1022, %v1043
      %v1045 = vsel %vm462, %v1026, %v1044
      %v1046 = vsel %vm464, %v1030, %v1045
      %v1047 = vsel %vm466, %v1034, %v1046
      %v1048 = vsel %vm468, %v1038, %v1047
      %v1049 = vsel %vm470, %v1042, %v1048
      %v1051 = vsel %vm473, %v1049, 0.0
      %1052 = vadd.xlane.f32.xlu0 %v1051
      %v1053 = vpop.xlane.xlu0 %1052
      %v1054 = vrcp.pop %v1053
      %v1056 = vlaneseq
      %v1057 = vshrl.u32 %v1056, 7
      %v1058 = vsub.s32 0, %v1057
      %v1059 = vrot.slane %v1054, %v1058
      %v1060 = vlaneseq
      %v1061 = vshrl.u32 %v1060, 7
      %v1062 = vsub.s32 1, %v1061
      %v1063 = vrot.slane %v1054, %v1062
      %v1064 = vlaneseq
      %v1065 = vshrl.u32 %v1064, 7
      %v1066 = vsub.s32 2, %v1065
      %v1067 = vrot.slane %v1054, %v1066
      %v1068 = vlaneseq
      %v1069 = vshrl.u32 %v1068, 7
      %v1070 = vsub.s32 3, %v1069
      %v1071 = vrot.slane %v1054, %v1070
      %v1072 = vlaneseq
      %v1073 = vshrl.u32 %v1072, 7
      %v1074 = vsub.s32 4, %v1073
      %v1075 = vrot.slane %v1054, %v1074
      %v1076 = vlaneseq
      %v1077 = vshrl.u32 %v1076, 7
      %v1078 = vsub.s32 5, %v1077
      %v1079 = vrot.slane %v1054, %v1078
      %v1080 = vlaneseq
      %v1081 = vshrl.u32 %v1080, 7
      %v1082 = vsub.s32 6, %v1081
      %v1083 = vrot.slane %v1054, %v1082
      %v1084 = vlaneseq
      %v1085 = vshrl.u32 %v1084, 7
      %v1086 = vsub.s32 7, %v1085
      %v1087 = vrot.slane %v1054, %v1086
      %v1096 = vmul.f32 %v964, %v1059
      %v1097 = vmul.f32 %v966, %v1063
      %v1098 = vmul.f32 %v968, %v1067
      %v1099 = vmul.f32 %v970, %v1071
      %v1100 = vmul.f32 %v972, %v1075
      %v1101 = vmul.f32 %v974, %v1079
      %v1102 = vmul.f32 %v976, %v1083
      %v1103 = vmul.f32 %v978, %v1087
      %v1104 = vpack.c.bf16 %v1096, %v1096
      %v1105 = vpack.c.bf16 %v1097, %v1097
      %v1106 = vpack.c.bf16 %v1098, %v1098
      %v1107 = vpack.c.bf16 %v1099, %v1099
      %v1108 = vpack.c.bf16 %v1100, %v1100
      %v1109 = vpack.c.bf16 %v1101, %v1101
      %v1110 = vpack.c.bf16 %v1102, %v1102
      %v1111 = vpack.c.bf16 %v1103, %v1103
      %v1120 = vunpack.c.l.b16 %v1104
      %v1121 = vunpack.c.l.b16 %v1105
      %v1122 = vunpack.c.l.b16 %v1106
      %v1123 = vunpack.c.l.b16 %v1107
      %v1124 = vunpack.c.l.b16 %v1108
      %v1125 = vunpack.c.l.b16 %v1109
      %v1126 = vunpack.c.l.b16 %v1110
      %v1127 = vunpack.c.l.b16 %v1111
      %1128 = vset.pattern.permute.xlu0 0
      %1129 = vperm.xlu0 %1128, %v1120
      %v1130 = vpop.permute.xlu0 %1129
      %1131 = vset.pattern.permute.xlu0 0
      %1132 = vperm.xlu0 %1131, %v1121
      %v1133 = vpop.permute.xlu0 %1132
      %1134 = vset.pattern.permute.xlu0 0
      %1135 = vperm.xlu0 %1134, %v1122
      %v1136 = vpop.permute.xlu0 %1135
      %1137 = vset.pattern.permute.xlu0 0
      %1138 = vperm.xlu0 %1137, %v1123
      %v1139 = vpop.permute.xlu0 %1138
      %1140 = vset.pattern.permute.xlu0 0
      %1141 = vperm.xlu0 %1140, %v1124
      %v1142 = vpop.permute.xlu0 %1141
      %1143 = vset.pattern.permute.xlu0 0
      %1144 = vperm.xlu0 %1143, %v1125
      %v1145 = vpop.permute.xlu0 %1144
      %1146 = vset.pattern.permute.xlu0 0
      %1147 = vperm.xlu0 %1146, %v1126
      %v1148 = vpop.permute.xlu0 %1147
      %1149 = vset.pattern.permute.xlu0 0
      %1150 = vperm.xlu0 %1149, %v1127
      %v1151 = vpop.permute.xlu0 %1150
      %v1152 = vlaneseq
      %v1153 = vshrl.u32 %v1152, 7
      %v1154 = vsub.s32 %v425, %v1153
      %v1155 = vrot.slane %v1130, %v1154
      %v1156 = vlaneseq
      %v1157 = vshrl.u32 %v1156, 7
      %v1158 = vsub.s32 %v425, %v1157
      %v1159 = vrot.slane %v1133, %v1158
      %v1160 = vlaneseq
      %v1161 = vshrl.u32 %v1160, 7
      %v1162 = vsub.s32 %v425, %v1161
      %v1163 = vrot.slane %v1136, %v1162
      %v1164 = vlaneseq
      %v1165 = vshrl.u32 %v1164, 7
      %v1166 = vsub.s32 %v425, %v1165
      %v1167 = vrot.slane %v1139, %v1166
      %v1168 = vlaneseq
      %v1169 = vshrl.u32 %v1168, 7
      %v1170 = vsub.s32 %v425, %v1169
      %v1171 = vrot.slane %v1142, %v1170
      %v1172 = vlaneseq
      %v1173 = vshrl.u32 %v1172, 7
      %v1174 = vsub.s32 %v425, %v1173
      %v1175 = vrot.slane %v1145, %v1174
      %v1176 = vlaneseq
      %v1177 = vshrl.u32 %v1176, 7
      %v1178 = vsub.s32 %v425, %v1177
      %v1179 = vrot.slane %v1148, %v1178
      %v1180 = vlaneseq
      %v1181 = vshrl.u32 %v1180, 7
      %v1182 = vsub.s32 %v425, %v1181
      %v1183 = vrot.slane %v1151, %v1182
      %v1184 = vsel %vm458, %v1159, %v1155
      %v1185 = vsel %vm460, %v1163, %v1184
      %v1186 = vsel %vm462, %v1167, %v1185
      %v1187 = vsel %vm464, %v1171, %v1186
      %v1188 = vsel %vm466, %v1175, %v1187
      %v1189 = vsel %vm468, %v1179, %v1188
      %v1190 = vsel %vm470, %v1183, %v1189
      %v1191 = vpack.c.b16 %v1190, %v1190
      %1192 = vrot.lane.b32.xlu0 %v675, 60
      %v1193 = vpop.permute.xlu0 %1192
      %v1195 = vsel %vm473, %v1191, 0
      %v1198 = vsel %vm762, %v1193, 0
      %1200 = vmatprep.subr.bf16.mxu0 0
      %1201 = vmatpush1.bf16.msra.mxu0 0
      %1202 = vmatprep.subr.bf16.mxu0 0
      %1203 = vmatpush1.bf16.msra.mxu0 0
      %1204 = vmatprep.subr.bf16.mxu0 0
      %1205 = vmatpush1.bf16.msra.mxu0 0
      %1206 = vmatprep.subr.bf16.mxu0 0
      %1207 = vmatpush1.bf16.msra.mxu0 0
      %1208 = vmatprep.subr.bf16.mxu0 0
      %1209 = vmatpush1.bf16.msra.mxu0 0
      %1210 = vmatprep.subr.bf16.mxu0 0
      %1211 = vmatpush1.bf16.msra.mxu0 0
      %1212 = vmatprep.subr.bf16.mxu0 0
      %1213 = vmatpush1.bf16.msra.mxu0 0
      %1214 = vmatprep.subr.bf16.mxu0 0
      %1215 = vmatpush1.bf16.msra.mxu0 %v1198
      %1216 = vmatprep.subr.bf16.mxu0 0
      %1217 = vmatpush2.bf16.msra.mxu0 0
      %1218 = vmatprep.subr.bf16.mxu0 0
      %1219 = vmatpush2.bf16.msra.mxu0 0
      %1220 = vmatprep.subr.bf16.mxu0 0
      %1221 = vmatpush2.bf16.msra.mxu0 0
      %1222 = vmatprep.subr.bf16.mxu0 0
      %1223 = vmatpush2.bf16.msra.mxu0 0
      %1224 = vmatprep.subr.bf16.mxu0 0
      %1225 = vmatpush2.bf16.msra.mxu0 0
      %1226 = vmatprep.subr.bf16.mxu0 0
      %1227 = vmatpush2.bf16.msra.mxu0 0
      %1228 = vmatprep.subr.bf16.mxu0 0
      %1229 = vmatpush2.bf16.msra.mxu0 0
      %1230 = vmatprep.subr.bf16.mxu0 0
      %1231 = vmatpush2.bf16.msra.mxu0 0
      %1232 = vmatprep.mubr.bf16.mxu0 0
      %1233 = vmatmul.mubr.bf16.gmra.mxu0 %v1195
      %v1234 = vpop.f32.mrf.mxu0
      %v1235 = vadd.f32 0.0, %v1234
      %v1236 = vpop.f32.mrf.mxu0
      %v1237 = vpop.f32.mrf.mxu0
      %v1238 = vpop.f32.mrf.mxu0
      %1239 = vdwg.mxu0
      %1241 = vrot.lane.b32.xlu0 %v1235, 4
      %v1242 = vpop.permute.xlu0 %1241
      %vm1244 = vcmask 64544
      %1245 = vst.msk [vmem:[#allocation2] sm:$0xff] %vm1244, %v1242
      %1246 = vrot.lane.b32.xlu0 %v383, 120
      %v1247 = vpop.permute.xlu0 %1246
      %1248 = vrot.lane.b32.xlu0 %v384, 120
      %v1249 = vpop.permute.xlu0 %1248
      %1250 = vrot.lane.b32.xlu0 %v385, 120
      %v1251 = vpop.permute.xlu0 %1250
      %1252 = vrot.lane.b32.xlu0 %v386, 120
      %v1253 = vpop.permute.xlu0 %1252
      %1254 = vrot.lane.b32.xlu0 %v387, 120
      %v1255 = vpop.permute.xlu0 %1254
      %1256 = vrot.lane.b32.xlu0 %v388, 120
      %v1257 = vpop.permute.xlu0 %1256
      %1258 = vrot.lane.b32.xlu0 %v389, 120
      %v1259 = vpop.permute.xlu0 %1258
      %1260 = vrot.lane.b32.xlu0 %v390, 120
      %v1261 = vpop.permute.xlu0 %1260
      %v1270 = vsel %vm391, %v1247, 0.0
      %1271 = vadd.xlane.f32.xlu0 %v1270
      %v1272 = vpop.xlane.xlu0 %1271
      %v1273 = vsel %vm391, %v1249, 0.0
      %1274 = vadd.xlane.f32.xlu0 %v1273
      %v1275 = vpop.xlane.xlu0 %1274
      %v1276 = vsel %vm391, %v1251, 0.0
      %1277 = vadd.xlane.f32.xlu0 %v1276
      %v1278 = vpop.xlane.xlu0 %1277
      %v1279 = vsel %vm391, %v1253, 0.0
      %1280 = vadd.xlane.f32.xlu0 %v1279
      %v1281 = vpop.xlane.xlu0 %1280
      %v1282 = vsel %vm391, %v1255, 0.0
      %1283 = vadd.xlane.f32.xlu0 %v1282
      %v1284 = vpop.xlane.xlu0 %1283
      %v1285 = vsel %vm391, %v1257, 0.0
      %1286 = vadd.xlane.f32.xlu0 %v1285
      %v1287 = vpop.xlane.xlu0 %1286
      %v1288 = vsel %vm391, %v1259, 0.0
      %1289 = vadd.xlane.f32.xlu0 %v1288
      %v1290 = vpop.xlane.xlu0 %1289
      %v1291 = vsel %vm391, %v1261, 0.0
      %1292 = vadd.xlane.f32.xlu0 %v1291
      %v1293 = vpop.xlane.xlu0 %1292
      %v1302 = vlaneseq
      %v1303 = vshrl.u32 %v1302, 7
      %v1304 = vsub.s32 %v425, %v1303
      %v1305 = vrot.slane %v1272, %v1304
      %v1306 = vlaneseq
      %v1307 = vshrl.u32 %v1306, 7
      %v1308 = vsub.s32 %v425, %v1307
      %v1309 = vrot.slane %v1275, %v1308
      %v1310 = vlaneseq
      %v1311 = vshrl.u32 %v1310, 7
      %v1312 = vsub.s32 %v425, %v1311
      %v1313 = vrot.slane %v1278, %v1312
      %v1314 = vlaneseq
      %v1315 = vshrl.u32 %v1314, 7
      %v1316 = vsub.s32 %v425, %v1315
      %v1317 = vrot.slane %v1281, %v1316
      %v1318 = vlaneseq
      %v1319 = vshrl.u32 %v1318, 7
      %v1320 = vsub.s32 %v425, %v1319
      %v1321 = vrot.slane %v1284, %v1320
      %v1322 = vlaneseq
      %v1323 = vshrl.u32 %v1322, 7
      %v1324 = vsub.s32 %v425, %v1323
      %v1325 = vrot.slane %v1287, %v1324
      %v1326 = vlaneseq
      %v1327 = vshrl.u32 %v1326, 7
      %v1328 = vsub.s32 %v425, %v1327
      %v1329 = vrot.slane %v1290, %v1328
      %v1330 = vlaneseq
      %v1331 = vshrl.u32 %v1330, 7
      %v1332 = vsub.s32 %v425, %v1331
      %v1333 = vrot.slane %v1293, %v1332
      %v1334 = vsel %vm458, %v1309, %v1305
      %v1335 = vsel %vm460, %v1313, %v1334
      %v1336 = vsel %vm462, %v1317, %v1335
      %v1337 = vsel %vm464, %v1321, %v1336
      %v1338 = vsel %vm466, %v1325, %v1337
      %v1339 = vsel %vm468, %v1329, %v1338
      %v1340 = vsel %vm470, %v1333, %v1339
      %v1342 = vsel %vm473, %v1340, -inf
      %1343 = vmax.xlane.f32.xlu0 %v1342
      %v1344 = vpop.xlane.xlu0 %1343
      %v1346 = vlaneseq
      %v1347 = vshrl.u32 %v1346, 7
      %v1348 = vsub.s32 0, %v1347
      %v1349 = vrot.slane %v1344, %v1348
      %v1350 = vlaneseq
      %v1351 = vshrl.u32 %v1350, 7
      %v1352 = vsub.s32 1, %v1351
      %v1353 = vrot.slane %v1344, %v1352
      %v1354 = vlaneseq
      %v1355 = vshrl.u32 %v1354, 7
      %v1356 = vsub.s32 2, %v1355
      %v1357 = vrot.slane %v1344, %v1356
      %v1358 = vlaneseq
      %v1359 = vshrl.u32 %v1358, 7
      %v1360 = vsub.s32 3, %v1359
      %v1361 = vrot.slane %v1344, %v1360
      %v1362 = vlaneseq
      %v1363 = vshrl.u32 %v1362, 7
      %v1364 = vsub.s32 4, %v1363
      %v1365 = vrot.slane %v1344, %v1364
      %v1366 = vlaneseq
      %v1367 = vshrl.u32 %v1366, 7
      %v1368 = vsub.s32 5, %v1367
      %v1369 = vrot.slane %v1344, %v1368
      %v1370 = vlaneseq
      %v1371 = vshrl.u32 %v1370, 7
      %v1372 = vsub.s32 6, %v1371
      %v1373 = vrot.slane %v1344, %v1372
      %v1374 = vlaneseq
      %v1375 = vshrl.u32 %v1374, 7
      %v1376 = vsub.s32 7, %v1375
      %v1377 = vrot.slane %v1344, %v1376
      %v1386 = vsub.f32 %v1272, %v1349
      %v1387 = vsub.f32 %v1275, %v1353
      %v1388 = vsub.f32 %v1278, %v1357
      %v1389 = vsub.f32 %v1281, %v1361
      %v1390 = vsub.f32 %v1284, %v1365
      %v1391 = vsub.f32 %v1287, %v1369
      %v1392 = vsub.f32 %v1290, %v1373
      %v1393 = vsub.f32 %v1293, %v1377
      %v1394 = vmul.f32 %v1386, 1.442695
      %v1395 = vpow.pop %v1394
      %v1396 = vmul.f32 %v1387, 1.442695
      %v1397 = vpow.pop %v1396
      %v1398 = vmul.f32 %v1388, 1.442695
      %v1399 = vpow.pop %v1398
      %v1400 = vmul.f32 %v1389, 1.442695
      %v1401 = vpow.pop %v1400
      %v1402 = vmul.f32 %v1390, 1.442695
      %v1403 = vpow.pop %v1402
      %v1404 = vmul.f32 %v1391, 1.442695
      %v1405 = vpow.pop %v1404
      %v1406 = vmul.f32 %v1392, 1.442695
      %v1407 = vpow.pop %v1406
      %v1408 = vmul.f32 %v1393, 1.442695
      %v1409 = vpow.pop %v1408
      %1418 = vset.pattern.permute.xlu0 0
      %1419 = vperm.xlu0 %1418, %v1395
      %v1420 = vpop.permute.xlu0 %1419
      %1421 = vset.pattern.permute.xlu0 0
      %1422 = vperm.xlu0 %1421, %v1397
      %v1423 = vpop.permute.xlu0 %1422
      %1424 = vset.pattern.permute.xlu0 0
      %1425 = vperm.xlu0 %1424, %v1399
      %v1426 = vpop.permute.xlu0 %1425
      %1427 = vset.pattern.permute.xlu0 0
      %1428 = vperm.xlu0 %1427, %v1401
      %v1429 = vpop.permute.xlu0 %1428
      %1430 = vset.pattern.permute.xlu0 0
      %1431 = vperm.xlu0 %1430, %v1403
      %v1432 = vpop.permute.xlu0 %1431
      %1433 = vset.pattern.permute.xlu0 0
      %1434 = vperm.xlu0 %1433, %v1405
      %v1435 = vpop.permute.xlu0 %1434
      %1436 = vset.pattern.permute.xlu0 0
      %1437 = vperm.xlu0 %1436, %v1407
      %v1438 = vpop.permute.xlu0 %1437
      %1439 = vset.pattern.permute.xlu0 0
      %1440 = vperm.xlu0 %1439, %v1409
      %v1441 = vpop.permute.xlu0 %1440
      %v1442 = vlaneseq
      %v1443 = vshrl.u32 %v1442, 7
      %v1444 = vsub.s32 %v425, %v1443
      %v1445 = vrot.slane %v1420, %v1444
      %v1446 = vlaneseq
      %v1447 = vshrl.u32 %v1446, 7
      %v1448 = vsub.s32 %v425, %v1447
      %v1449 = vrot.slane %v1423, %v1448
      %v1450 = vlaneseq
      %v1451 = vshrl.u32 %v1450, 7
      %v1452 = vsub.s32 %v425, %v1451
      %v1453 = vrot.slane %v1426, %v1452
      %v1454 = vlaneseq
      %v1455 = vshrl.u32 %v1454, 7
      %v1456 = vsub.s32 %v425, %v1455
      %v1457 = vrot.slane %v1429, %v1456
      %v1458 = vlaneseq
      %v1459 = vshrl.u32 %v1458, 7
      %v1460 = vsub.s32 %v425, %v1459
      %v1461 = vrot.slane %v1432, %v1460
      %v1462 = vlaneseq
      %v1463 = vshrl.u32 %v1462, 7
      %v1464 = vsub.s32 %v425, %v1463
      %v1465 = vrot.slane %v1435, %v1464
      %v1466 = vlaneseq
      %v1467 = vshrl.u32 %v1466, 7
      %v1468 = vsub.s32 %v425, %v1467
      %v1469 = vrot.slane %v1438, %v1468
      %v1470 = vlaneseq
      %v1471 = vshrl.u32 %v1470, 7
      %v1472 = vsub.s32 %v425, %v1471
      %v1473 = vrot.slane %v1441, %v1472
      %v1474 = vsel %vm458, %v1449, %v1445
      %v1475 = vsel %vm460, %v1453, %v1474
      %v1476 = vsel %vm462, %v1457, %v1475
      %v1477 = vsel %vm464, %v1461, %v1476
      %v1478 = vsel %vm466, %v1465, %v1477
      %v1479 = vsel %vm468, %v1469, %v1478
      %v1480 = vsel %vm470, %v1473, %v1479
      %v1482 = vsel %vm473, %v1480, 0.0
      %1483 = vadd.xlane.f32.xlu0 %v1482
      %v1484 = vpop.xlane.xlu0 %1483
      %v1485 = vrcp.pop %v1484
      %v1487 = vlaneseq
      %v1488 = vshrl.u32 %v1487, 7
      %v1489 = vsub.s32 0, %v1488
      %v1490 = vrot.slane %v1485, %v1489
      %v1491 = vlaneseq
      %v1492 = vshrl.u32 %v1491, 7
      %v1493 = vsub.s32 1, %v1492
      %v1494 = vrot.slane %v1485, %v1493
      %v1495 = vlaneseq
      %v1496 = vshrl.u32 %v1495, 7
      %v1497 = vsub.s32 2, %v1496
      %v1498 = vrot.slane %v1485, %v1497
      %v1499 = vlaneseq
      %v1500 = vshrl.u32 %v1499, 7
      %v1501 = vsub.s32 3, %v1500
      %v1502 = vrot.slane %v1485, %v1501
      %v1503 = vlaneseq
      %v1504 = vshrl.u32 %v1503, 7
      %v1505 = vsub.s32 4, %v1504
      %v1506 = vrot.slane %v1485, %v1505
      %v1507 = vlaneseq
      %v1508 = vshrl.u32 %v1507, 7
      %v1509 = vsub.s32 5, %v1508
      %v1510 = vrot.slane %v1485, %v1509
      %v1511 = vlaneseq
      %v1512 = vshrl.u32 %v1511, 7
      %v1513 = vsub.s32 6, %v1512
      %v1514 = vrot.slane %v1485, %v1513
      %v1515 = vlaneseq
      %v1516 = vshrl.u32 %v1515, 7
      %v1517 = vsub.s32 7, %v1516
      %v1518 = vrot.slane %v1485, %v1517
      %v1527 = vmul.f32 %v1395, %v1490
      %v1528 = vmul.f32 %v1397, %v1494
      %v1529 = vmul.f32 %v1399, %v1498
      %v1530 = vmul.f32 %v1401, %v1502
      %v1531 = vmul.f32 %v1403, %v1506
      %v1532 = vmul.f32 %v1405, %v1510
      %v1533 = vmul.f32 %v1407, %v1514
      %v1534 = vmul.f32 %v1409, %v1518
      %v1535 = vpack.c.bf16 %v1527, %v1527
      %v1536 = vpack.c.bf16 %v1528, %v1528
      %v1537 = vpack.c.bf16 %v1529, %v1529
      %v1538 = vpack.c.bf16 %v1530, %v1530
      %v1539 = vpack.c.bf16 %v1531, %v1531
      %v1540 = vpack.c.bf16 %v1532, %v1532
      %v1541 = vpack.c.bf16 %v1533, %v1533
      %v1542 = vpack.c.bf16 %v1534, %v1534
      %v1551 = vunpack.c.l.b16 %v1535
      %v1552 = vunpack.c.l.b16 %v1536
      %v1553 = vunpack.c.l.b16 %v1537
      %v1554 = vunpack.c.l.b16 %v1538
      %v1555 = vunpack.c.l.b16 %v1539
      %v1556 = vunpack.c.l.b16 %v1540
      %v1557 = vunpack.c.l.b16 %v1541
      %v1558 = vunpack.c.l.b16 %v1542
      %1559 = vset.pattern.permute.xlu0 0
      %1560 = vperm.xlu0 %1559, %v1551
      %v1561 = vpop.permute.xlu0 %1560
      %1562 = vset.pattern.permute.xlu0 0
      %1563 = vperm.xlu0 %1562, %v1552
      %v1564 = vpop.permute.xlu0 %1563
      %1565 = vset.pattern.permute.xlu0 0
      %1566 = vperm.xlu0 %1565, %v1553
      %v1567 = vpop.permute.xlu0 %1566
      %1568 = vset.pattern.permute.xlu0 0
      %1569 = vperm.xlu0 %1568, %v1554
      %v1570 = vpop.permute.xlu0 %1569
      %1571 = vset.pattern.permute.xlu0 0
      %1572 = vperm.xlu0 %1571, %v1555
      %v1573 = vpop.permute.xlu0 %1572
      %1574 = vset.pattern.permute.xlu0 0
      %1575 = vperm.xlu0 %1574, %v1556
      %v1576 = vpop.permute.xlu0 %1575
      %1577 = vset.pattern.permute.xlu0 0
      %1578 = vperm.xlu0 %1577, %v1557
      %v1579 = vpop.permute.xlu0 %1578
      %1580 = vset.pattern.permute.xlu0 0
      %1581 = vperm.xlu0 %1580, %v1558
      %v1582 = vpop.permute.xlu0 %1581
      %v1583 = vlaneseq
      %v1584 = vshrl.u32 %v1583, 7
      %v1585 = vsub.s32 %v425, %v1584
      %v1586 = vrot.slane %v1561, %v1585
      %v1587 = vlaneseq
      %v1588 = vshrl.u32 %v1587, 7
      %v1589 = vsub.s32 %v425, %v1588
      %v1590 = vrot.slane %v1564, %v1589
      %v1591 = vlaneseq
      %v1592 = vshrl.u32 %v1591, 7
      %v1593 = vsub.s32 %v425, %v1592
      %v1594 = vrot.slane %v1567, %v1593
      %v1595 = vlaneseq
      %v1596 = vshrl.u32 %v1595, 7
      %v1597 = vsub.s32 %v425, %v1596
      %v1598 = vrot.slane %v1570, %v1597
      %v1599 = vlaneseq
      %v1600 = vshrl.u32 %v1599, 7
      %v1601 = vsub.s32 %v425, %v1600
      %v1602 = vrot.slane %v1573, %v1601
      %v1603 = vlaneseq
      %v1604 = vshrl.u32 %v1603, 7
      %v1605 = vsub.s32 %v425, %v1604
      %v1606 = vrot.slane %v1576, %v1605
      %v1607 = vlaneseq
      %v1608 = vshrl.u32 %v1607, 7
      %v1609 = vsub.s32 %v425, %v1608
      %v1610 = vrot.slane %v1579, %v1609
      %v1611 = vlaneseq
      %v1612 = vshrl.u32 %v1611, 7
      %v1613 = vsub.s32 %v425, %v1612
      %v1614 = vrot.slane %v1582, %v1613
      %v1615 = vsel %vm458, %v1590, %v1586
      %v1616 = vsel %vm460, %v1594, %v1615
      %v1617 = vsel %vm462, %v1598, %v1616
      %v1618 = vsel %vm464, %v1602, %v1617
      %v1619 = vsel %vm466, %v1606, %v1618
      %v1620 = vsel %vm468, %v1610, %v1619
      %v1621 = vsel %vm470, %v1614, %v1620
      %v1622 = vpack.c.b16 %v1621, %v1621
      %1623 = vrot.lane.b32.xlu0 %v675, 56
      %v1624 = vpop.permute.xlu0 %1623
      %v1626 = vsel %vm473, %v1622, 0
      %v1629 = vsel %vm762, %v1624, 0
      %1631 = vmatprep.subr.bf16.mxu0 0
      %1632 = vmatpush1.bf16.msra.mxu0 0
      %1633 = vmatprep.subr.bf16.mxu0 0
      %1634 = vmatpush1.bf16.msra.mxu0 0
      %1635 = vmatprep.subr.bf16.mxu0 0
      %1636 = vmatpush1.bf16.msra.mxu0 0
      %1637 = vmatprep.subr.bf16.mxu0 0
      %1638 = vmatpush1.bf16.msra.mxu0 0
      %1639 = vmatprep.subr.bf16.mxu0 0
      %1640 = vmatpush1.bf16.msra.mxu0 0
      %1641 = vmatprep.subr.bf16.mxu0 0
      %1642 = vmatpush1.bf16.msra.mxu0 0
      %1643 = vmatprep.subr.bf16.mxu0 0
      %1644 = vmatpush1.bf16.msra.mxu0 0
      %1645 = vmatprep.subr.bf16.mxu0 0
      %1646 = vmatpush1.bf16.msra.mxu0 %v1629
      %1647 = vmatprep.subr.bf16.mxu0 0
      %1648 = vmatpush2.bf16.msra.mxu0 0
      %1649 = vmatprep.subr.bf16.mxu0 0
      %1650 = vmatpush2.bf16.msra.mxu0 0
      %1651 = vmatprep.subr.bf16.mxu0 0
      %1652 = vmatpush2.bf16.msra.mxu0 0
      %1653 = vmatprep.subr.bf16.mxu0 0
      %1654 = vmatpush2.bf16.msra.mxu0 0
      %1655 = vmatprep.subr.bf16.mxu0 0
      %1656 = vmatpush2.bf16.msra.mxu0 0
      %1657 = vmatprep.subr.bf16.mxu0 0
      %1658 = vmatpush2.bf16.msra.mxu0 0
      %1659 = vmatprep.subr.bf16.mxu0 0
      %1660 = vmatpush2.bf16.msra.mxu0 0
      %1661 = vmatprep.subr.bf16.mxu0 0
      %1662 = vmatpush2.bf16.msra.mxu0 0
      %1663 = vmatprep.mubr.bf16.mxu0 0
      %1664 = vmatmul.mubr.bf16.gmra.mxu0 %v1626
      %v1665 = vpop.f32.mrf.mxu0
      %v1666 = vadd.f32 0.0, %v1665
      %v1667 = vpop.f32.mrf.mxu0
      %v1668 = vpop.f32.mrf.mxu0
      %v1669 = vpop.f32.mrf.mxu0
      %1670 = vdwg.mxu0
      %1672 = vrot.lane.b32.xlu0 %v1666, 8
      %v1673 = vpop.permute.xlu0 %1672
      %vm1675 = vcmask 97344
      %1676 = vst.msk [vmem:[#allocation2] sm:$0xff] %vm1675, %v1673
      %1677 = vrot.lane.b32.xlu0 %v383, 116
      %v1678 = vpop.permute.xlu0 %1677
      %1679 = vrot.lane.b32.xlu0 %v384, 116
      %v1680 = vpop.permute.xlu0 %1679
      %1681 = vrot.lane.b32.xlu0 %v385, 116
      %v1682 = vpop.permute.xlu0 %1681
      %1683 = vrot.lane.b32.xlu0 %v386, 116
      %v1684 = vpop.permute.xlu0 %1683
      %1685 = vrot.lane.b32.xlu0 %v387, 116
      %v1686 = vpop.permute.xlu0 %1685
      %1687 = vrot.lane.b32.xlu0 %v388, 116
      %v1688 = vpop.permute.xlu0 %1687
      %1689 = vrot.lane.b32.xlu0 %v389, 116
      %v1690 = vpop.permute.xlu0 %1689
      %1691 = vrot.lane.b32.xlu0 %v390, 116
      %v1692 = vpop.permute.xlu0 %1691
      %v1701 = vsel %vm391, %v1678, 0.0
      %1702 = vadd.xlane.f32.xlu0 %v1701
      %v1703 = vpop.xlane.xlu0 %1702
      %v1704 = vsel %vm391, %v1680, 0.0
      %1705 = vadd.xlane.f32.xlu0 %v1704
      %v1706 = vpop.xlane.xlu0 %1705
      %v1707 = vsel %vm391, %v1682, 0.0
      %1708 = vadd.xlane.f32.xlu0 %v1707
      %v1709 = vpop.xlane.xlu0 %1708
      %v1710 = vsel %vm391, %v1684, 0.0
      %1711 = vadd.xlane.f32.xlu0 %v1710
      %v1712 = vpop.xlane.xlu0 %1711
      %v1713 = vsel %vm391, %v1686, 0.0
      %1714 = vadd.xlane.f32.xlu0 %v1713
      %v1715 = vpop.xlane.xlu0 %1714
      %v1716 = vsel %vm391, %v1688, 0.0
      %1717 = vadd.xlane.f32.xlu0 %v1716
      %v1718 = vpop.xlane.xlu0 %1717
      %v1719 = vsel %vm391, %v1690, 0.0
      %1720 = vadd.xlane.f32.xlu0 %v1719
      %v1721 = vpop.xlane.xlu0 %1720
      %v1722 = vsel %vm391, %v1692, 0.0
      %1723 = vadd.xlane.f32.xlu0 %v1722
      %v1724 = vpop.xlane.xlu0 %1723
      %v1733 = vlaneseq
      %v1734 = vshrl.u32 %v1733, 7
      %v1735 = vsub.s32 %v425, %v1734
      %v1736 = vrot.slane %v1703, %v1735
      %v1737 = vlaneseq
      %v1738 = vshrl.u32 %v1737, 7
      %v1739 = vsub.s32 %v425, %v1738
      %v1740 = vrot.slane %v1706, %v1739
      %v1741 = vlaneseq
      %v1742 = vshrl.u32 %v1741, 7
      %v1743 = vsub.s32 %v425, %v1742
      %v1744 = vrot.slane %v1709, %v1743
      %v1745 = vlaneseq
      %v1746 = vshrl.u32 %v1745, 7
      %v1747 = vsub.s32 %v425, %v1746
      %v1748 = vrot.slane %v1712, %v1747
      %v1749 = vlaneseq
      %v1750 = vshrl.u32 %v1749, 7
      %v1751 = vsub.s32 %v425, %v1750
      %v1752 = vrot.slane %v1715, %v1751
      %v1753 = vlaneseq
      %v1754 = vshrl.u32 %v1753, 7
      %v1755 = vsub.s32 %v425, %v1754
      %v1756 = vrot.slane %v1718, %v1755
      %v1757 = vlaneseq
      %v1758 = vshrl.u32 %v1757, 7
      %v1759 = vsub.s32 %v425, %v1758
      %v1760 = vrot.slane %v1721, %v1759
      %v1761 = vlaneseq
      %v1762 = vshrl.u32 %v1761, 7
      %v1763 = vsub.s32 %v425, %v1762
      %v1764 = vrot.slane %v1724, %v1763
      %v1765 = vsel %vm458, %v1740, %v1736
      %v1766 = vsel %vm460, %v1744, %v1765
      %v1767 = vsel %vm462, %v1748, %v1766
      %v1768 = vsel %vm464, %v1752, %v1767
      %v1769 = vsel %vm466, %v1756, %v1768
      %v1770 = vsel %vm468, %v1760, %v1769
      %v1771 = vsel %vm470, %v1764, %v1770
      %v1773 = vsel %vm473, %v1771, -inf
      %1774 = vmax.xlane.f32.xlu0 %v1773
      %v1775 = vpop.xlane.xlu0 %1774
      %v1777 = vlaneseq
      %v1778 = vshrl.u32 %v1777, 7
      %v1779 = vsub.s32 0, %v1778
      %v1780 = vrot.slane %v1775, %v1779
      %v1781 = vlaneseq
      %v1782 = vshrl.u32 %v1781, 7
      %v1783 = vsub.s32 1, %v1782
      %v1784 = vrot.slane %v1775, %v1783
      %v1785 = vlaneseq
      %v1786 = vshrl.u32 %v1785, 7
      %v1787 = vsub.s32 2, %v1786
      %v1788 = vrot.slane %v1775, %v1787
      %v1789 = vlaneseq
      %v1790 = vshrl.u32 %v1789, 7
      %v1791 = vsub.s32 3, %v1790
      %v1792 = vrot.slane %v1775, %v1791
      %v1793 = vlaneseq
      %v1794 = vshrl.u32 %v1793, 7
      %v1795 = vsub.s32 4, %v1794
      %v1796 = vrot.slane %v1775, %v1795
      %v1797 = vlaneseq
      %v1798 = vshrl.u32 %v1797, 7
      %v1799 = vsub.s32 5, %v1798
      %v1800 = vrot.slane %v1775, %v1799
      %v1801 = vlaneseq
      %v1802 = vshrl.u32 %v1801, 7
      %v1803 = vsub.s32 6, %v1802
      %v1804 = vrot.slane %v1775, %v1803
      %v1805 = vlaneseq
      %v1806 = vshrl.u32 %v1805, 7
      %v1807 = vsub.s32 7, %v1806
      %v1808 = vrot.slane %v1775, %v1807
      %v1817 = vsub.f32 %v1703, %v1780
      %v1818 = vsub.f32 %v1706, %v1784
      %v1819 = vsub.f32 %v1709, %v1788
      %v1820 = vsub.f32 %v1712, %v1792
      %v1821 = vsub.f32 %v1715, %v1796
      %v1822 = vsub.f32 %v1718, %v1800
      %v1823 = vsub.f32 %v1721, %v1804
      %v1824 = vsub.f32 %v1724, %v1808
      %v1825 = vmul.f32 %v1817, 1.442695
      %v1826 = vpow.pop %v1825
      %v1827 = vmul.f32 %v1818, 1.442695
      %v1828 = vpow.pop %v1827
      %v1829 = vmul.f32 %v1819, 1.442695
      %v1830 = vpow.pop %v1829
      %v1831 = vmul.f32 %v1820, 1.442695
      %v1832 = vpow.pop %v1831
      %v1833 = vmul.f32 %v1821, 1.442695
      %v1834 = vpow.pop %v1833
      %v1835 = vmul.f32 %v1822, 1.442695
      %v1836 = vpow.pop %v1835
      %v1837 = vmul.f32 %v1823, 1.442695
      %v1838 = vpow.pop %v1837
      %v1839 = vmul.f32 %v1824, 1.442695
      %v1840 = vpow.pop %v1839
      %1849 = vset.pattern.permute.xlu0 0
      %1850 = vperm.xlu0 %1849, %v1826
      %v1851 = vpop.permute.xlu0 %1850
      %1852 = vset.pattern.permute.xlu0 0
      %1853 = vperm.xlu0 %1852, %v1828
      %v1854 = vpop.permute.xlu0 %1853
      %1855 = vset.pattern.permute.xlu0 0
      %1856 = vperm.xlu0 %1855, %v1830
      %v1857 = vpop.permute.xlu0 %1856
      %1858 = vset.pattern.permute.xlu0 0
      %1859 = vperm.xlu0 %1858, %v1832
      %v1860 = vpop.permute.xlu0 %1859
      %1861 = vset.pattern.permute.xlu0 0
      %1862 = vperm.xlu0 %1861, %v1834
      %v1863 = vpop.permute.xlu0 %1862
      %1864 = vset.pattern.permute.xlu0 0
      %1865 = vperm.xlu0 %1864, %v1836
      %v1866 = vpop.permute.xlu0 %1865
      %1867 = vset.pattern.permute.xlu0 0
      %1868 = vperm.xlu0 %1867, %v1838
      %v1869 = vpop.permute.xlu0 %1868
      %1870 = vset.pattern.permute.xlu0 0
      %1871 = vperm.xlu0 %1870, %v1840
      %v1872 = vpop.permute.xlu0 %1871
      %v1873 = vlaneseq
      %v1874 = vshrl.u32 %v1873, 7
      %v1875 = vsub.s32 %v425, %v1874
      %v1876 = vrot.slane %v1851, %v1875
      %v1877 = vlaneseq
      %v1878 = vshrl.u32 %v1877, 7
      %v1879 = vsub.s32 %v425, %v1878
      %v1880 = vrot.slane %v1854, %v1879
      %v1881 = vlaneseq
      %v1882 = vshrl.u32 %v1881, 7
      %v1883 = vsub.s32 %v425, %v1882
      %v1884 = vrot.slane %v1857, %v1883
      %v1885 = vlaneseq
      %v1886 = vshrl.u32 %v1885, 7
      %v1887 = vsub.s32 %v425, %v1886
      %v1888 = vrot.slane %v1860, %v1887
      %v1889 = vlaneseq
      %v1890 = vshrl.u32 %v1889, 7
      %v1891 = vsub.s32 %v425, %v1890
      %v1892 = vrot.slane %v1863, %v1891
      %v1893 = vlaneseq
      %v1894 = vshrl.u32 %v1893, 7
      %v1895 = vsub.s32 %v425, %v1894
      %v1896 = vrot.slane %v1866, %v1895
      %v1897 = vlaneseq
      %v1898 = vshrl.u32 %v1897, 7
      %v1899 = vsub.s32 %v425, %v1898
      %v1900 = vrot.slane %v1869, %v1899
      %v1901 = vlaneseq
      %v1902 = vshrl.u32 %v1901, 7
      %v1903 = vsub.s32 %v425, %v1902
      %v1904 = vrot.slane %v1872, %v1903
      %v1905 = vsel %vm458, %v1880, %v1876
      %v1906 = vsel %vm460, %v1884, %v1905
      %v1907 = vsel %vm462, %v1888, %v1906
      %v1908 = vsel %vm464, %v1892, %v1907
      %v1909 = vsel %vm466, %v1896, %v1908
      %v1910 = vsel %vm468, %v1900, %v1909
      %v1911 = vsel %vm470, %v1904, %v1910
      %v1913 = vsel %vm473, %v1911, 0.0
      %1914 = vadd.xlane.f32.xlu0 %v1913
      %v1915 = vpop.xlane.xlu0 %1914
      %v1916 = vrcp.pop %v1915
      %v1918 = vlaneseq
      %v1919 = vshrl.u32 %v1918, 7
      %v1920 = vsub.s32 0, %v1919
      %v1921 = vrot.slane %v1916, %v1920
      %v1922 = vlaneseq
      %v1923 = vshrl.u32 %v1922, 7
      %v1924 = vsub.s32 1, %v1923
      %v1925 = vrot.slane %v1916, %v1924
      %v1926 = vlaneseq
      %v1927 = vshrl.u32 %v1926, 7
      %v1928 = vsub.s32 2, %v1927
      %v1929 = vrot.slane %v1916, %v1928
      %v1930 = vlaneseq
      %v1931 = vshrl.u32 %v1930, 7
      %v1932 = vsub.s32 3, %v1931
      %v1933 = vrot.slane %v1916, %v1932
      %v1934 = vlaneseq
      %v1935 = vshrl.u32 %v1934, 7
      %v1936 = vsub.s32 4, %v1935
      %v1937 = vrot.slane %v1916, %v1936
      %v1938 = vlaneseq
      %v1939 = vshrl.u32 %v1938, 7
      %v1940 = vsub.s32 5, %v1939
      %v1941 = vrot.slane %v1916, %v1940
      %v1942 = vlaneseq
      %v1943 = vshrl.u32 %v1942, 7
      %v1944 = vsub.s32 6, %v1943
      %v1945 = vrot.slane %v1916, %v1944
      %v1946 = vlaneseq
      %v1947 = vshrl.u32 %v1946, 7
      %v1948 = vsub.s32 7, %v1947
      %v1949 = vrot.slane %v1916, %v1948
      %v1958 = vmul.f32 %v1826, %v1921
      %v1959 = vmul.f32 %v1828, %v1925
      %v1960 = vmul.f32 %v1830, %v1929
      %v1961 = vmul.f32 %v1832, %v1933
      %v1962 = vmul.f32 %v1834, %v1937
      %v1963 = vmul.f32 %v1836, %v1941
      %v1964 = vmul.f32 %v1838, %v1945
      %v1965 = vmul.f32 %v1840, %v1949
      %v1966 = vpack.c.bf16 %v1958, %v1958
      %v1967 = vpack.c.bf16 %v1959, %v1959
      %v1968 = vpack.c.bf16 %v1960, %v1960
      %v1969 = vpack.c.bf16 %v1961, %v1961
      %v1970 = vpack.c.bf16 %v1962, %v1962
      %v1971 = vpack.c.bf16 %v1963, %v1963
      %v1972 = vpack.c.bf16 %v1964, %v1964
      %v1973 = vpack.c.bf16 %v1965, %v1965
      %v1982 = vunpack.c.l.b16 %v1966
      %v1983 = vunpack.c.l.b16 %v1967
      %v1984 = vunpack.c.l.b16 %v1968
      %v1985 = vunpack.c.l.b16 %v1969
      %v1986 = vunpack.c.l.b16 %v1970
      %v1987 = vunpack.c.l.b16 %v1971
      %v1988 = vunpack.c.l.b16 %v1972
      %v1989 = vunpack.c.l.b16 %v1973
      %1990 = vset.pattern.permute.xlu0 0
      %1991 = vperm.xlu0 %1990, %v1982
      %v1992 = vpop.permute.xlu0 %1991
      %1993 = vset.pattern.permute.xlu0 0
      %1994 = vperm.xlu0 %1993, %v1983
      %v1995 = vpop.permute.xlu0 %1994
      %1996 = vset.pattern.permute.xlu0 0
      %1997 = vperm.xlu0 %1996, %v1984
      %v1998 = vpop.permute.xlu0 %1997
      %1999 = vset.pattern.permute.xlu0 0
      %2000 = vperm.xlu0 %1999, %v1985
      %v2001 = vpop.permute.xlu0 %2000
      %2002 = vset.pattern.permute.xlu0 0
      %2003 = vperm.xlu0 %2002, %v1986
      %v2004 = vpop.permute.xlu0 %2003
      %2005 = vset.pattern.permute.xlu0 0
      %2006 = vperm.xlu0 %2005, %v1987
      %v2007 = vpop.permute.xlu0 %2006
      %2008 = vset.pattern.permute.xlu0 0
      %2009 = vperm.xlu0 %2008, %v1988
      %v2010 = vpop.permute.xlu0 %2009
      %2011 = vset.pattern.permute.xlu0 0
      %2012 = vperm.xlu0 %2011, %v1989
      %v2013 = vpop.permute.xlu0 %2012
      %v2014 = vlaneseq
      %v2015 = vshrl.u32 %v2014, 7
      %v2016 = vsub.s32 %v425, %v2015
      %v2017 = vrot.slane %v1992, %v2016
      %v2018 = vlaneseq
      %v2019 = vshrl.u32 %v2018, 7
      %v2020 = vsub.s32 %v425, %v2019
      %v2021 = vrot.slane %v1995, %v2020
      %v2022 = vlaneseq
      %v2023 = vshrl.u32 %v2022, 7
      %v2024 = vsub.s32 %v425, %v2023
      %v2025 = vrot.slane %v1998, %v2024
      %v2026 = vlaneseq
      %v2027 = vshrl.u32 %v2026, 7
      %v2028 = vsub.s32 %v425, %v2027
      %v2029 = vrot.slane %v2001, %v2028
      %v2030 = vlaneseq
      %v2031 = vshrl.u32 %v2030, 7
      %v2032 = vsub.s32 %v425, %v2031
      %v2033 = vrot.slane %v2004, %v2032
      %v2034 = vlaneseq
      %v2035 = vshrl.u32 %v2034, 7
      %v2036 = vsub.s32 %v425, %v2035
      %v2037 = vrot.slane %v2007, %v2036
      %v2038 = vlaneseq
      %v2039 = vshrl.u32 %v2038, 7
      %v2040 = vsub.s32 %v425, %v2039
      %v2041 = vrot.slane %v2010, %v2040
      %v2042 = vlaneseq
      %v2043 = vshrl.u32 %v2042, 7
      %v2044 = vsub.s32 %v425, %v2043
      %v2045 = vrot.slane %v2013, %v2044
      %v2046 = vsel %vm458, %v2021, %v2017
      %v2047 = vsel %vm460, %v2025, %v2046
      %v2048 = vsel %vm462, %v2029, %v2047
      %v2049 = vsel %vm464, %v2033, %v2048
      %v2050 = vsel %vm466, %v2037, %v2049
      %v2051 = vsel %vm468, %v2041, %v2050
      %v2052 = vsel %vm470, %v2045, %v2051
      %v2053 = vpack.c.b16 %v2052, %v2052
      %2054 = vrot.lane.b32.xlu0 %v675, 52
      %v2055 = vpop.permute.xlu0 %2054
      %v2057 = vsel %vm473, %v2053, 0
      %v2060 = vsel %vm762, %v2055, 0
      %2062 = vmatprep.subr.bf16.mxu0 0
      %2063 = vmatpush1.bf16.msra.mxu0 0
      %2064 = vmatprep.subr.bf16.mxu0 0
      %2065 = vmatpush1.bf16.msra.mxu0 0
      %2066 = vmatprep.subr.bf16.mxu0 0
      %2067 = vmatpush1.bf16.msra.mxu0 0
      %2068 = vmatprep.subr.bf16.mxu0 0
      %2069 = vmatpush1.bf16.msra.mxu0 0
      %2070 = vmatprep.subr.bf16.mxu0 0
      %2071 = vmatpush1.bf16.msra.mxu0 0
      %2072 = vmatprep.subr.bf16.mxu0 0
      %2073 = vmatpush1.bf16.msra.mxu0 0
      %2074 = vmatprep.subr.bf16.mxu0 0
      %2075 = vmatpush1.bf16.msra.mxu0 0
      %2076 = vmatprep.subr.bf16.mxu0 0
      %2077 = vmatpush1.bf16.msra.mxu0 %v2060
      %2078 = vmatprep.subr.bf16.mxu0 0
      %2079 = vmatpush2.bf16.msra.mxu0 0
      %2080 = vmatprep.subr.bf16.mxu0 0
      %2081 = vmatpush2.bf16.msra.mxu0 0
      %2082 = vmatprep.subr.bf16.mxu0 0
      %2083 = vmatpush2.bf16.msra.mxu0 0
      %2084 = vmatprep.subr.bf16.mxu0 0
      %2085 = vmatpush2.bf16.msra.mxu0 0
      %2086 = vmatprep.subr.bf16.mxu0 0
      %2087 = vmatpush2.bf16.msra.mxu0 0
      %2088 = vmatprep.subr.bf16.mxu0 0
      %2089 = vmatpush2.bf16.msra.mxu0 0
      %2090 = vmatprep.subr.bf16.mxu0 0
      %2091 = vmatpush2.bf16.msra.mxu0 0
      %2092 = vmatprep.subr.bf16.mxu0 0
      %2093 = vmatpush2.bf16.msra.mxu0 0
      %2094 = vmatprep.mubr.bf16.mxu0 0
      %2095 = vmatmul.mubr.bf16.gmra.mxu0 %v2057
      %v2096 = vpop.f32.mrf.mxu0
      %v2097 = vadd.f32 0.0, %v2096
      %v2098 = vpop.f32.mrf.mxu0
      %v2099 = vpop.f32.mrf.mxu0
      %v2100 = vpop.f32.mrf.mxu0
      %2101 = vdwg.mxu0
      %2103 = vrot.lane.b32.xlu0 %v2097, 12
      %v2104 = vpop.permute.xlu0 %2103
      %vm2106 = vcmask 130144
      %2107 = vst.msk [vmem:[#allocation2] sm:$0xff] %vm2106, %v2104
      %2108 = vrot.lane.b32.xlu0 %v383, 112
      %v2109 = vpop.permute.xlu0 %2108
      %2110 = vrot.lane.b32.xlu0 %v384, 112
      %v2111 = vpop.permute.xlu0 %2110
      %2112 = vrot.lane.b32.xlu0 %v385, 112
      %v2113 = vpop.permute.xlu0 %2112
      %2114 = vrot.lane.b32.xlu0 %v386, 112
      %v2115 = vpop.permute.xlu0 %2114
      %2116 = vrot.lane.b32.xlu0 %v387, 112
      %v2117 = vpop.permute.xlu0 %2116
      %2118 = vrot.lane.b32.xlu0 %v388, 112
      %v2119 = vpop.permute.xlu0 %2118
      %2120 = vrot.lane.b32.xlu0 %v389, 112
      %v2121 = vpop.permute.xlu0 %2120
      %2122 = vrot.lane.b32.xlu0 %v390, 112
      %v2123 = vpop.permute.xlu0 %2122
      %v2132 = vsel %vm391, %v2109, 0.0
      %2133 = vadd.xlane.f32.xlu0 %v2132
      %v2134 = vpop.xlane.xlu0 %2133
      %v2135 = vsel %vm391, %v2111, 0.0
      %2136 = vadd.xlane.f32.xlu0 %v2135
      %v2137 = vpop.xlane.xlu0 %2136
      %v2138 = vsel %vm391, %v2113, 0.0
      %2139 = vadd.xlane.f32.xlu0 %v2138
      %v2140 = vpop.xlane.xlu0 %2139
      %v2141 = vsel %vm391, %v2115, 0.0
      %2142 = vadd.xlane.f32.xlu0 %v2141
      %v2143 = vpop.xlane.xlu0 %2142
      %v2144 = vsel %vm391, %v2117, 0.0
      %2145 = vadd.xlane.f32.xlu0 %v2144
      %v2146 = vpop.xlane.xlu0 %2145
      %v2147 = vsel %vm391, %v2119, 0.0
      %2148 = vadd.xlane.f32.xlu0 %v2147
      %v2149 = vpop.xlane.xlu0 %2148
      %v2150 = vsel %vm391, %v2121, 0.0
      %2151 = vadd.xlane.f32.xlu0 %v2150
      %v2152 = vpop.xlane.xlu0 %2151
      %v2153 = vsel %vm391, %v2123, 0.0
      %2154 = vadd.xlane.f32.xlu0 %v2153
      %v2155 = vpop.xlane.xlu0 %2154
      %v2164 = vlaneseq
      %v2165 = vshrl.u32 %v2164, 7
      %v2166 = vsub.s32 %v425, %v2165
      %v2167 = vrot.slane %v2134, %v2166
      %v2168 = vlaneseq
      %v2169 = vshrl.u32 %v2168, 7
      %v2170 = vsub.s32 %v425, %v2169
      %v2171 = vrot.slane %v2137, %v2170
      %v2172 = vlaneseq
      %v2173 = vshrl.u32 %v2172, 7
      %v2174 = vsub.s32 %v425, %v2173
      %v2175 = vrot.slane %v2140, %v2174
      %v2176 = vlaneseq
      %v2177 = vshrl.u32 %v2176, 7
      %v2178 = vsub.s32 %v425, %v2177
      %v2179 = vrot.slane %v2143, %v2178
      %v2180 = vlaneseq
      %v2181 = vshrl.u32 %v2180, 7
      %v2182 = vsub.s32 %v425, %v2181
      %v2183 = vrot.slane %v2146, %v2182
      %v2184 = vlaneseq
      %v2185 = vshrl.u32 %v2184, 7
      %v2186 = vsub.s32 %v425, %v2185
      %v2187 = vrot.slane %v2149, %v2186
      %v2188 = vlaneseq
      %v2189 = vshrl.u32 %v2188, 7
      %v2190 = vsub.s32 %v425, %v2189
      %v2191 = vrot.slane %v2152, %v2190
      %v2192 = vlaneseq
      %v2193 = vshrl.u32 %v2192, 7
      %v2194 = vsub.s32 %v425, %v2193
      %v2195 = vrot.slane %v2155, %v2194
      %v2196 = vsel %vm458, %v2171, %v2167
      %v2197 = vsel %vm460, %v2175, %v2196
      %v2198 = vsel %vm462, %v2179, %v2197
      %v2199 = vsel %vm464, %v2183, %v2198
      %v2200 = vsel %vm466, %v2187, %v2199
      %v2201 = vsel %vm468, %v2191, %v2200
      %v2202 = vsel %vm470, %v2195, %v2201
      %v2204 = vsel %vm473, %v2202, -inf
      %2205 = vmax.xlane.f32.xlu0 %v2204
      %v2206 = vpop.xlane.xlu0 %2205
      %v2208 = vlaneseq
      %v2209 = vshrl.u32 %v2208, 7
      %v2210 = vsub.s32 0, %v2209
      %v2211 = vrot.slane %v2206, %v2210
      %v2212 = vlaneseq
      %v2213 = vshrl.u32 %v2212, 7
      %v2214 = vsub.s32 1, %v2213
      %v2215 = vrot.slane %v2206, %v2214
      %v2216 = vlaneseq
      %v2217 = vshrl.u32 %v2216, 7
      %v2218 = vsub.s32 2, %v2217
      %v2219 = vrot.slane %v2206, %v2218
      %v2220 = vlaneseq
      %v2221 = vshrl.u32 %v2220, 7
      %v2222 = vsub.s32 3, %v2221
      %v2223 = vrot.slane %v2206, %v2222
      %v2224 = vlaneseq
      %v2225 = vshrl.u32 %v2224, 7
      %v2226 = vsub.s32 4, %v2225
      %v2227 = vrot.slane %v2206, %v2226
      %v2228 = vlaneseq
      %v2229 = vshrl.u32 %v2228, 7
      %v2230 = vsub.s32 5, %v2229
      %v2231 = vrot.slane %v2206, %v2230
      %v2232 = vlaneseq
      %v2233 = vshrl.u32 %v2232, 7
      %v2234 = vsub.s32 6, %v2233
      %v2235 = vrot.slane %v2206, %v2234
      %v2236 = vlaneseq
      %v2237 = vshrl.u32 %v2236, 7
      %v2238 = vsub.s32 7, %v2237
      %v2239 = vrot.slane %v2206, %v2238
      %v2248 = vsub.f32 %v2134, %v2211
      %v2249 = vsub.f32 %v2137, %v2215
      %v2250 = vsub.f32 %v2140, %v2219
      %v2251 = vsub.f32 %v2143, %v2223
      %v2252 = vsub.f32 %v2146, %v2227
      %v2253 = vsub.f32 %v2149, %v2231
      %v2254 = vsub.f32 %v2152, %v2235
      %v2255 = vsub.f32 %v2155, %v2239
      %v2256 = vmul.f32 %v2248, 1.442695
      %v2257 = vpow.pop %v2256
      %v2258 = vmul.f32 %v2249, 1.442695
      %v2259 = vpow.pop %v2258
      %v2260 = vmul.f32 %v2250, 1.442695
      %v2261 = vpow.pop %v2260
      %v2262 = vmul.f32 %v2251, 1.442695
      %v2263 = vpow.pop %v2262
      %v2264 = vmul.f32 %v2252, 1.442695
      %v2265 = vpow.pop %v2264
      %v2266 = vmul.f32 %v2253, 1.442695
      %v2267 = vpow.pop %v2266
      %v2268 = vmul.f32 %v2254, 1.442695
      %v2269 = vpow.pop %v2268
      %v2270 = vmul.f32 %v2255, 1.442695
      %v2271 = vpow.pop %v2270
      %2280 = vset.pattern.permute.xlu0 0
      %2281 = vperm.xlu0 %2280, %v2257
      %v2282 = vpop.permute.xlu0 %2281
      %2283 = vset.pattern.permute.xlu0 0
      %2284 = vperm.xlu0 %2283, %v2259
      %v2285 = vpop.permute.xlu0 %2284
      %2286 = vset.pattern.permute.xlu0 0
      %2287 = vperm.xlu0 %2286, %v2261
      %v2288 = vpop.permute.xlu0 %2287
      %2289 = vset.pattern.permute.xlu0 0
      %2290 = vperm.xlu0 %2289, %v2263
      %v2291 = vpop.permute.xlu0 %2290
      %2292 = vset.pattern.permute.xlu0 0
      %2293 = vperm.xlu0 %2292, %v2265
      %v2294 = vpop.permute.xlu0 %2293
      %2295 = vset.pattern.permute.xlu0 0
      %2296 = vperm.xlu0 %2295, %v2267
      %v2297 = vpop.permute.xlu0 %2296
      %2298 = vset.pattern.permute.xlu0 0
      %2299 = vperm.xlu0 %2298, %v2269
      %v2300 = vpop.permute.xlu0 %2299
      %2301 = vset.pattern.permute.xlu0 0
      %2302 = vperm.xlu0 %2301, %v2271
      %v2303 = vpop.permute.xlu0 %2302
      %v2304 = vlaneseq
      %v2305 = vshrl.u32 %v2304, 7
      %v2306 = vsub.s32 %v425, %v2305
      %v2307 = vrot.slane %v2282, %v2306
      %v2308 = vlaneseq
      %v2309 = vshrl.u32 %v2308, 7
      %v2310 = vsub.s32 %v425, %v2309
      %v2311 = vrot.slane %v2285, %v2310
      %v2312 = vlaneseq
      %v2313 = vshrl.u32 %v2312, 7
      %v2314 = vsub.s32 %v425, %v2313
      %v2315 = vrot.slane %v2288, %v2314
      %v2316 = vlaneseq
      %v2317 = vshrl.u32 %v2316, 7
      %v2318 = vsub.s32 %v425, %v2317
      %v2319 = vrot.slane %v2291, %v2318
      %v2320 = vlaneseq
      %v2321 = vshrl.u32 %v2320, 7
      %v2322 = vsub.s32 %v425, %v2321
      %v2323 = vrot.slane %v2294, %v2322
      %v2324 = vlaneseq
      %v2325 = vshrl.u32 %v2324, 7
      %v2326 = vsub.s32 %v425, %v2325
      %v2327 = vrot.slane %v2297, %v2326
      %v2328 = vlaneseq
      %v2329 = vshrl.u32 %v2328, 7
      %v2330 = vsub.s32 %v425, %v2329
      %v2331 = vrot.slane %v2300, %v2330
      %v2332 = vlaneseq
      %v2333 = vshrl.u32 %v2332, 7
      %v2334 = vsub.s32 %v425, %v2333
      %v2335 = vrot.slane %v2303, %v2334
      %v2336 = vsel %vm458, %v2311, %v2307
      %v2337 = vsel %vm460, %v2315, %v2336
      %v2338 = vsel %vm462, %v2319, %v2337
      %v2339 = vsel %vm464, %v2323, %v2338
      %v2340 = vsel %vm466, %v2327, %v2339
      %v2341 = vsel %vm468, %v2331, %v2340
      %v2342 = vsel %vm470, %v2335, %v2341
      %v2344 = vsel %vm473, %v2342, 0.0
      %2345 = vadd.xlane.f32.xlu0 %v2344
      %v2346 = vpop.xlane.xlu0 %2345
      %v2347 = vrcp.pop %v2346
      %v2349 = vlaneseq
      %v2350 = vshrl.u32 %v2349, 7
      %v2351 = vsub.s32 0, %v2350
      %v2352 = vrot.slane %v2347, %v2351
      %v2353 = vlaneseq
      %v2354 = vshrl.u32 %v2353, 7
      %v2355 = vsub.s32 1, %v2354
      %v2356 = vrot.slane %v2347, %v2355
      %v2357 = vlaneseq
      %v2358 = vshrl.u32 %v2357, 7
      %v2359 = vsub.s32 2, %v2358
      %v2360 = vrot.slane %v2347, %v2359
      %v2361 = vlaneseq
      %v2362 = vshrl.u32 %v2361, 7
      %v2363 = vsub.s32 3, %v2362
      %v2364 = vrot.slane %v2347, %v2363
      %v2365 = vlaneseq
      %v2366 = vshrl.u32 %v2365, 7
      %v2367 = vsub.s32 4, %v2366
      %v2368 = vrot.slane %v2347, %v2367
      %v2369 = vlaneseq
      %v2370 = vshrl.u32 %v2369, 7
      %v2371 = vsub.s32 5, %v2370
      %v2372 = vrot.slane %v2347, %v2371
      %v2373 = vlaneseq
      %v2374 = vshrl.u32 %v2373, 7
      %v2375 = vsub.s32 6, %v2374
      %v2376 = vrot.slane %v2347, %v2375
      %v2377 = vlaneseq
      %v2378 = vshrl.u32 %v2377, 7
      %v2379 = vsub.s32 7, %v2378
      %v2380 = vrot.slane %v2347, %v2379
      %v2389 = vmul.f32 %v2257, %v2352
      %v2390 = vmul.f32 %v2259, %v2356
      %v2391 = vmul.f32 %v2261, %v2360
      %v2392 = vmul.f32 %v2263, %v2364
      %v2393 = vmul.f32 %v2265, %v2368
      %v2394 = vmul.f32 %v2267, %v2372
      %v2395 = vmul.f32 %v2269, %v2376
      %v2396 = vmul.f32 %v2271, %v2380
      %v2397 = vpack.c.bf16 %v2389, %v2389
      %v2398 = vpack.c.bf16 %v2390, %v2390
      %v2399 = vpack.c.bf16 %v2391, %v2391
      %v2400 = vpack.c.bf16 %v2392, %v2392
      %v2401 = vpack.c.bf16 %v2393, %v2393
      %v2402 = vpack.c.bf16 %v2394, %v2394
      %v2403 = vpack.c.bf16 %v2395, %v2395
      %v2404 = vpack.c.bf16 %v2396, %v2396
      %v2413 = vunpack.c.l.b16 %v2397
      %v2414 = vunpack.c.l.b16 %v2398
      %v2415 = vunpack.c.l.b16 %v2399
      %v2416 = vunpack.c.l.b16 %v2400
      %v2417 = vunpack.c.l.b16 %v2401
      %v2418 = vunpack.c.l.b16 %v2402
      %v2419 = vunpack.c.l.b16 %v2403
      %v2420 = vunpack.c.l.b16 %v2404
      %2421 = vset.pattern.permute.xlu0 0
      %2422 = vperm.xlu0 %2421, %v2413
      %v2423 = vpop.permute.xlu0 %2422
      %2424 = vset.pattern.permute.xlu0 0
      %2425 = vperm.xlu0 %2424, %v2414
      %v2426 = vpop.permute.xlu0 %2425
      %2427 = vset.pattern.permute.xlu0 0
      %2428 = vperm.xlu0 %2427, %v2415
      %v2429 = vpop.permute.xlu0 %2428
      %2430 = vset.pattern.permute.xlu0 0
      %2431 = vperm.xlu0 %2430, %v2416
      %v2432 = vpop.permute.xlu0 %2431
      %2433 = vset.pattern.permute.xlu0 0
      %2434 = vperm.xlu0 %2433, %v2417
      %v2435 = vpop.permute.xlu0 %2434
      %2436 = vset.pattern.permute.xlu0 0
      %2437 = vperm.xlu0 %2436, %v2418
      %v2438 = vpop.permute.xlu0 %2437
      %2439 = vset.pattern.permute.xlu0 0
      %2440 = vperm.xlu0 %2439, %v2419
      %v2441 = vpop.permute.xlu0 %2440
      %2442 = vset.pattern.permute.xlu0 0
      %2443 = vperm.xlu0 %2442, %v2420
      %v2444 = vpop.permute.xlu0 %2443
      %v2445 = vlaneseq
      %v2446 = vshrl.u32 %v2445, 7
      %v2447 = vsub.s32 %v425, %v2446
      %v2448 = vrot.slane %v2423, %v2447
      %v2449 = vlaneseq
      %v2450 = vshrl.u32 %v2449, 7
      %v2451 = vsub.s32 %v425, %v2450
      %v2452 = vrot.slane %v2426, %v2451
      %v2453 = vlaneseq
      %v2454 = vshrl.u32 %v2453, 7
      %v2455 = vsub.s32 %v425, %v2454
      %v2456 = vrot.slane %v2429, %v2455
      %v2457 = vlaneseq
      %v2458 = vshrl.u32 %v2457, 7
      %v2459 = vsub.s32 %v425, %v2458
      %v2460 = vrot.slane %v2432, %v2459
      %v2461 = vlaneseq
      %v2462 = vshrl.u32 %v2461, 7
      %v2463 = vsub.s32 %v425, %v2462
      %v2464 = vrot.slane %v2435, %v2463
      %v2465 = vlaneseq
      %v2466 = vshrl.u32 %v2465, 7
      %v2467 = vsub.s32 %v425, %v2466
      %v2468 = vrot.slane %v2438, %v2467
      %v2469 = vlaneseq
      %v2470 = vshrl.u32 %v2469, 7
      %v2471 = vsub.s32 %v425, %v2470
      %v2472 = vrot.slane %v2441, %v2471
      %v2473 = vlaneseq
      %v2474 = vshrl.u32 %v2473, 7
      %v2475 = vsub.s32 %v425, %v2474
      %v2476 = vrot.slane %v2444, %v2475
      %v2477 = vsel %vm458, %v2452, %v2448
      %v2478 = vsel %vm460, %v2456, %v2477
      %v2479 = vsel %vm462, %v2460, %v2478
      %v2480 = vsel %vm464, %v2464, %v2479
      %v2481 = vsel %vm466, %v2468, %v2480
      %v2482 = vsel %vm468, %v2472, %v2481
      %v2483 = vsel %vm470, %v2476, %v2482
      %v2484 = vpack.c.b16 %v2483, %v2483
      %2485 = vrot.lane.b32.xlu0 %v675, 48
      %v2486 = vpop.permute.xlu0 %2485
      %v2488 = vsel %vm473, %v2484, 0
      %v2491 = vsel %vm762, %v2486, 0
      %2493 = vmatprep.subr.bf16.mxu0 0
      %2494 = vmatpush1.bf16.msra.mxu0 0
      %2495 = vmatprep.subr.bf16.mxu0 0
      %2496 = vmatpush1.bf16.msra.mxu0 0
      %2497 = vmatprep.subr.bf16.mxu0 0
      %2498 = vmatpush1.bf16.msra.mxu0 0
      %2499 = vmatprep.subr.bf16.mxu0 0
      %2500 = vmatpush1.bf16.msra.mxu0 0
      %2501 = vmatprep.subr.bf16.mxu0 0
      %2502 = vmatpush1.bf16.msra.mxu0 0
      %2503 = vmatprep.subr.bf16.mxu0 0
      %2504 = vmatpush1.bf16.msra.mxu0 0
      %2505 = vmatprep.subr.bf16.mxu0 0
      %2506 = vmatpush1.bf16.msra.mxu0 0
      %2507 = vmatprep.subr.bf16.mxu0 0
      %2508 = vmatpush1.bf16.msra.mxu0 %v2491
      %2509 = vmatprep.subr.bf16.mxu0 0
      %2510 = vmatpush2.bf16.msra.mxu0 0
      %2511 = vmatprep.subr.bf16.mxu0 0
      %2512 = vmatpush2.bf16.msra.mxu0 0
      %2513 = vmatprep.subr.bf16.mxu0 0
      %2514 = vmatpush2.bf16.msra.mxu0 0
      %2515 = vmatprep.subr.bf16.mxu0 0
      %2516 = vmatpush2.bf16.msra.mxu0 0
      %2517 = vmatprep.subr.bf16.mxu0 0
      %2518 = vmatpush2.bf16.msra.mxu0 0
      %2519 = vmatprep.subr.bf16.mxu0 0
      %2520 = vmatpush2.bf16.msra.mxu0 0
      %2521 = vmatprep.subr.bf16.mxu0 0
      %2522 = vmatpush2.bf16.msra.mxu0 0
      %2523 = vmatprep.subr.bf16.mxu0 0
      %2524 = vmatpush2.bf16.msra.mxu0 0
      %2525 = vmatprep.mubr.bf16.mxu0 0
      %2526 = vmatmul.mubr.bf16.gmra.mxu0 %v2488
      %v2527 = vpop.f32.mrf.mxu0
      %v2528 = vadd.f32 0.0, %v2527
      %v2529 = vpop.f32.mrf.mxu0
      %v2530 = vpop.f32.mrf.mxu0
      %v2531 = vpop.f32.mrf.mxu0
      %2532 = vdwg.mxu0
      %2534 = vrot.lane.b32.xlu0 %v2528, 16
      %v2535 = vpop.permute.xlu0 %2534
      %vm2537 = vcmask 162944
      %2538 = vst.msk [vmem:[#allocation2] sm:$0xff] %vm2537, %v2535
      %2539 = vrot.lane.b32.xlu0 %v383, 108
      %v2540 = vpop.permute.xlu0 %2539
      %2541 = vrot.lane.b32.xlu0 %v384, 108
      %v2542 = vpop.permute.xlu0 %2541
      %2543 = vrot.lane.b32.xlu0 %v385, 108
      %v2544 = vpop.permute.xlu0 %2543
      %2545 = vrot.lane.b32.xlu0 %v386, 108
      %v2546 = vpop.permute.xlu0 %2545
      %2547 = vrot.lane.b32.xlu0 %v387, 108
      %v2548 = vpop.permute.xlu0 %2547
      %2549 = vrot.lane.b32.xlu0 %v388, 108
      %v2550 = vpop.permute.xlu0 %2549
      %2551 = vrot.lane.b32.xlu0 %v389, 108
      %v2552 = vpop.permute.xlu0 %2551
      %2553 = vrot.lane.b32.xlu0 %v390, 108
      %v2554 = vpop.permute.xlu0 %2553
      %v2563 = vsel %vm391, %v2540, 0.0
      %2564 = vadd.xlane.f32.xlu0 %v2563
      %v2565 = vpop.xlane.xlu0 %2564
      %v2566 = vsel %vm391, %v2542, 0.0
      %2567 = vadd.xlane.f32.xlu0 %v2566
      %v2568 = vpop.xlane.xlu0 %2567
      %v2569 = vsel %vm391, %v2544, 0.0
      %2570 = vadd.xlane.f32.xlu0 %v2569
      %v2571 = vpop.xlane.xlu0 %2570
      %v2572 = vsel %vm391, %v2546, 0.0
      %2573 = vadd.xlane.f32.xlu0 %v2572
      %v2574 = vpop.xlane.xlu0 %2573
      %v2575 = vsel %vm391, %v2548, 0.0
      %2576 = vadd.xlane.f32.xlu0 %v2575
      %v2577 = vpop.xlane.xlu0 %2576
      %v2578 = vsel %vm391, %v2550, 0.0
      %2579 = vadd.xlane.f32.xlu0 %v2578
      %v2580 = vpop.xlane.xlu0 %2579
      %v2581 = vsel %vm391, %v2552, 0.0
      %2582 = vadd.xlane.f32.xlu0 %v2581
      %v2583 = vpop.xlane.xlu0 %2582
      %v2584 = vsel %vm391, %v2554, 0.0
      %2585 = vadd.xlane.f32.xlu0 %v2584
      %v2586 = vpop.xlane.xlu0 %2585
      %v2595 = vlaneseq
      %v2596 = vshrl.u32 %v2595, 7
      %v2597 = vsub.s32 %v425, %v2596
      %v2598 = vrot.slane %v2565, %v2597
      %v2599 = vlaneseq
      %v2600 = vshrl.u32 %v2599, 7
      %v2601 = vsub.s32 %v425, %v2600
      %v2602 = vrot.slane %v2568, %v2601
      %v2603 = vlaneseq
      %v2604 = vshrl.u32 %v2603, 7
      %v2605 = vsub.s32 %v425, %v2604
      %v2606 = vrot.slane %v2571, %v2605
      %v2607 = vlaneseq
      %v2608 = vshrl.u32 %v2607, 7
      %v2609 = vsub.s32 %v425, %v2608
      %v2610 = vrot.slane %v2574, %v2609
      %v2611 = vlaneseq
      %v2612 = vshrl.u32 %v2611, 7
      %v2613 = vsub.s32 %v425, %v2612
      %v2614 = vrot.slane %v2577, %v2613
      %v2615 = vlaneseq
      %v2616 = vshrl.u32 %v2615, 7
      %v2617 = vsub.s32 %v425, %v2616
      %v2618 = vrot.slane %v2580, %v2617
      %v2619 = vlaneseq
      %v2620 = vshrl.u32 %v2619, 7
      %v2621 = vsub.s32 %v425, %v2620
      %v2622 = vrot.slane %v2583, %v2621
      %v2623 = vlaneseq
      %v2624 = vshrl.u32 %v2623, 7
      %v2625 = vsub.s32 %v425, %v2624
      %v2626 = vrot.slane %v2586, %v2625
      %v2627 = vsel %vm458, %v2602, %v2598
      %v2628 = vsel %vm460, %v2606, %v2627
      %v2629 = vsel %vm462, %v2610, %v2628
      %v2630 = vsel %vm464, %v2614, %v2629
      %v2631 = vsel %vm466, %v2618, %v2630
      %v2632 = vsel %vm468, %v2622, %v2631
      %v2633 = vsel %vm470, %v2626, %v2632
      %v2635 = vsel %vm473, %v2633, -inf
      %2636 = vmax.xlane.f32.xlu0 %v2635
      %v2637 = vpop.xlane.xlu0 %2636
      %v2639 = vlaneseq
      %v2640 = vshrl.u32 %v2639, 7
      %v2641 = vsub.s32 0, %v2640
      %v2642 = vrot.slane %v2637, %v2641
      %v2643 = vlaneseq
      %v2644 = vshrl.u32 %v2643, 7
      %v2645 = vsub.s32 1, %v2644
      %v2646 = vrot.slane %v2637, %v2645
      %v2647 = vlaneseq
      %v2648 = vshrl.u32 %v2647, 7
      %v2649 = vsub.s32 2, %v2648
      %v2650 = vrot.slane %v2637, %v2649
      %v2651 = vlaneseq
      %v2652 = vshrl.u32 %v2651, 7
      %v2653 = vsub.s32 3, %v2652
      %v2654 = vrot.slane %v2637, %v2653
      %v2655 = vlaneseq
      %v2656 = vshrl.u32 %v2655, 7
      %v2657 = vsub.s32 4, %v2656
      %v2658 = vrot.slane %v2637, %v2657
      %v2659 = vlaneseq
      %v2660 = vshrl.u32 %v2659, 7
      %v2661 = vsub.s32 5, %v2660
      %v2662 = vrot.slane %v2637, %v2661
      %v2663 = vlaneseq
      %v2664 = vshrl.u32 %v2663, 7
      %v2665 = vsub.s32 6, %v2664
      %v2666 = vrot.slane %v2637, %v2665
      %v2667 = vlaneseq
      %v2668 = vshrl.u32 %v2667, 7
      %v2669 = vsub.s32 7, %v2668
      %v2670 = vrot.slane %v2637, %v2669
      %v2679 = vsub.f32 %v2565, %v2642
      %v2680 = vsub.f32 %v2568, %v2646
      %v2681 = vsub.f32 %v2571, %v2650
      %v2682 = vsub.f32 %v2574, %v2654
      %v2683 = vsub.f32 %v2577, %v2658
      %v2684 = vsub.f32 %v2580, %v2662
      %v2685 = vsub.f32 %v2583, %v2666
      %v2686 = vsub.f32 %v2586, %v2670
      %v2687 = vmul.f32 %v2679, 1.442695
      %v2688 = vpow.pop %v2687
      %v2689 = vmul.f32 %v2680, 1.442695
      %v2690 = vpow.pop %v2689
      %v2691 = vmul.f32 %v2681, 1.442695
      %v2692 = vpow.pop %v2691
      %v2693 = vmul.f32 %v2682, 1.442695
      %v2694 = vpow.pop %v2693
      %v2695 = vmul.f32 %v2683, 1.442695
      %v2696 = vpow.pop %v2695
      %v2697 = vmul.f32 %v2684, 1.442695
      %v2698 = vpow.pop %v2697
      %v2699 = vmul.f32 %v2685, 1.442695
      %v2700 = vpow.pop %v2699
      %v2701 = vmul.f32 %v2686, 1.442695
      %v2702 = vpow.pop %v2701
      %2711 = vset.pattern.permute.xlu0 0
      %2712 = vperm.xlu0 %2711, %v2688
      %v2713 = vpop.permute.xlu0 %2712
      %2714 = vset.pattern.permute.xlu0 0
      %2715 = vperm.xlu0 %2714, %v2690
      %v2716 = vpop.permute.xlu0 %2715
      %2717 = vset.pattern.permute.xlu0 0
      %2718 = vperm.xlu0 %2717, %v2692
      %v2719 = vpop.permute.xlu0 %2718
      %2720 = vset.pattern.permute.xlu0 0
      %2721 = vperm.xlu0 %2720, %v2694
      %v2722 = vpop.permute.xlu0 %2721
      %2723 = vset.pattern.permute.xlu0 0
      %2724 = vperm.xlu0 %2723, %v2696
      %v2725 = vpop.permute.xlu0 %2724
      %2726 = vset.pattern.permute.xlu0 0
      %2727 = vperm.xlu0 %2726, %v2698
      %v2728 = vpop.permute.xlu0 %2727
      %2729 = vset.pattern.permute.xlu0 0
      %2730 = vperm.xlu0 %2729, %v2700
      %v2731 = vpop.permute.xlu0 %2730
      %2732 = vset.pattern.permute.xlu0 0
      %2733 = vperm.xlu0 %2732, %v2702
      %v2734 = vpop.permute.xlu0 %2733
      %v2735 = vlaneseq
      %v2736 = vshrl.u32 %v2735, 7
      %v2737 = vsub.s32 %v425, %v2736
      %v2738 = vrot.slane %v2713, %v2737
      %v2739 = vlaneseq
      %v2740 = vshrl.u32 %v2739, 7
      %v2741 = vsub.s32 %v425, %v2740
      %v2742 = vrot.slane %v2716, %v2741
      %v2743 = vlaneseq
      %v2744 = vshrl.u32 %v2743, 7
      %v2745 = vsub.s32 %v425, %v2744
      %v2746 = vrot.slane %v2719, %v2745
      %v2747 = vlaneseq
      %v2748 = vshrl.u32 %v2747, 7
      %v2749 = vsub.s32 %v425, %v2748
      %v2750 = vrot.slane %v2722, %v2749
      %v2751 = vlaneseq
      %v2752 = vshrl.u32 %v2751, 7
      %v2753 = vsub.s32 %v425, %v2752
      %v2754 = vrot.slane %v2725, %v2753
      %v2755 = vlaneseq
      %v2756 = vshrl.u32 %v2755, 7
      %v2757 = vsub.s32 %v425, %v2756
      %v2758 = vrot.slane %v2728, %v2757
      %v2759 = vlaneseq
      %v2760 = vshrl.u32 %v2759, 7
      %v2761 = vsub.s32 %v425, %v2760
      %v2762 = vrot.slane %v2731, %v2761
      %v2763 = vlaneseq
      %v2764 = vshrl.u32 %v2763, 7
      %v2765 = vsub.s32 %v425, %v2764
      %v2766 = vrot.slane %v2734, %v2765
      %v2767 = vsel %vm458, %v2742, %v2738
      %v2768 = vsel %vm460, %v2746, %v2767
      %v2769 = vsel %vm462, %v2750, %v2768
      %v2770 = vsel %vm464, %v2754, %v2769
      %v2771 = vsel %vm466, %v2758, %v2770
      %v2772 = vsel %vm468, %v2762, %v2771
      %v2773 = vsel %vm470, %v2766, %v2772
      %v2775 = vsel %vm473, %v2773, 0.0
      %2776 = vadd.xlane.f32.xlu0 %v2775
      %v2777 = vpop.xlane.xlu0 %2776
      %v2778 = vrcp.pop %v2777
      %v2780 = vlaneseq
      %v2781 = vshrl.u32 %v2780, 7
      %v2782 = vsub.s32 0, %v2781
      %v2783 = vrot.slane %v2778, %v2782
      %v2784 = vlaneseq
      %v2785 = vshrl.u32 %v2784, 7
      %v2786 = vsub.s32 1, %v2785
      %v2787 = vrot.slane %v2778, %v2786
      %v2788 = vlaneseq
      %v2789 = vshrl.u32 %v2788, 7
      %v2790 = vsub.s32 2, %v2789
      %v2791 = vrot.slane %v2778, %v2790
      %v2792 = vlaneseq
      %v2793 = vshrl.u32 %v2792, 7
      %v2794 = vsub.s32 3, %v2793
      %v2795 = vrot.slane %v2778, %v2794
      %v2796 = vlaneseq
      %v2797 = vshrl.u32 %v2796, 7
      %v2798 = vsub.s32 4, %v2797
      %v2799 = vrot.slane %v2778, %v2798
      %v2800 = vlaneseq
      %v2801 = vshrl.u32 %v2800, 7
      %v2802 = vsub.s32 5, %v2801
      %v2803 = vrot.slane %v2778, %v2802
      %v2804 = vlaneseq
      %v2805 = vshrl.u32 %v2804, 7
      %v2806 = vsub.s32 6, %v2805
      %v2807 = vrot.slane %v2778, %v2806
      %v2808 = vlaneseq
      %v2809 = vshrl.u32 %v2808, 7
      %v2810 = vsub.s32 7, %v2809
      %v2811 = vrot.slane %v2778, %v2810
      %v2820 = vmul.f32 %v2688, %v2783
      %v2821 = vmul.f32 %v2690, %v2787
      %v2822 = vmul.f32 %v2692, %v2791
      %v2823 = vmul.f32 %v2694, %v2795
      %v2824 = vmul.f32 %v2696, %v2799
      %v2825 = vmul.f32 %v2698, %v2803
      %v2826 = vmul.f32 %v2700, %v2807
      %v2827 = vmul.f32 %v2702, %v2811
      %v2828 = vpack.c.bf16 %v2820, %v2820
      %v2829 = vpack.c.bf16 %v2821, %v2821
      %v2830 = vpack.c.bf16 %v2822, %v2822
      %v2831 = vpack.c.bf16 %v2823, %v2823
      %v2832 = vpack.c.bf16 %v2824, %v2824
      %v2833 = vpack.c.bf16 %v2825, %v2825
      %v2834 = vpack.c.bf16 %v2826, %v2826
      %v2835 = vpack.c.bf16 %v2827, %v2827
      %v2844 = vunpack.c.l.b16 %v2828
      %v2845 = vunpack.c.l.b16 %v2829
      %v2846 = vunpack.c.l.b16 %v2830
      %v2847 = vunpack.c.l.b16 %v2831
      %v2848 = vunpack.c.l.b16 %v2832
      %v2849 = vunpack.c.l.b16 %v2833
      %v2850 = vunpack.c.l.b16 %v2834
      %v2851 = vunpack.c.l.b16 %v2835
      %2852 = vset.pattern.permute.xlu0 0
      %2853 = vperm.xlu0 %2852, %v2844
      %v2854 = vpop.permute.xlu0 %2853
      %2855 = vset.pattern.permute.xlu0 0
      %2856 = vperm.xlu0 %2855, %v2845
      %v2857 = vpop.permute.xlu0 %2856
      %2858 = vset.pattern.permute.xlu0 0
      %2859 = vperm.xlu0 %2858, %v2846
      %v2860 = vpop.permute.xlu0 %2859
      %2861 = vset.pattern.permute.xlu0 0
      %2862 = vperm.xlu0 %2861, %v2847
      %v2863 = vpop.permute.xlu0 %2862
      %2864 = vset.pattern.permute.xlu0 0
      %2865 = vperm.xlu0 %2864, %v2848
      %v2866 = vpop.permute.xlu0 %2865
      %2867 = vset.pattern.permute.xlu0 0
      %2868 = vperm.xlu0 %2867, %v2849
      %v2869 = vpop.permute.xlu0 %2868
      %2870 = vset.pattern.permute.xlu0 0
      %2871 = vperm.xlu0 %2870, %v2850
      %v2872 = vpop.permute.xlu0 %2871
      %2873 = vset.pattern.permute.xlu0 0
      %2874 = vperm.xlu0 %2873, %v2851
      %v2875 = vpop.permute.xlu0 %2874
      %v2876 = vlaneseq
      %v2877 = vshrl.u32 %v2876, 7
      %v2878 = vsub.s32 %v425, %v2877
      %v2879 = vrot.slane %v2854, %v2878
      %v2880 = vlaneseq
      %v2881 = vshrl.u32 %v2880, 7
      %v2882 = vsub.s32 %v425, %v2881
      %v2883 = vrot.slane %v2857, %v2882
      %v2884 = vlaneseq
      %v2885 = vshrl.u32 %v2884, 7
      %v2886 = vsub.s32 %v425, %v2885
      %v2887 = vrot.slane %v2860, %v2886
      %v2888 = vlaneseq
      %v2889 = vshrl.u32 %v2888, 7
      %v2890 = vsub.s32 %v425, %v2889
      %v2891 = vrot.slane %v2863, %v2890
      %v2892 = vlaneseq
      %v2893 = vshrl.u32 %v2892, 7
      %v2894 = vsub.s32 %v425, %v2893
      %v2895 = vrot.slane %v2866, %v2894
      %v2896 = vlaneseq
      %v2897 = vshrl.u32 %v2896, 7
      %v2898 = vsub.s32 %v425, %v2897
      %v2899 = vrot.slane %v2869, %v2898
      %v2900 = vlaneseq
      %v2901 = vshrl.u32 %v2900, 7
      %v2902 = vsub.s32 %v425, %v2901
      %v2903 = vrot.slane %v2872, %v2902
      %v2904 = vlaneseq
      %v2905 = vshrl.u32 %v2904, 7
      %v2906 = vsub.s32 %v425, %v2905
      %v2907 = vrot.slane %v2875, %v2906
      %v2908 = vsel %vm458, %v2883, %v2879
      %v2909 = vsel %vm460, %v2887, %v2908
      %v2910 = vsel %vm462, %v2891, %v2909
      %v2911 = vsel %vm464, %v2895, %v2910
      %v2912 = vsel %vm466, %v2899, %v2911
      %v2913 = vsel %vm468, %v2903, %v2912
      %v2914 = vsel %vm470, %v2907, %v2913
      %v2915 = vpack.c.b16 %v2914, %v2914
      %2916 = vrot.lane.b32.xlu0 %v675, 44
      %v2917 = vpop.permute.xlu0 %2916
      %v2919 = vsel %vm473, %v2915, 0
      %v2922 = vsel %vm762, %v2917, 0
      %2924 = vmatprep.subr.bf16.mxu0 0
      %2925 = vmatpush1.bf16.msra.mxu0 0
      %2926 = vmatprep.subr.bf16.mxu0 0
      %2927 = vmatpush1.bf16.msra.mxu0 0
      %2928 = vmatprep.subr.bf16.mxu0 0
      %2929 = vmatpush1.bf16.msra.mxu0 0
      %2930 = vmatprep.subr.bf16.mxu0 0
      %2931 = vmatpush1.bf16.msra.mxu0 0
      %2932 = vmatprep.subr.bf16.mxu0 0
      %2933 = vmatpush1.bf16.msra.mxu0 0
      %2934 = vmatprep.subr.bf16.mxu0 0
      %2935 = vmatpush1.bf16.msra.mxu0 0
      %2936 = vmatprep.subr.bf16.mxu0 0
      %2937 = vmatpush1.bf16.msra.mxu0 0
      %2938 = vmatprep.subr.bf16.mxu0 0
      %2939 = vmatpush1.bf16.msra.mxu0 %v2922
      %2940 = vmatprep.subr.bf16.mxu0 0
      %2941 = vmatpush2.bf16.msra.mxu0 0
      %2942 = vmatprep.subr.bf16.mxu0 0
      %2943 = vmatpush2.bf16.msra.mxu0 0
      %2944 = vmatprep.subr.bf16.mxu0 0
      %2945 = vmatpush2.bf16.msra.mxu0 0
      %2946 = vmatprep.subr.bf16.mxu0 0
      %2947 = vmatpush2.bf16.msra.mxu0 0
      %2948 = vmatprep.subr.bf16.mxu0 0
      %2949 = vmatpush2.bf16.msra.mxu0 0
      %2950 = vmatprep.subr.bf16.mxu0 0
      %2951 = vmatpush2.bf16.msra.mxu0 0
      %2952 = vmatprep.subr.bf16.mxu0 0
      %2953 = vmatpush2.bf16.msra.mxu0 0
      %2954 = vmatprep.subr.bf16.mxu0 0
      %2955 = vmatpush2.bf16.msra.mxu0 0
      %2956 = vmatprep.mubr.bf16.mxu0 0
      %2957 = vmatmul.mubr.bf16.gmra.mxu0 %v2919
      %v2958 = vpop.f32.mrf.mxu0
      %v2959 = vadd.f32 0.0, %v2958
      %v2960 = vpop.f32.mrf.mxu0
      %v2961 = vpop.f32.mrf.mxu0
      %v2962 = vpop.f32.mrf.mxu0
      %2963 = vdwg.mxu0
      %2965 = vrot.lane.b32.xlu0 %v2959, 20
      %v2966 = vpop.permute.xlu0 %2965
      %vm2968 = vcmask 195744
      %2969 = vst.msk [vmem:[#allocation2] sm:$0xff] %vm2968, %v2966
      %2970 = vrot.lane.b32.xlu0 %v383, 104
      %v2971 = vpop.permute.xlu0 %2970
      %2972 = vrot.lane.b32.xlu0 %v384, 104
      %v2973 = vpop.permute.xlu0 %2972
      %2974 = vrot.lane.b32.xlu0 %v385, 104
      %v2975 = vpop.permute.xlu0 %2974
      %2976 = vrot.lane.b32.xlu0 %v386, 104
      %v2977 = vpop.permute.xlu0 %2976
      %2978 = vrot.lane.b32.xlu0 %v387, 104
      %v2979 = vpop.permute.xlu0 %2978
      %2980 = vrot.lane.b32.xlu0 %v388, 104
      %v2981 = vpop.permute.xlu0 %2980
      %2982 = vrot.lane.b32.xlu0 %v389, 104
      %v2983 = vpop.permute.xlu0 %2982
      %2984 = vrot.lane.b32.xlu0 %v390, 104
      %v2985 = vpop.permute.xlu0 %2984
      %v2994 = vsel %vm391, %v2971, 0.0
      %2995 = vadd.xlane.f32.xlu0 %v2994
      %v2996 = vpop.xlane.xlu0 %2995
      %v2997 = vsel %vm391, %v2973, 0.0
      %2998 = vadd.xlane.f32.xlu0 %v2997
      %v2999 = vpop.xlane.xlu0 %2998
      %v3000 = vsel %vm391, %v2975, 0.0
      %3001 = vadd.xlane.f32.xlu0 %v3000
      %v3002 = vpop.xlane.xlu0 %3001
      %v3003 = vsel %vm391, %v2977, 0.0
      %3004 = vadd.xlane.f32.xlu0 %v3003
      %v3005 = vpop.xlane.xlu0 %3004
      %v3006 = vsel %vm391, %v2979, 0.0
      %3007 = vadd.xlane.f32.xlu0 %v3006
      %v3008 = vpop.xlane.xlu0 %3007
      %v3009 = vsel %vm391, %v2981, 0.0
      %3010 = vadd.xlane.f32.xlu0 %v3009
      %v3011 = vpop.xlane.xlu0 %3010
      %v3012 = vsel %vm391, %v2983, 0.0
      %3013 = vadd.xlane.f32.xlu0 %v3012
      %v3014 = vpop.xlane.xlu0 %3013
      %v3015 = vsel %vm391, %v2985, 0.0
      %3016 = vadd.xlane.f32.xlu0 %v3015
      %v3017 = vpop.xlane.xlu0 %3016
      %v3026 = vlaneseq
      %v3027 = vshrl.u32 %v3026, 7
      %v3028 = vsub.s32 %v425, %v3027
      %v3029 = vrot.slane %v2996, %v3028
      %v3030 = vlaneseq
      %v3031 = vshrl.u32 %v3030, 7
      %v3032 = vsub.s32 %v425, %v3031
      %v3033 = vrot.slane %v2999, %v3032
      %v3034 = vlaneseq
      %v3035 = vshrl.u32 %v3034, 7
      %v3036 = vsub.s32 %v425, %v3035
      %v3037 = vrot.slane %v3002, %v3036
      %v3038 = vlaneseq
      %v3039 = vshrl.u32 %v3038, 7
      %v3040 = vsub.s32 %v425, %v3039
      %v3041 = vrot.slane %v3005, %v3040
      %v3042 = vlaneseq
      %v3043 = vshrl.u32 %v3042, 7
      %v3044 = vsub.s32 %v425, %v3043
      %v3045 = vrot.slane %v3008, %v3044
      %v3046 = vlaneseq
      %v3047 = vshrl.u32 %v3046, 7
      %v3048 = vsub.s32 %v425, %v3047
      %v3049 = vrot.slane %v3011, %v3048
      %v3050 = vlaneseq
      %v3051 = vshrl.u32 %v3050, 7
      %v3052 = vsub.s32 %v425, %v3051
      %v3053 = vrot.slane %v3014, %v3052
      %v3054 = vlaneseq
      %v3055 = vshrl.u32 %v3054, 7
      %v3056 = vsub.s32 %v425, %v3055
      %v3057 = vrot.slane %v3017, %v3056
      %v3058 = vsel %vm458, %v3033, %v3029
      %v3059 = vsel %vm460, %v3037, %v3058
      %v3060 = vsel %vm462, %v3041, %v3059
      %v3061 = vsel %vm464, %v3045, %v3060
      %v3062 = vsel %vm466, %v3049, %v3061
      %v3063 = vsel %vm468, %v3053, %v3062
      %v3064 = vsel %vm470, %v3057, %v3063
      %v3066 = vsel %vm473, %v3064, -inf
      %3067 = vmax.xlane.f32.xlu0 %v3066
      %v3068 = vpop.xlane.xlu0 %3067
      %v3070 = vlaneseq
      %v3071 = vshrl.u32 %v3070, 7
      %v3072 = vsub.s32 0, %v3071
      %v3073 = vrot.slane %v3068, %v3072
      %v3074 = vlaneseq
      %v3075 = vshrl.u32 %v3074, 7
      %v3076 = vsub.s32 1, %v3075
      %v3077 = vrot.slane %v3068, %v3076
      %v3078 = vlaneseq
      %v3079 = vshrl.u32 %v3078, 7
      %v3080 = vsub.s32 2, %v3079
      %v3081 = vrot.slane %v3068, %v3080
      %v3082 = vlaneseq
      %v3083 = vshrl.u32 %v3082, 7
      %v3084 = vsub.s32 3, %v3083
      %v3085 = vrot.slane %v3068, %v3084
      %v3086 = vlaneseq
      %v3087 = vshrl.u32 %v3086, 7
      %v3088 = vsub.s32 4, %v3087
      %v3089 = vrot.slane %v3068, %v3088
      %v3090 = vlaneseq
      %v3091 = vshrl.u32 %v3090, 7
      %v3092 = vsub.s32 5, %v3091
      %v3093 = vrot.slane %v3068, %v3092
      %v3094 = vlaneseq
      %v3095 = vshrl.u32 %v3094, 7
      %v3096 = vsub.s32 6, %v3095
      %v3097 = vrot.slane %v3068, %v3096
      %v3098 = vlaneseq
      %v3099 = vshrl.u32 %v3098, 7
      %v3100 = vsub.s32 7, %v3099
      %v3101 = vrot.slane %v3068, %v3100
      %v3110 = vsub.f32 %v2996, %v3073
      %v3111 = vsub.f32 %v2999, %v3077
      %v3112 = vsub.f32 %v3002, %v3081
      %v3113 = vsub.f32 %v3005, %v3085
      %v3114 = vsub.f32 %v3008, %v3089
      %v3115 = vsub.f32 %v3011, %v3093
      %v3116 = vsub.f32 %v3014, %v3097
      %v3117 = vsub.f32 %v3017, %v3101
      %v3118 = vmul.f32 %v3110, 1.442695
      %v3119 = vpow.pop %v3118
      %v3120 = vmul.f32 %v3111, 1.442695
      %v3121 = vpow.pop %v3120
      %v3122 = vmul.f32 %v3112, 1.442695
      %v3123 = vpow.pop %v3122
      %v3124 = vmul.f32 %v3113, 1.442695
      %v3125 = vpow.pop %v3124
      %v3126 = vmul.f32 %v3114, 1.442695
      %v3127 = vpow.pop %v3126
      %v3128 = vmul.f32 %v3115, 1.442695
      %v3129 = vpow.pop %v3128
      %v3130 = vmul.f32 %v3116, 1.442695
      %v3131 = vpow.pop %v3130
      %v3132 = vmul.f32 %v3117, 1.442695
      %v3133 = vpow.pop %v3132
      %3142 = vset.pattern.permute.xlu0 0
      %3143 = vperm.xlu0 %3142, %v3119
      %v3144 = vpop.permute.xlu0 %3143
      %3145 = vset.pattern.permute.xlu0 0
      %3146 = vperm.xlu0 %3145, %v3121
      %v3147 = vpop.permute.xlu0 %3146
      %3148 = vset.pattern.permute.xlu0 0
      %3149 = vperm.xlu0 %3148, %v3123
      %v3150 = vpop.permute.xlu0 %3149
      %3151 = vset.pattern.permute.xlu0 0
      %3152 = vperm.xlu0 %3151, %v3125
      %v3153 = vpop.permute.xlu0 %3152
      %3154 = vset.pattern.permute.xlu0 0
      %3155 = vperm.xlu0 %3154, %v3127
      %v3156 = vpop.permute.xlu0 %3155
      %3157 = vset.pattern.permute.xlu0 0
      %3158 = vperm.xlu0 %3157, %v3129
      %v3159 = vpop.permute.xlu0 %3158
      %3160 = vset.pattern.permute.xlu0 0
      %3161 = vperm.xlu0 %3160, %v3131
      %v3162 = vpop.permute.xlu0 %3161
      %3163 = vset.pattern.permute.xlu0 0
      %3164 = vperm.xlu0 %3163, %v3133
      %v3165 = vpop.permute.xlu0 %3164
      %v3166 = vlaneseq
      %v3167 = vshrl.u32 %v3166, 7
      %v3168 = vsub.s32 %v425, %v3167
      %v3169 = vrot.slane %v3144, %v3168
      %v3170 = vlaneseq
      %v3171 = vshrl.u32 %v3170, 7
      %v3172 = vsub.s32 %v425, %v3171
      %v3173 = vrot.slane %v3147, %v3172
      %v3174 = vlaneseq
      %v3175 = vshrl.u32 %v3174, 7
      %v3176 = vsub.s32 %v425, %v3175
      %v3177 = vrot.slane %v3150, %v3176
      %v3178 = vlaneseq
      %v3179 = vshrl.u32 %v3178, 7
      %v3180 = vsub.s32 %v425, %v3179
      %v3181 = vrot.slane %v3153, %v3180
      %v3182 = vlaneseq
      %v3183 = vshrl.u32 %v3182, 7
      %v3184 = vsub.s32 %v425, %v3183
      %v3185 = vrot.slane %v3156, %v3184
      %v3186 = vlaneseq
      %v3187 = vshrl.u32 %v3186, 7
      %v3188 = vsub.s32 %v425, %v3187
      %v3189 = vrot.slane %v3159, %v3188
      %v3190 = vlaneseq
      %v3191 = vshrl.u32 %v3190, 7
      %v3192 = vsub.s32 %v425, %v3191
      %v3193 = vrot.slane %v3162, %v3192
      %v3194 = vlaneseq
      %v3195 = vshrl.u32 %v3194, 7
      %v3196 = vsub.s32 %v425, %v3195
      %v3197 = vrot.slane %v3165, %v3196
      %v3198 = vsel %vm458, %v3173, %v3169
      %v3199 = vsel %vm460, %v3177, %v3198
      %v3200 = vsel %vm462, %v3181, %v3199
      %v3201 = vsel %vm464, %v3185, %v3200
      %v3202 = vsel %vm466, %v3189, %v3201
      %v3203 = vsel %vm468, %v3193, %v3202
      %v3204 = vsel %vm470, %v3197, %v3203
      %v3206 = vsel %vm473, %v3204, 0.0
      %3207 = vadd.xlane.f32.xlu0 %v3206
      %v3208 = vpop.xlane.xlu0 %3207
      %v3209 = vrcp.pop %v3208
      %v3211 = vlaneseq
      %v3212 = vshrl.u32 %v3211, 7
      %v3213 = vsub.s32 0, %v3212
      %v3214 = vrot.slane %v3209, %v3213
      %v3215 = vlaneseq
      %v3216 = vshrl.u32 %v3215, 7
      %v3217 = vsub.s32 1, %v3216
      %v3218 = vrot.slane %v3209, %v3217
      %v3219 = vlaneseq
      %v3220 = vshrl.u32 %v3219, 7
      %v3221 = vsub.s32 2, %v3220
      %v3222 = vrot.slane %v3209, %v3221
      %v3223 = vlaneseq
      %v3224 = vshrl.u32 %v3223, 7
      %v3225 = vsub.s32 3, %v3224
      %v3226 = vrot.slane %v3209, %v3225
      %v3227 = vlaneseq
      %v3228 = vshrl.u32 %v3227, 7
      %v3229 = vsub.s32 4, %v3228
      %v3230 = vrot.slane %v3209, %v3229
      %v3231 = vlaneseq
      %v3232 = vshrl.u32 %v3231, 7
      %v3233 = vsub.s32 5, %v3232
      %v3234 = vrot.slane %v3209, %v3233
      %v3235 = vlaneseq
      %v3236 = vshrl.u32 %v3235, 7
      %v3237 = vsub.s32 6, %v3236
      %v3238 = vrot.slane %v3209, %v3237
      %v3239 = vlaneseq
      %v3240 = vshrl.u32 %v3239, 7
      %v3241 = vsub.s32 7, %v3240
      %v3242 = vrot.slane %v3209, %v3241
      %v3251 = vmul.f32 %v3119, %v3214
      %v3252 = vmul.f32 %v3121, %v3218
      %v3253 = vmul.f32 %v3123, %v3222
      %v3254 = vmul.f32 %v3125, %v3226
      %v3255 = vmul.f32 %v3127, %v3230
      %v3256 = vmul.f32 %v3129, %v3234
      %v3257 = vmul.f32 %v3131, %v3238
      %v3258 = vmul.f32 %v3133, %v3242
      %v3259 = vpack.c.bf16 %v3251, %v3251
      %v3260 = vpack.c.bf16 %v3252, %v3252
      %v3261 = vpack.c.bf16 %v3253, %v3253
      %v3262 = vpack.c.bf16 %v3254, %v3254
      %v3263 = vpack.c.bf16 %v3255, %v3255
      %v3264 = vpack.c.bf16 %v3256, %v3256
      %v3265 = vpack.c.bf16 %v3257, %v3257
      %v3266 = vpack.c.bf16 %v3258, %v3258
      %v3275 = vunpack.c.l.b16 %v3259
      %v3276 = vunpack.c.l.b16 %v3260
      %v3277 = vunpack.c.l.b16 %v3261
      %v3278 = vunpack.c.l.b16 %v3262
      %v3279 = vunpack.c.l.b16 %v3263
      %v3280 = vunpack.c.l.b16 %v3264
      %v3281 = vunpack.c.l.b16 %v3265
      %v3282 = vunpack.c.l.b16 %v3266
      %3283 = vset.pattern.permute.xlu0 0
      %3284 = vperm.xlu0 %3283, %v3275
      %v3285 = vpop.permute.xlu0 %3284
      %3286 = vset.pattern.permute.xlu0 0
      %3287 = vperm.xlu0 %3286, %v3276
      %v3288 = vpop.permute.xlu0 %3287
      %3289 = vset.pattern.permute.xlu0 0
      %3290 = vperm.xlu0 %3289, %v3277
      %v3291 = vpop.permute.xlu0 %3290
      %3292 = vset.pattern.permute.xlu0 0
      %3293 = vperm.xlu0 %3292, %v3278
      %v3294 = vpop.permute.xlu0 %3293
      %3295 = vset.pattern.permute.xlu0 0
      %3296 = vperm.xlu0 %3295, %v3279
      %v3297 = vpop.permute.xlu0 %3296
      %3298 = vset.pattern.permute.xlu0 0
      %3299 = vperm.xlu0 %3298, %v3280
      %v3300 = vpop.permute.xlu0 %3299
      %3301 = vset.pattern.permute.xlu0 0
      %3302 = vperm.xlu0 %3301, %v3281
      %v3303 = vpop.permute.xlu0 %3302
      %3304 = vset.pattern.permute.xlu0 0
      %3305 = vperm.xlu0 %3304, %v3282
      %v3306 = vpop.permute.xlu0 %3305
      %v3307 = vlaneseq
      %v3308 = vshrl.u32 %v3307, 7
      %v3309 = vsub.s32 %v425, %v3308
      %v3310 = vrot.slane %v3285, %v3309
      %v3311 = vlaneseq
      %v3312 = vshrl.u32 %v3311, 7
      %v3313 = vsub.s32 %v425, %v3312
      %v3314 = vrot.slane %v3288, %v3313
      %v3315 = vlaneseq
      %v3316 = vshrl.u32 %v3315, 7
      %v3317 = vsub.s32 %v425, %v3316
      %v3318 = vrot.slane %v3291, %v3317
      %v3319 = vlaneseq
      %v3320 = vshrl.u32 %v3319, 7
      %v3321 = vsub.s32 %v425, %v3320
      %v3322 = vrot.slane %v3294, %v3321
      %v3323 = vlaneseq
      %v3324 = vshrl.u32 %v3323, 7
      %v3325 = vsub.s32 %v425, %v3324
      %v3326 = vrot.slane %v3297, %v3325
      %v3327 = vlaneseq
      %v3328 = vshrl.u32 %v3327, 7
      %v3329 = vsub.s32 %v425, %v3328
      %v3330 = vrot.slane %v3300, %v3329
      %v3331 = vlaneseq
      %v3332 = vshrl.u32 %v3331, 7
      %v3333 = vsub.s32 %v425, %v3332
      %v3334 = vrot.slane %v3303, %v3333
      %v3335 = vlaneseq
      %v3336 = vshrl.u32 %v3335, 7
      %v3337 = vsub.s32 %v425, %v3336
      %v3338 = vrot.slane %v3306, %v3337
      %v3339 = vsel %vm458, %v3314, %v3310
      %v3340 = vsel %vm460, %v3318, %v3339
      %v3341 = vsel %vm462, %v3322, %v3340
      %v3342 = vsel %vm464, %v3326, %v3341
      %v3343 = vsel %vm466, %v3330, %v3342
      %v3344 = vsel %vm468, %v3334, %v3343
      %v3345 = vsel %vm470, %v3338, %v3344
      %v3346 = vpack.c.b16 %v3345, %v3345
      %3347 = vrot.lane.b32.xlu0 %v675, 40
      %v3348 = vpop.permute.xlu0 %3347
      %v3350 = vsel %vm473, %v3346, 0
      %v3353 = vsel %vm762, %v3348, 0
      %3355 = vmatprep.subr.bf16.mxu0 0
      %3356 = vmatpush1.bf16.msra.mxu0 0
      %3357 = vmatprep.subr.bf16.mxu0 0
      %3358 = vmatpush1.bf16.msra.mxu0 0
      %3359 = vmatprep.subr.bf16.mxu0 0
      %3360 = vmatpush1.bf16.msra.mxu0 0
      %3361 = vmatprep.subr.bf16.mxu0 0
      %3362 = vmatpush1.bf16.msra.mxu0 0
      %3363 = vmatprep.subr.bf16.mxu0 0
      %3364 = vmatpush1.bf16.msra.mxu0 0
      %3365 = vmatprep.subr.bf16.mxu0 0
      %3366 = vmatpush1.bf16.msra.mxu0 0
      %3367 = vmatprep.subr.bf16.mxu0 0
      %3368 = vmatpush1.bf16.msra.mxu0 0
      %3369 = vmatprep.subr.bf16.mxu0 0
      %3370 = vmatpush1.bf16.msra.mxu0 %v3353
      %3371 = vmatprep.subr.bf16.mxu0 0
      %3372 = vmatpush2.bf16.msra.mxu0 0
      %3373 = vmatprep.subr.bf16.mxu0 0
      %3374 = vmatpush2.bf16.msra.mxu0 0
      %3375 = vmatprep.subr.bf16.mxu0 0
      %3376 = vmatpush2.bf16.msra.mxu0 0
      %3377 = vmatprep.subr.bf16.mxu0 0
      %3378 = vmatpush2.bf16.msra.mxu0 0
      %3379 = vmatprep.subr.bf16.mxu0 0
      %3380 = vmatpush2.bf16.msra.mxu0 0
      %3381 = vmatprep.subr.bf16.mxu0 0
      %3382 = vmatpush2.bf16.msra.mxu0 0
      %3383 = vmatprep.subr.bf16.mxu0 0
      %3384 = vmatpush2.bf16.msra.mxu0 0
      %3385 = vmatprep.subr.bf16.mxu0 0
      %3386 = vmatpush2.bf16.msra.mxu0 0
      %3387 = vmatprep.mubr.bf16.mxu0 0
      %3388 = vmatmul.mubr.bf16.gmra.mxu0 %v3350
      %v3389 = vpop.f32.mrf.mxu0
      %v3390 = vadd.f32 0.0, %v3389
      %v3391 = vpop.f32.mrf.mxu0
      %v3392 = vpop.f32.mrf.mxu0
      %v3393 = vpop.f32.mrf.mxu0
      %3394 = vdwg.mxu0
      %3396 = vrot.lane.b32.xlu0 %v3390, 24
      %v3397 = vpop.permute.xlu0 %3396
      %vm3399 = vcmask 228544
      %3400 = vst.msk [vmem:[#allocation2] sm:$0xff] %vm3399, %v3397
      %3401 = vrot.lane.b32.xlu0 %v383, 100
      %v3402 = vpop.permute.xlu0 %3401
      %3403 = vrot.lane.b32.xlu0 %v384, 100
      %v3404 = vpop.permute.xlu0 %3403
      %3405 = vrot.lane.b32.xlu0 %v385, 100
      %v3406 = vpop.permute.xlu0 %3405
      %3407 = vrot.lane.b32.xlu0 %v386, 100
      %v3408 = vpop.permute.xlu0 %3407
      %3409 = vrot.lane.b32.xlu0 %v387, 100
      %v3410 = vpop.permute.xlu0 %3409
      %3411 = vrot.lane.b32.xlu0 %v388, 100
      %v3412 = vpop.permute.xlu0 %3411
      %3413 = vrot.lane.b32.xlu0 %v389, 100
      %v3414 = vpop.permute.xlu0 %3413
      %3415 = vrot.lane.b32.xlu0 %v390, 100
      %v3416 = vpop.permute.xlu0 %3415
      %v3425 = vsel %vm391, %v3402, 0.0
      %3426 = vadd.xlane.f32.xlu0 %v3425
      %v3427 = vpop.xlane.xlu0 %3426
      %v3428 = vsel %vm391, %v3404, 0.0
      %3429 = vadd.xlane.f32.xlu0 %v3428
      %v3430 = vpop.xlane.xlu0 %3429
      %v3431 = vsel %vm391, %v3406, 0.0
      %3432 = vadd.xlane.f32.xlu0 %v3431
      %v3433 = vpop.xlane.xlu0 %3432
      %v3434 = vsel %vm391, %v3408, 0.0
      %3435 = vadd.xlane.f32.xlu0 %v3434
      %v3436 = vpop.xlane.xlu0 %3435
      %v3437 = vsel %vm391, %v3410, 0.0
      %3438 = vadd.xlane.f32.xlu0 %v3437
      %v3439 = vpop.xlane.xlu0 %3438
      %v3440 = vsel %vm391, %v3412, 0.0
      %3441 = vadd.xlane.f32.xlu0 %v3440
      %v3442 = vpop.xlane.xlu0 %3441
      %v3443 = vsel %vm391, %v3414, 0.0
      %3444 = vadd.xlane.f32.xlu0 %v3443
      %v3445 = vpop.xlane.xlu0 %3444
      %v3446 = vsel %vm391, %v3416, 0.0
      %3447 = vadd.xlane.f32.xlu0 %v3446
      %v3448 = vpop.xlane.xlu0 %3447
      %v3457 = vlaneseq
      %v3458 = vshrl.u32 %v3457, 7
      %v3459 = vsub.s32 %v425, %v3458
      %v3460 = vrot.slane %v3427, %v3459
      %v3461 = vlaneseq
      %v3462 = vshrl.u32 %v3461, 7
      %v3463 = vsub.s32 %v425, %v3462
      %v3464 = vrot.slane %v3430, %v3463
      %v3465 = vlaneseq
      %v3466 = vshrl.u32 %v3465, 7
      %v3467 = vsub.s32 %v425, %v3466
      %v3468 = vrot.slane %v3433, %v3467
      %v3469 = vlaneseq
      %v3470 = vshrl.u32 %v3469, 7
      %v3471 = vsub.s32 %v425, %v3470
      %v3472 = vrot.slane %v3436, %v3471
      %v3473 = vlaneseq
      %v3474 = vshrl.u32 %v3473, 7
      %v3475 = vsub.s32 %v425, %v3474
      %v3476 = vrot.slane %v3439, %v3475
      %v3477 = vlaneseq
      %v3478 = vshrl.u32 %v3477, 7
      %v3479 = vsub.s32 %v425, %v3478
      %v3480 = vrot.slane %v3442, %v3479
      %v3481 = vlaneseq
      %v3482 = vshrl.u32 %v3481, 7
      %v3483 = vsub.s32 %v425, %v3482
      %v3484 = vrot.slane %v3445, %v3483
      %v3485 = vlaneseq
      %v3486 = vshrl.u32 %v3485, 7
      %v3487 = vsub.s32 %v425, %v3486
      %v3488 = vrot.slane %v3448, %v3487
      %v3489 = vsel %vm458, %v3464, %v3460
      %v3490 = vsel %vm460, %v3468, %v3489
      %v3491 = vsel %vm462, %v3472, %v3490
      %v3492 = vsel %vm464, %v3476, %v3491
      %v3493 = vsel %vm466, %v3480, %v3492
      %v3494 = vsel %vm468, %v3484, %v3493
      %v3495 = vsel %vm470, %v3488, %v3494
      %v3497 = vsel %vm473, %v3495, -inf
      %3498 = vmax.xlane.f32.xlu0 %v3497
      %v3499 = vpop.xlane.xlu0 %3498
      %v3501 = vlaneseq
      %v3502 = vshrl.u32 %v3501, 7
      %v3503 = vsub.s32 0, %v3502
      %v3504 = vrot.slane %v3499, %v3503
      %v3505 = vlaneseq
      %v3506 = vshrl.u32 %v3505, 7
      %v3507 = vsub.s32 1, %v3506
      %v3508 = vrot.slane %v3499, %v3507
      %v3509 = vlaneseq
      %v3510 = vshrl.u32 %v3509, 7
      %v3511 = vsub.s32 2, %v3510
      %v3512 = vrot.slane %v3499, %v3511
      %v3513 = vlaneseq
      %v3514 = vshrl.u32 %v3513, 7
      %v3515 = vsub.s32 3, %v3514
      %v3516 = vrot.slane %v3499, %v3515
      %v3517 = vlaneseq
      %v3518 = vshrl.u32 %v3517, 7
      %v3519 = vsub.s32 4, %v3518
      %v3520 = vrot.slane %v3499, %v3519
      %v3521 = vlaneseq
      %v3522 = vshrl.u32 %v3521, 7
      %v3523 = vsub.s32 5, %v3522
      %v3524 = vrot.slane %v3499, %v3523
      %v3525 = vlaneseq
      %v3526 = vshrl.u32 %v3525, 7
      %v3527 = vsub.s32 6, %v3526
      %v3528 = vrot.slane %v3499, %v3527
      %v3529 = vlaneseq
      %v3530 = vshrl.u32 %v3529, 7
      %v3531 = vsub.s32 7, %v3530
      %v3532 = vrot.slane %v3499, %v3531
      %v3541 = vsub.f32 %v3427, %v3504
      %v3542 = vsub.f32 %v3430, %v3508
      %v3543 = vsub.f32 %v3433, %v3512
      %v3544 = vsub.f32 %v3436, %v3516
      %v3545 = vsub.f32 %v3439, %v3520
      %v3546 = vsub.f32 %v3442, %v3524
      %v3547 = vsub.f32 %v3445, %v3528
      %v3548 = vsub.f32 %v3448, %v3532
      %v3549 = vmul.f32 %v3541, 1.442695
      %v3550 = vpow.pop %v3549
      %v3551 = vmul.f32 %v3542, 1.442695
      %v3552 = vpow.pop %v3551
      %v3553 = vmul.f32 %v3543, 1.442695
      %v3554 = vpow.pop %v3553
      %v3555 = vmul.f32 %v3544, 1.442695
      %v3556 = vpow.pop %v3555
      %v3557 = vmul.f32 %v3545, 1.442695
      %v3558 = vpow.pop %v3557
      %v3559 = vmul.f32 %v3546, 1.442695
      %v3560 = vpow.pop %v3559
      %v3561 = vmul.f32 %v3547, 1.442695
      %v3562 = vpow.pop %v3561
      %v3563 = vmul.f32 %v3548, 1.442695
      %v3564 = vpow.pop %v3563
      %3573 = vset.pattern.permute.xlu0 0
      %3574 = vperm.xlu0 %3573, %v3550
      %v3575 = vpop.permute.xlu0 %3574
      %3576 = vset.pattern.permute.xlu0 0
      %3577 = vperm.xlu0 %3576, %v3552
      %v3578 = vpop.permute.xlu0 %3577
      %3579 = vset.pattern.permute.xlu0 0
      %3580 = vperm.xlu0 %3579, %v3554
      %v3581 = vpop.permute.xlu0 %3580
      %3582 = vset.pattern.permute.xlu0 0
      %3583 = vperm.xlu0 %3582, %v3556
      %v3584 = vpop.permute.xlu0 %3583
      %3585 = vset.pattern.permute.xlu0 0
      %3586 = vperm.xlu0 %3585, %v3558
      %v3587 = vpop.permute.xlu0 %3586
      %3588 = vset.pattern.permute.xlu0 0
      %3589 = vperm.xlu0 %3588, %v3560
      %v3590 = vpop.permute.xlu0 %3589
      %3591 = vset.pattern.permute.xlu0 0
      %3592 = vperm.xlu0 %3591, %v3562
      %v3593 = vpop.permute.xlu0 %3592
      %3594 = vset.pattern.permute.xlu0 0
      %3595 = vperm.xlu0 %3594, %v3564
      %v3596 = vpop.permute.xlu0 %3595
      %v3597 = vlaneseq
      %v3598 = vshrl.u32 %v3597, 7
      %v3599 = vsub.s32 %v425, %v3598
      %v3600 = vrot.slane %v3575, %v3599
      %v3601 = vlaneseq
      %v3602 = vshrl.u32 %v3601, 7
      %v3603 = vsub.s32 %v425, %v3602
      %v3604 = vrot.slane %v3578, %v3603
      %v3605 = vlaneseq
      %v3606 = vshrl.u32 %v3605, 7
      %v3607 = vsub.s32 %v425, %v3606
      %v3608 = vrot.slane %v3581, %v3607
      %v3609 = vlaneseq
      %v3610 = vshrl.u32 %v3609, 7
      %v3611 = vsub.s32 %v425, %v3610
      %v3612 = vrot.slane %v3584, %v3611
      %v3613 = vlaneseq
      %v3614 = vshrl.u32 %v3613, 7
      %v3615 = vsub.s32 %v425, %v3614
      %v3616 = vrot.slane %v3587, %v3615
      %v3617 = vlaneseq
      %v3618 = vshrl.u32 %v3617, 7
      %v3619 = vsub.s32 %v425, %v3618
      %v3620 = vrot.slane %v3590, %v3619
      %v3621 = vlaneseq
      %v3622 = vshrl.u32 %v3621, 7
      %v3623 = vsub.s32 %v425, %v3622
      %v3624 = vrot.slane %v3593, %v3623
      %v3625 = vlaneseq
      %v3626 = vshrl.u32 %v3625, 7
      %v3627 = vsub.s32 %v425, %v3626
      %v3628 = vrot.slane %v3596, %v3627
      %v3629 = vsel %vm458, %v3604, %v3600
      %v3630 = vsel %vm460, %v3608, %v3629
      %v3631 = vsel %vm462, %v3612, %v3630
      %v3632 = vsel %vm464, %v3616, %v3631
      %v3633 = vsel %vm466, %v3620, %v3632
      %v3634 = vsel %vm468, %v3624, %v3633
      %v3635 = vsel %vm470, %v3628, %v3634
      %v3637 = vsel %vm473, %v3635, 0.0
      %3638 = vadd.xlane.f32.xlu0 %v3637
      %v3639 = vpop.xlane.xlu0 %3638
      %v3640 = vrcp.pop %v3639
      %v3642 = vlaneseq
      %v3643 = vshrl.u32 %v3642, 7
      %v3644 = vsub.s32 0, %v3643
      %v3645 = vrot.slane %v3640, %v3644
      %v3646 = vlaneseq
      %v3647 = vshrl.u32 %v3646, 7
      %v3648 = vsub.s32 1, %v3647
      %v3649 = vrot.slane %v3640, %v3648
      %v3650 = vlaneseq
      %v3651 = vshrl.u32 %v3650, 7
      %v3652 = vsub.s32 2, %v3651
      %v3653 = vrot.slane %v3640, %v3652
      %v3654 = vlaneseq
      %v3655 = vshrl.u32 %v3654, 7
      %v3656 = vsub.s32 3, %v3655
      %v3657 = vrot.slane %v3640, %v3656
      %v3658 = vlaneseq
      %v3659 = vshrl.u32 %v3658, 7
      %v3660 = vsub.s32 4, %v3659
      %v3661 = vrot.slane %v3640, %v3660
      %v3662 = vlaneseq
      %v3663 = vshrl.u32 %v3662, 7
      %v3664 = vsub.s32 5, %v3663
      %v3665 = vrot.slane %v3640, %v3664
      %v3666 = vlaneseq
      %v3667 = vshrl.u32 %v3666, 7
      %v3668 = vsub.s32 6, %v3667
      %v3669 = vrot.slane %v3640, %v3668
      %v3670 = vlaneseq
      %v3671 = vshrl.u32 %v3670, 7
      %v3672 = vsub.s32 7, %v3671
      %v3673 = vrot.slane %v3640, %v3672
      %v3682 = vmul.f32 %v3550, %v3645
      %v3683 = vmul.f32 %v3552, %v3649
      %v3684 = vmul.f32 %v3554, %v3653
      %v3685 = vmul.f32 %v3556, %v3657
      %v3686 = vmul.f32 %v3558, %v3661
      %v3687 = vmul.f32 %v3560, %v3665
      %v3688 = vmul.f32 %v3562, %v3669
      %v3689 = vmul.f32 %v3564, %v3673
      %v3690 = vpack.c.bf16 %v3682, %v3682
      %v3691 = vpack.c.bf16 %v3683, %v3683
      %v3692 = vpack.c.bf16 %v3684, %v3684
      %v3693 = vpack.c.bf16 %v3685, %v3685
      %v3694 = vpack.c.bf16 %v3686, %v3686
      %v3695 = vpack.c.bf16 %v3687, %v3687
      %v3696 = vpack.c.bf16 %v3688, %v3688
      %v3697 = vpack.c.bf16 %v3689, %v3689
      %v3706 = vunpack.c.l.b16 %v3690
      %v3707 = vunpack.c.l.b16 %v3691
      %v3708 = vunpack.c.l.b16 %v3692
      %v3709 = vunpack.c.l.b16 %v3693
      %v3710 = vunpack.c.l.b16 %v3694
      %v3711 = vunpack.c.l.b16 %v3695
      %v3712 = vunpack.c.l.b16 %v3696
      %v3713 = vunpack.c.l.b16 %v3697
      %3714 = vset.pattern.permute.xlu0 0
      %3715 = vperm.xlu0 %3714, %v3706
      %v3716 = vpop.permute.xlu0 %3715
      %3717 = vset.pattern.permute.xlu0 0
      %3718 = vperm.xlu0 %3717, %v3707
      %v3719 = vpop.permute.xlu0 %3718
      %3720 = vset.pattern.permute.xlu0 0
      %3721 = vperm.xlu0 %3720, %v3708
      %v3722 = vpop.permute.xlu0 %3721
      %3723 = vset.pattern.permute.xlu0 0
      %3724 = vperm.xlu0 %3723, %v3709
      %v3725 = vpop.permute.xlu0 %3724
      %3726 = vset.pattern.permute.xlu0 0
      %3727 = vperm.xlu0 %3726, %v3710
      %v3728 = vpop.permute.xlu0 %3727
      %3729 = vset.pattern.permute.xlu0 0
      %3730 = vperm.xlu0 %3729, %v3711
      %v3731 = vpop.permute.xlu0 %3730
      %3732 = vset.pattern.permute.xlu0 0
      %3733 = vperm.xlu0 %3732, %v3712
      %v3734 = vpop.permute.xlu0 %3733
      %3735 = vset.pattern.permute.xlu0 0
      %3736 = vperm.xlu0 %3735, %v3713
      %v3737 = vpop.permute.xlu0 %3736
      %v3738 = vlaneseq
      %v3739 = vshrl.u32 %v3738, 7
      %v3740 = vsub.s32 %v425, %v3739
      %v3741 = vrot.slane %v3716, %v3740
      %v3742 = vlaneseq
      %v3743 = vshrl.u32 %v3742, 7
      %v3744 = vsub.s32 %v425, %v3743
      %v3745 = vrot.slane %v3719, %v3744
      %v3746 = vlaneseq
      %v3747 = vshrl.u32 %v3746, 7
      %v3748 = vsub.s32 %v425, %v3747
      %v3749 = vrot.slane %v3722, %v3748
      %v3750 = vlaneseq
      %v3751 = vshrl.u32 %v3750, 7
      %v3752 = vsub.s32 %v425, %v3751
      %v3753 = vrot.slane %v3725, %v3752
      %v3754 = vlaneseq
      %v3755 = vshrl.u32 %v3754, 7
      %v3756 = vsub.s32 %v425, %v3755
      %v3757 = vrot.slane %v3728, %v3756
      %v3758 = vlaneseq
      %v3759 = vshrl.u32 %v3758, 7
      %v3760 = vsub.s32 %v425, %v3759
      %v3761 = vrot.slane %v3731, %v3760
      %v3762 = vlaneseq
      %v3763 = vshrl.u32 %v3762, 7
      %v3764 = vsub.s32 %v425, %v3763
      %v3765 = vrot.slane %v3734, %v3764
      %v3766 = vlaneseq
      %v3767 = vshrl.u32 %v3766, 7
      %v3768 = vsub.s32 %v425, %v3767
      %v3769 = vrot.slane %v3737, %v3768
      %v3770 = vsel %vm458, %v3745, %v3741
      %v3771 = vsel %vm460, %v3749, %v3770
      %v3772 = vsel %vm462, %v3753, %v3771
      %v3773 = vsel %vm464, %v3757, %v3772
      %v3774 = vsel %vm466, %v3761, %v3773
      %v3775 = vsel %vm468, %v3765, %v3774
      %v3776 = vsel %vm470, %v3769, %v3775
      %v3777 = vpack.c.b16 %v3776, %v3776
      %3778 = vrot.lane.b32.xlu0 %v675, 36
      %v3779 = vpop.permute.xlu0 %3778
      %v3781 = vsel %vm473, %v3777, 0
      %v3784 = vsel %vm762, %v3779, 0
      %3786 = vmatprep.subr.bf16.mxu0 0
      %3787 = vmatpush1.bf16.msra.mxu0 0
      %3788 = vmatprep.subr.bf16.mxu0 0
      %3789 = vmatpush1.bf16.msra.mxu0 0
      %3790 = vmatprep.subr.bf16.mxu0 0
      %3791 = vmatpush1.bf16.msra.mxu0 0
      %3792 = vmatprep.subr.bf16.mxu0 0
      %3793 = vmatpush1.bf16.msra.mxu0 0
      %3794 = vmatprep.subr.bf16.mxu0 0
      %3795 = vmatpush1.bf16.msra.mxu0 0
      %3796 = vmatprep.subr.bf16.mxu0 0
      %3797 = vmatpush1.bf16.msra.mxu0 0
      %3798 = vmatprep.subr.bf16.mxu0 0
      %3799 = vmatpush1.bf16.msra.mxu0 0
      %3800 = vmatprep.subr.bf16.mxu0 0
      %3801 = vmatpush1.bf16.msra.mxu0 %v3784
      %3802 = vmatprep.subr.bf16.mxu0 0
      %3803 = vmatpush2.bf16.msra.mxu0 0
      %3804 = vmatprep.subr.bf16.mxu0 0
      %3805 = vmatpush2.bf16.msra.mxu0 0
      %3806 = vmatprep.subr.bf16.mxu0 0
      %3807 = vmatpush2.bf16.msra.mxu0 0
      %3808 = vmatprep.subr.bf16.mxu0 0
      %3809 = vmatpush2.bf16.msra.mxu0 0
      %3810 = vmatprep.subr.bf16.mxu0 0
      %3811 = vmatpush2.bf16.msra.mxu0 0
      %3812 = vmatprep.subr.bf16.mxu0 0
      %3813 = vmatpush2.bf16.msra.mxu0 0
      %3814 = vmatprep.subr.bf16.mxu0 0
      %3815 = vmatpush2.bf16.msra.mxu0 0
      %3816 = vmatprep.subr.bf16.mxu0 0
      %3817 = vmatpush2.bf16.msra.mxu0 0
      %3818 = vmatprep.mubr.bf16.mxu0 0
      %3819 = vmatmul.mubr.bf16.gmra.mxu0 %v3781
      %v3820 = vpop.f32.mrf.mxu0
      %v3821 = vadd.f32 0.0, %v3820
      %v3822 = vpop.f32.mrf.mxu0
      %v3823 = vpop.f32.mrf.mxu0
      %v3824 = vpop.f32.mrf.mxu0
      %3825 = vdwg.mxu0
      %3827 = vrot.lane.b32.xlu0 %v3821, 28
      %v3828 = vpop.permute.xlu0 %3827
      %vm3830 = vcmask 261344
      %3831 = vst.msk [vmem:[#allocation2] sm:$0xff] %vm3830, %v3828
      %v3832 = vld [vmem:[#allocation2] sm:$0xff]
      %v3833 = vpack.c.bf16 %v3832, %v3832
      %v3834 = vld [vmem:[%s3] sm:$0xf]
      %v3835 = vld [vmem:[%s3 + $0x4] sm:$0xf]
      %v3836 = vld [vmem:[%s3 + $0x8] sm:$0xf]
      %v3837 = vld [vmem:[%s3 + $0xc] sm:$0xf]
      %v3838 = vld [vmem:[%s4] sm:$0x1]
      %v3840 = vlaneseq
      %v3841 = vshrl.u32 %v3840, 7
      %v3842 = vsub.s32 0, %v3841
      %v3843 = vrot.slane %v3838, %v3842
      %v3849 = vunpack.c.l.b16 %v3834
      %v3850 = vunpack.c.l.b16 %v3835
      %v3851 = vunpack.c.l.b16 %v3836
      %v3852 = vunpack.c.l.b16 %v3837
      %v3853 = vpack.c.b16 %v3850, %v3849
      %v3854 = vpack.c.b16 %v3852, %v3851
      %v3858 = vsel %vm246, %v3833, 0
      %3860 = vmatprep.subr.bf16.mxu0 0
      %3861 = vmatpush1.bf16.msra.mxu0 0
      %3862 = vmatprep.subr.bf16.mxu0 0
      %3863 = vmatpush1.bf16.msra.mxu0 0
      %3864 = vmatprep.subr.bf16.mxu0 0
      %3865 = vmatpush1.bf16.msra.mxu0 0
      %3866 = vmatprep.subr.bf16.mxu0 0
      %3867 = vmatpush1.bf16.msra.mxu0 0
      %3868 = vmatprep.subr.bf16.mxu0 0
      %3869 = vmatpush1.bf16.msra.mxu0 0
      %3870 = vmatprep.subr.bf16.mxu0 0
      %3871 = vmatpush1.bf16.msra.mxu0 0
      %3872 = vmatprep.subr.bf16.mxu0 0
      %3873 = vmatpush1.bf16.msra.mxu0 %v3854
      %3874 = vmatprep.subr.bf16.mxu0 0
      %3875 = vmatpush1.bf16.msra.mxu0 %v3853
      %3876 = vmatprep.subr.bf16.mxu0 0
      %3877 = vmatpush2.bf16.msra.mxu0 0
      %3878 = vmatprep.subr.bf16.mxu0 0
      %3879 = vmatpush2.bf16.msra.mxu0 0
      %3880 = vmatprep.subr.bf16.mxu0 0
      %3881 = vmatpush2.bf16.msra.mxu0 0
      %3882 = vmatprep.subr.bf16.mxu0 0
      %3883 = vmatpush2.bf16.msra.mxu0 0
      %3884 = vmatprep.subr.bf16.mxu0 0
      %3885 = vmatpush2.bf16.msra.mxu0 0
      %3886 = vmatprep.subr.bf16.mxu0 0
      %3887 = vmatpush2.bf16.msra.mxu0 0
      %3888 = vmatprep.subr.bf16.mxu0 0
      %3889 = vmatpush2.bf16.msra.mxu0 0
      %3890 = vmatprep.subr.bf16.mxu0 0
      %3891 = vmatpush2.bf16.msra.mxu0 0
      %3892 = vmatprep.mubr.bf16.mxu0 0
      %3893 = vmatmul.mubr.bf16.gmra.mxu0 %v3858
      %v3894 = vpop.f32.mrf.mxu0
      %v3895 = vadd.f32 %v3843, %v3894
      %v3896 = vpop.f32.mrf.mxu0
      %v3897 = vpop.f32.mrf.mxu0
      %v3898 = vpop.f32.mrf.mxu0
      %3899 = vdwg.mxu0
      %3900 = vst [vmem:[%s219] sm:$0xff] %v3895
      %p3901 = scmp.lt.s32.totalorder %s16, 1
      %s3902 = scalar_select %p3901, %s16, 1
      %s3903 = smul.addr %s3902, 8
      %s3904 = scalar_lea.vmem %s5, %s3903
      // Predicated region
      $region41: #{_attention_forward_impl.1} parent=39 // pred_check
        %p3905 = pneg %p144
      $region42: #{_attention_forward_impl.1} parent=39 // pred_check_branch
        %3907 = sbr.rel (%p3905) target = $region44
      $region43: #{_attention_forward_impl.1} parent=39 // pred_region
        _
      $region44: #{_attention_forward_impl.1} parent=39 // pred_fallthru
        _
    $region40: #{_attention_forward_impl.1} parent=5 // pred_fallthru
      _
    %p3908 = scmp.le.s32.totalorder 2, %s11
    // Predicated region
    $region45: #{_attention_forward_impl.1} parent=5 // pred_check
      %p3909 = pneg %p3908
    $region46: #{_attention_forward_impl.1} parent=5 // pred_check_branch
      %3911 = sbr.rel (%p3909) target = $region48
    $region47: #{_attention_forward_impl.1} parent=5 // pred_region
      %s3912 = ssub.s32 %s11, 2
      // Predicated region
      $region49: #{_attention_forward_impl.1} parent=47 // pred_check
        %p3913 = pneg %p150
      $region50: #{_attention_forward_impl.1} parent=47 // pred_check_branch
        %3915 = sbr.rel (%p3913) target = $region52
      $region51: #{_attention_forward_impl.1} parent=47 // pred_region
        %p3916 = scmp.lt.s32.totalorder %s17, 1
        %s3917 = scalar_select %p3916, %s17, 1
        %s3918 = smul.addr %s3917, 8
        %s3919 = scalar_lea.vmem %s5, %s3918
      $region52: #{_attention_forward_impl.1} parent=47 // pred_fallthru
        _
    $region48: #{_attention_forward_impl.1} parent=5 // pred_fallthru
      _
  $region6: #{_attention_forward_impl.1} parent=0 // loop_footer
    %s15 = sadd.s32 1, %s11
  $region7: #{_attention_forward_impl.1} parent=0 // loop_footer_branch
    %10 = sbr.rel target = $region3
  $region8: #{_attention_forward_impl.1} parent=0 // loop_exit
    _

</llo_original>
